<compile_context>
chip_gen: v7x
topology: tpu7x:2x2x1
jax: 0.10.0
libtpu: 0.0.40
codegen_flags: <defaults>
</compile_context>

<pallas_src>
import functools

import jax
import jax.numpy as jnp
from jax.experimental import pallas as pl
from jax.experimental.pallas import tpu as pltpu


_WEIGHT_ORDER = ("wqkv", "wo", "w1", "b1", "w2", "b2",
                 "g1", "be1", "g2", "be2")


def _round_up(a, b):
    return (a + b - 1) // b * b


# ---------------------------------------------------------------------------
# Kernel: the whole encoder stack on one (TM, P*D) tile of patches.
# ---------------------------------------------------------------------------
def _encoder_stack_kernel(x_ref, wqkv_ref, wo_ref, w1_ref, b1_ref, w2_ref,
                          b2_ref, g1_ref, be1_ref, g2_ref, be2_ref, out_ref,
                          *, num_stages, P, D):
    PD = P * D
    scale = 1.0 / (float(D) ** 0.5)
    cdt = wqkv_ref.dtype                       # MXU input dtype (bfloat16)

    def layernorm(h, gamma, beta):
        # Per-position LayerNorm over each D-wide lane segment (VPU/XLU only).
        segs = []
        for p in range(P):
            seg = h[:, p * D:(p + 1) * D]
            mu = jnp.mean(seg, axis=-1, keepdims=True)
            xc = seg - mu
            var = jnp.mean(xc * xc, axis=-1, keepdims=True)
            segs.append(xc * jax.lax.rsqrt(var + 1e-5))
        hn = segs[0] if P == 1 else jnp.concatenate(segs, axis=-1)
        return hn * gamma + beta

    h = x_ref[...].astype(jnp.float32)         # (TM, P*D) resident across stages

    for s in range(num_stages):                # static unroll over encoder stages
        # --- fused Q/K/V projection (block-diagonal, K = P*D lanes) ---
        qkv = jnp.dot(h.astype(cdt), wqkv_ref[s],
                      preferred_element_type=jnp.float32)   # (TM, 3*P*D)
        q = qkv[:, :PD] * scale
        k = qkv[:, PD:2 * PD]
        v = qkv[:, 2 * PD:3 * PD]

        # --- diagonal-masked self-attention within each patch (VPU/XLU) ---
        if P == 1:
            attn = v         # softmax over the single (masked) entry -> weight 1
        else:
            attn_segs = []
            for i in range(P):
                qi = q[:, i * D:(i + 1) * D]
                scores, vsegs = [], []
                for j in range(P):
                    if j == i:                   # masked diagonal
                        continue
                    kj = k[:, j * D:(j + 1) * D]
                    scores.append(jnp.sum(qi * kj, axis=-1, keepdims=True))
                    vsegs.append(v[:, j * D:(j + 1) * D])
                m = scores[0]
                for sc in scores[1:]:
                    m = jnp.maximum(m, sc)
                exps = [jnp.exp(sc - m) for sc in scores]
                denom = exps[0]
                for e in exps[1:]:
                    denom = denom + e
                inv = pl.reciprocal(denom, approx=True)      # EUP slot
                acc = (exps[0] * inv) * vsegs[0]
                for e, vj in zip(exps[1:], vsegs[1:]):
                    acc = acc + (e * inv) * vj
                attn_segs.append(acc)
            attn = jnp.concatenate(attn_segs, axis=-1)       # (TM, P*D)

        attn = jnp.dot(attn.astype(cdt), wo_ref[s],
                       preferred_element_type=jnp.float32)

        # --- residual + LayerNorm 1 ---
        h = layernorm(h + attn, g1_ref[s], be1_ref[s])

        # --- position-wise feed-forward (block-diagonal weights) ---
        f = jnp.dot(h.astype(cdt), w1_ref[s],
                    preferred_element_type=jnp.float32) + b1_ref[s]
        # TODO(synk): torch nn.GELU defaults to the exact erf form; tanh approx used.
        f = jax.nn.gelu(f, approximate=True)
        f = jnp.dot(f.astype(cdt), w2_ref[s],
                    preferred_element_type=jnp.float32) + b2_ref[s]

        # --- residual + LayerNorm 2 ---
        h = layernorm(h + f, g2_ref[s], be2_ref[s])

        out_ref[s] = h.astype(out_ref.dtype)


# ---------------------------------------------------------------------------
# Weight preparation: stack stages, fuse QKV, block-diagonal-expand to the
# lane-dense (P*D)-wide layout, cast matmul operands to bf16.
# ---------------------------------------------------------------------------
def _block_diag(w, P):
    """(din, dout) -> (P*din, P*dout) block-diagonal (per-position weight)."""
    din, dout = w.shape
    eye = jnp.eye(P, dtype=w.dtype)
    bd = eye[:, :, None, None] * w[None, None, :, :]        # (P, P, din, dout)
    return bd.transpose(0, 2, 1, 3).reshape(P * din, P * dout)


def _prepare_stage_weights(params_list, P, compute_dtype=jnp.bfloat16):
    cols = {k: [] for k in _WEIGHT_ORDER}
    for p in params_list:
        cols["wqkv"].append(jnp.concatenate(
            [_block_diag(p["wq"], P), _block_diag(p["wk"], P),
             _block_diag(p["wv"], P)], axis=1))
        cols["wo"].append(_block_diag(p["wo"], P))
        cols["w1"].append(_block_diag(p["w1"], P))
        cols["w2"].append(_block_diag(p["w2"], P))
        for k in ("b1", "b2", "g1", "be1", "g2", "be2"):
            cols[k].append(jnp.tile(p[k], (1, P)))
    out = {}
    for k in _WEIGHT_ORDER:
        stacked = jnp.stack(cols[k])
        out[k] = stacked.astype(
            compute_dtype if k in ("wqkv", "wo", "w1", "w2") else jnp.float32)
    return out


# ---------------------------------------------------------------------------
# Wrapper: faithful port of Encoder_process.forward.
# ---------------------------------------------------------------------------
def encoder_process(x_enc, patch_num, params_list, tile_m=512):
    """x_enc: (B, V, L, D) -> (final (B, V, L, D), encoder_out_list)."""
    B, V, L, D = x_enc.shape
    P = L // patch_num
    PD = P * D
    N = B * V * patch_num
    S = len(params_list)

    w = _prepare_stage_weights(params_list, P)

    # Lane-dense per-patch view: row = one patch, columns = pos*D + d.
    x_flat = x_enc.reshape(N, PD)

    # TM patches per grid step (multiple of 8 sublanes). 512 rows keeps
    # double-buffered tiles + all resident weights far below v7x's 64 MiB VMEM.
    tm = min(tile_m, _round_up(N, 8))
    tm = max(8, (tm // 8) * 8)
    n_pad = _round_up(N, tm)
    if n_pad != N:
        x_flat = jnp.pad(x_flat, ((0, n_pad - N), (0, 0)))

    def full_spec(arr):
        nd = arr.ndim
        return pl.BlockSpec(arr.shape, lambda i, _nd=nd: (0,) * _nd)

    in_specs = [pl.BlockSpec((tm, PD), lambda i: (i, 0))]
    in_specs += [full_spec(w[k]) for k in _WEIGHT_ORDER]

    out = pl.pallas_call(
        functools.partial(_encoder_stack_kernel, num_stages=S, P=P, D=D),
        out_shape=jax.ShapeDtypeStruct((S, n_pad, PD), x_enc.dtype),
        grid=(n_pad // tm,),
        in_specs=in_specs,
        out_specs=pl.BlockSpec((S, tm, PD), lambda i: (0, i, 0)),
        compiler_params=pltpu.CompilerParams(
            dimension_semantics=("parallel",)),
    )(x_flat, *[w[k] for k in _WEIGHT_ORDER])

    out = out[:, :N, :]
    encoder_out_list = [out[s].reshape(B, V, patch_num, P, D) for s in range(S)]
    final = out[S - 1].reshape(B, V, L, D)      # .view(B, V, -1, D)
    return final, encoder_out_list


# ---------------------------------------------------------------------------
# Synthetic per-stage encoder parameters (the real modules are external args).
# ---------------------------------------------------------------------------
def make_encoder_params(key, encoder_num, D, d_ff):
    params_list = []
    for l in range(encoder_num):
        ks = jax.random.split(jax.random.fold_in(key, l), 6)
        params_list.append({
            "wq": 0.05 * jax.random.normal(ks[0], (D, D), jnp.float32),
            "wk": 0.05 * jax.random.normal(ks[1], (D, D), jnp.float32),
            "wv": 0.05 * jax.random.normal(ks[2], (D, D), jnp.float32),
            "wo": 0.05 * jax.random.normal(ks[3], (D, D), jnp.float32),
            "w1": 0.05 * jax.random.normal(ks[4], (D, d_ff), jnp.float32),
            "b1": jnp.zeros((1, d_ff), jnp.float32),
            "w2": 0.05 * jax.random.normal(ks[5], (d_ff, D), jnp.float32),
            "b2": jnp.zeros((1, D), jnp.float32),
            "g1": jnp.ones((1, D), jnp.float32),
            "be1": jnp.zeros((1, D), jnp.float32),
            "g2": jnp.ones((1, D), jnp.float32),
            "be2": jnp.zeros((1, D), jnp.float32),
        })
    return params_list


# ---------------------------------------------------------------------------
# Pure-JAX f32 reference of the same synthetic block (for a numerics check).
# ---------------------------------------------------------------------------
def _layernorm_ref(x, g, b, eps=1e-5):
    mu = jnp.mean(x, axis=-1, keepdims=True)
    var = jnp.mean((x - mu) ** 2, axis=-1, keepdims=True)
    return (x - mu) * jax.lax.rsqrt(var + eps) * g + b


def encoder_process_ref(x_enc, patch_num, params_list):
    B, V, L, D = x_enc.shape
    P = L // patch_num
    x = x_enc.reshape(B * V * patch_num, P, D).astype(jnp.float32)
    outs = []
    for p in params_list:
        q, k, v = x @ p["wq"], x @ p["wk"], x @ p["wv"]
        s = jnp.einsum("npd,nqd->npq", q, k) / (float(D) ** 0.5)
        s = jnp.where(jnp.eye(P, dtype=bool)[None], -1e9, s)
        a = jax.nn.softmax(s, axis=-1)
        o = jnp.einsum("npq,nqd->npd", a, v) @ p["wo"]
        h = _layernorm_ref(x + o, p["g1"], p["be1"])
        f = jax.nn.gelu(h @ p["w1"] + p["b1"], approximate=True)
        f = f @ p["w2"] + p["b2"]
        x = _layernorm_ref(h + f, p["g2"], p["be2"])
        outs.append(x.reshape(B, V, patch_num, P, D))
    return x.reshape(B, V, L, D), outs


if __name__ == "__main__":
    B, V, L, D = 2, 4, 16, 32
    patch_num, encoder_num, d_ff = 4, 2, 64

    key = jax.random.PRNGKey(0)
    k_x, k_w = jax.random.split(key)
    x_enc = jax.random.normal(k_x, (B, V, L, D), jnp.float32)
    params_list = make_encoder_params(k_w, encoder_num, D, d_ff)

    run = jax.jit(functools.partial(encoder_process, patch_num=patch_num,
                                    params_list=params_list))
    final, enc_outs = run(x_enc)
    final = jax.block_until_ready(final)
    enc_outs = [jax.block_until_ready(e) for e in enc_outs]

    P = L // patch_num
    assert final.shape == (B, V, L, D)
    assert len(enc_outs) == encoder_num
    assert all(e.shape == (B, V, patch_num, P, D) for e in enc_outs)
    assert bool(jnp.all(jnp.isfinite(final)))

    # Loose numerics check vs. the f32 reference (kernel uses bf16 matmul
    # operands and an approximate reciprocal, so allow a generous tolerance).
    ref_final, ref_outs = encoder_process_ref(x_enc, patch_num, params_list)
    errs = [float(jnp.max(jnp.abs(final - ref_final)))]
    errs += [float(jnp.max(jnp.abs(a - b))) for a, b in zip(enc_outs, ref_outs)]
    max_err = max(errs)
    assert max_err < 0.15, f"numerics mismatch: max abs err {max_err}"

    print("KERNEL_OK")
</pallas_src>

<mosaic_0001>
module attributes {stable_mosaic.version = 11 : i64} {
  func.func @_encoder_stack_kernel(%arg0: i32, %arg1: memref<32x128xf32, #tpu.memory_space<vmem>>, %arg2: memref<2x128x384xbf16, #tpu.memory_space<vmem>>, %arg3: memref<2x128x128xbf16, #tpu.memory_space<vmem>>, %arg4: memref<2x128x256xbf16, #tpu.memory_space<vmem>>, %arg5: memref<2x1x256xf32, #tpu.memory_space<vmem>>, %arg6: memref<2x256x128xbf16, #tpu.memory_space<vmem>>, %arg7: memref<2x1x128xf32, #tpu.memory_space<vmem>>, %arg8: memref<2x1x128xf32, #tpu.memory_space<vmem>>, %arg9: memref<2x1x128xf32, #tpu.memory_space<vmem>>, %arg10: memref<2x1x128xf32, #tpu.memory_space<vmem>>, %arg11: memref<2x1x128xf32, #tpu.memory_space<vmem>>, %arg12: memref<2x32x128xf32, #tpu.memory_space<vmem>>) attributes {dimension_semantics = [#tpu.dimension_semantics<parallel>], iteration_bounds = array<i64: 1>, scalar_prefetch = 0 : i64, scratch_operands = 0 : i64, tpu.core_type = #tpu.core_type<tc>, window_params = [{transform_indices = @transform_0, window_bounds = array<i64: 32, 128>}, {pipeline_mode = #tpu.pipeline_mode<synchronous>, transform_indices = @transform_1, window_bounds = array<i64: 2, 128, 384>}, {pipeline_mode = #tpu.pipeline_mode<synchronous>, transform_indices = @transform_2, window_bounds = array<i64: 2, 128, 128>}, {pipeline_mode = #tpu.pipeline_mode<synchronous>, transform_indices = @transform_3, window_bounds = array<i64: 2, 128, 256>}, {pipeline_mode = #tpu.pipeline_mode<synchronous>, transform_indices = @transform_4, window_bounds = array<i64: 2, 1, 256>}, {pipeline_mode = #tpu.pipeline_mode<synchronous>, transform_indices = @transform_5, window_bounds = array<i64: 2, 256, 128>}, {pipeline_mode = #tpu.pipeline_mode<synchronous>, transform_indices = @transform_6, window_bounds = array<i64: 2, 1, 128>}, {pipeline_mode = #tpu.pipeline_mode<synchronous>, transform_indices = @transform_7, window_bounds = array<i64: 2, 1, 128>}, {pipeline_mode = #tpu.pipeline_mode<synchronous>, transform_indices = @transform_8, window_bounds = array<i64: 2, 1, 128>}, {pipeline_mode = #tpu.pipeline_mode<synchronous>, transform_indices = @transform_9, window_bounds = array<i64: 2, 1, 128>}, {pipeline_mode = #tpu.pipeline_mode<synchronous>, transform_indices = @transform_10, window_bounds = array<i64: 2, 1, 128>}, {transform_indices = @transform_11, window_bounds = array<i64: 2, 32, 128>}]} {
    %c0 = arith.constant 0 : index
    %c0_0 = arith.constant 0 : index
    %0 = vector.load %arg1[%c0, %c0_0] : memref<32x128xf32, #tpu.memory_space<vmem>>, vector<32x128xf32>
    %1 = arith.truncf %0 : vector<32x128xf32> to vector<32x128xbf16>
    %c0_1 = arith.constant 0 : index
    %c0_2 = arith.constant 0 : index
    %c0_3 = arith.constant 0 : index
    %2 = vector.load %arg2[%c0_1, %c0_2, %c0_3] : memref<2x128x384xbf16, #tpu.memory_space<vmem>>, vector<1x128x384xbf16>
    %3 = vector.shape_cast %2 : vector<1x128x384xbf16> to vector<128x384xbf16>
    %cst = arith.constant dense<0.000000e+00> : vector<32x384xf32>
    %4 = tpu.matmul %1, %3, %cst {dimension_numbers = #tpu.dot_dimension_numbers<[1], [0], [0], [1], [0, 0, 1, 1], [], []>} : vector<32x128xbf16>, vector<128x384xbf16>, vector<32x384xf32> -> vector<32x384xf32>
    %5 = vector.extract_strided_slice %4 {offsets = [0, 0], sizes = [32, 128], strides = [1, 1]} : vector<32x384xf32> to vector<32x128xf32>
    %cst_4 = arith.constant 0.176776692 : f32
    %6 = vector.broadcast %cst_4 : f32 to vector<32x128xf32>
    %7 = arith.mulf %5, %6 : vector<32x128xf32>
    %8 = vector.extract_strided_slice %4 {offsets = [0, 128], sizes = [32, 128], strides = [1, 1]} : vector<32x384xf32> to vector<32x128xf32>
    %9 = vector.extract_strided_slice %4 {offsets = [0, 256], sizes = [32, 128], strides = [1, 1]} : vector<32x384xf32> to vector<32x128xf32>
    %10 = vector.extract_strided_slice %7 {offsets = [0, 0], sizes = [32, 32], strides = [1, 1]} : vector<32x128xf32> to vector<32x32xf32>
    %11 = vector.extract_strided_slice %8 {offsets = [0, 32], sizes = [32, 32], strides = [1, 1]} : vector<32x128xf32> to vector<32x32xf32>
    %12 = arith.mulf %10, %11 : vector<32x32xf32>
    %cst_5 = arith.constant dense<0.000000e+00> : vector<32xf32>
    %13 = vector.multi_reduction <add>, %12, %cst_5 [1] : vector<32x32xf32> to vector<32xf32>
    %14 = vector.shape_cast %13 : vector<32xf32> to vector<32x1xf32>
    %15 = vector.extract_strided_slice %9 {offsets = [0, 32], sizes = [32, 32], strides = [1, 1]} : vector<32x128xf32> to vector<32x32xf32>
    %16 = vector.extract_strided_slice %8 {offsets = [0, 64], sizes = [32, 32], strides = [1, 1]} : vector<32x128xf32> to vector<32x32xf32>
    %17 = arith.mulf %10, %16 : vector<32x32xf32>
    %cst_6 = arith.constant dense<0.000000e+00> : vector<32xf32>
    %18 = vector.multi_reduction <add>, %17, %cst_6 [1] : vector<32x32xf32> to vector<32xf32>
    %19 = vector.shape_cast %18 : vector<32xf32> to vector<32x1xf32>
    %20 = vector.extract_strided_slice %9 {offsets = [0, 64], sizes = [32, 32], strides = [1, 1]} : vector<32x128xf32> to vector<32x32xf32>
    %21 = vector.extract_strided_slice %8 {offsets = [0, 96], sizes = [32, 32], strides = [1, 1]} : vector<32x128xf32> to vector<32x32xf32>
    %22 = arith.mulf %10, %21 : vector<32x32xf32>
    %cst_7 = arith.constant dense<0.000000e+00> : vector<32xf32>
    %23 = vector.multi_reduction <add>, %22, %cst_7 [1] : vector<32x32xf32> to vector<32xf32>
    %24 = vector.shape_cast %23 : vector<32xf32> to vector<32x1xf32>
    %25 = vector.extract_strided_slice %9 {offsets = [0, 96], sizes = [32, 32], strides = [1, 1]} : vector<32x128xf32> to vector<32x32xf32>
    %26 = arith.maximumf %14, %19 : vector<32x1xf32>
    %27 = arith.maximumf %26, %24 : vector<32x1xf32>
    %28 = arith.subf %14, %27 : vector<32x1xf32>
    %29 = math.exp %28 : vector<32x1xf32>
    %30 = arith.subf %19, %27 : vector<32x1xf32>
    %31 = math.exp %30 : vector<32x1xf32>
    %32 = arith.subf %24, %27 : vector<32x1xf32>
    %33 = math.exp %32 : vector<32x1xf32>
    %34 = arith.addf %29, %31 : vector<32x1xf32>
    %35 = arith.addf %34, %33 : vector<32x1xf32>
    %36 = tpu.reciprocal %35 {approx = true} : vector<32x1xf32> -> vector<32x1xf32>
    %37 = arith.mulf %29, %36 : vector<32x1xf32>
    %38 = vector.broadcast %37 : vector<32x1xf32> to vector<32x32xf32>
    %39 = arith.mulf %38, %15 : vector<32x32xf32>
    %40 = arith.mulf %31, %36 : vector<32x1xf32>
    %41 = vector.broadcast %40 : vector<32x1xf32> to vector<32x32xf32>
    %42 = arith.mulf %41, %20 : vector<32x32xf32>
    %43 = arith.addf %39, %42 : vector<32x32xf32>
    %44 = arith.mulf %33, %36 : vector<32x1xf32>
    %45 = vector.broadcast %44 : vector<32x1xf32> to vector<32x32xf32>
    %46 = arith.mulf %45, %25 : vector<32x32xf32>
    %47 = arith.addf %43, %46 : vector<32x32xf32>
    %48 = vector.extract_strided_slice %7 {offsets = [0, 32], sizes = [32, 32], strides = [1, 1]} : vector<32x128xf32> to vector<32x32xf32>
    %49 = vector.extract_strided_slice %8 {offsets = [0, 0], sizes = [32, 32], strides = [1, 1]} : vector<32x128xf32> to vector<32x32xf32>
    %50 = arith.mulf %48, %49 : vector<32x32xf32>
    %cst_8 = arith.constant dense<0.000000e+00> : vector<32xf32>
    %51 = vector.multi_reduction <add>, %50, %cst_8 [1] : vector<32x32xf32> to vector<32xf32>
    %52 = vector.shape_cast %51 : vector<32xf32> to vector<32x1xf32>
    %53 = vector.extract_strided_slice %9 {offsets = [0, 0], sizes = [32, 32], strides = [1, 1]} : vector<32x128xf32> to vector<32x32xf32>
    %54 = vector.extract_strided_slice %8 {offsets = [0, 64], sizes = [32, 32], strides = [1, 1]} : vector<32x128xf32> to vector<32x32xf32>
    %55 = arith.mulf %48, %54 : vector<32x32xf32>
    %cst_9 = arith.constant dense<0.000000e+00> : vector<32xf32>
    %56 = vector.multi_reduction <add>, %55, %cst_9 [1] : vector<32x32xf32> to vector<32xf32>
    %57 = vector.shape_cast %56 : vector<32xf32> to vector<32x1xf32>
    %58 = vector.extract_strided_slice %9 {offsets = [0, 64], sizes = [32, 32], strides = [1, 1]} : vector<32x128xf32> to vector<32x32xf32>
    %59 = vector.extract_strided_slice %8 {offsets = [0, 96], sizes = [32, 32], strides = [1, 1]} : vector<32x128xf32> to vector<32x32xf32>
    %60 = arith.mulf %48, %59 : vector<32x32xf32>
    %cst_10 = arith.constant dense<0.000000e+00> : vector<32xf32>
    %61 = vector.multi_reduction <add>, %60, %cst_10 [1] : vector<32x32xf32> to vector<32xf32>
    %62 = vector.shape_cast %61 : vector<32xf32> to vector<32x1xf32>
    %63 = vector.extract_strided_slice %9 {offsets = [0, 96], sizes = [32, 32], strides = [1, 1]} : vector<32x128xf32> to vector<32x32xf32>
    %64 = arith.maximumf %52, %57 : vector<32x1xf32>
    %65 = arith.maximumf %64, %62 : vector<32x1xf32>
    %66 = arith.subf %52, %65 : vector<32x1xf32>
    %67 = math.exp %66 : vector<32x1xf32>
    %68 = arith.subf %57, %65 : vector<32x1xf32>
    %69 = math.exp %68 : vector<32x1xf32>
    %70 = arith.subf %62, %65 : vector<32x1xf32>
    %71 = math.exp %70 : vector<32x1xf32>
    %72 = arith.addf %67, %69 : vector<32x1xf32>
    %73 = arith.addf %72, %71 : vector<32x1xf32>
    %74 = tpu.reciprocal %73 {approx = true} : vector<32x1xf32> -> vector<32x1xf32>
    %75 = arith.mulf %67, %74 : vector<32x1xf32>
    %76 = vector.broadcast %75 : vector<32x1xf32> to vector<32x32xf32>
    %77 = arith.mulf %76, %53 : vector<32x32xf32>
    %78 = arith.mulf %69, %74 : vector<32x1xf32>
    %79 = vector.broadcast %78 : vector<32x1xf32> to vector<32x32xf32>
    %80 = arith.mulf %79, %58 : vector<32x32xf32>
    %81 = arith.addf %77, %80 : vector<32x32xf32>
    %82 = arith.mulf %71, %74 : vector<32x1xf32>
    %83 = vector.broadcast %82 : vector<32x1xf32> to vector<32x32xf32>
    %84 = arith.mulf %83, %63 : vector<32x32xf32>
    %85 = arith.addf %81, %84 : vector<32x32xf32>
    %86 = vector.extract_strided_slice %7 {offsets = [0, 64], sizes = [32, 32], strides = [1, 1]} : vector<32x128xf32> to vector<32x32xf32>
    %87 = vector.extract_strided_slice %8 {offsets = [0, 0], sizes = [32, 32], strides = [1, 1]} : vector<32x128xf32> to vector<32x32xf32>
    %88 = arith.mulf %86, %87 : vector<32x32xf32>
    %cst_11 = arith.constant dense<0.000000e+00> : vector<32xf32>
    %89 = vector.multi_reduction <add>, %88, %cst_11 [1] : vector<32x32xf32> to vector<32xf32>
    %90 = vector.shape_cast %89 : vector<32xf32> to vector<32x1xf32>
    %91 = vector.extract_strided_slice %9 {offsets = [0, 0], sizes = [32, 32], strides = [1, 1]} : vector<32x128xf32> to vector<32x32xf32>
    %92 = vector.extract_strided_slice %8 {offsets = [0, 32], sizes = [32, 32], strides = [1, 1]} : vector<32x128xf32> to vector<32x32xf32>
    %93 = arith.mulf %86, %92 : vector<32x32xf32>
    %cst_12 = arith.constant dense<0.000000e+00> : vector<32xf32>
    %94 = vector.multi_reduction <add>, %93, %cst_12 [1] : vector<32x32xf32> to vector<32xf32>
    %95 = vector.shape_cast %94 : vector<32xf32> to vector<32x1xf32>
    %96 = vector.extract_strided_slice %9 {offsets = [0, 32], sizes = [32, 32], strides = [1, 1]} : vector<32x128xf32> to vector<32x32xf32>
    %97 = vector.extract_strided_slice %8 {offsets = [0, 96], sizes = [32, 32], strides = [1, 1]} : vector<32x128xf32> to vector<32x32xf32>
    %98 = arith.mulf %86, %97 : vector<32x32xf32>
    %cst_13 = arith.constant dense<0.000000e+00> : vector<32xf32>
    %99 = vector.multi_reduction <add>, %98, %cst_13 [1] : vector<32x32xf32> to vector<32xf32>
    %100 = vector.shape_cast %99 : vector<32xf32> to vector<32x1xf32>
    %101 = vector.extract_strided_slice %9 {offsets = [0, 96], sizes = [32, 32], strides = [1, 1]} : vector<32x128xf32> to vector<32x32xf32>
    %102 = arith.maximumf %90, %95 : vector<32x1xf32>
    %103 = arith.maximumf %102, %100 : vector<32x1xf32>
    %104 = arith.subf %90, %103 : vector<32x1xf32>
    %105 = math.exp %104 : vector<32x1xf32>
    %106 = arith.subf %95, %103 : vector<32x1xf32>
    %107 = math.exp %106 : vector<32x1xf32>
    %108 = arith.subf %100, %103 : vector<32x1xf32>
    %109 = math.exp %108 : vector<32x1xf32>
    %110 = arith.addf %105, %107 : vector<32x1xf32>
    %111 = arith.addf %110, %109 : vector<32x1xf32>
    %112 = tpu.reciprocal %111 {approx = true} : vector<32x1xf32> -> vector<32x1xf32>
    %113 = arith.mulf %105, %112 : vector<32x1xf32>
    %114 = vector.broadcast %113 : vector<32x1xf32> to vector<32x32xf32>
    %115 = arith.mulf %114, %91 : vector<32x32xf32>
    %116 = arith.mulf %107, %112 : vector<32x1xf32>
    %117 = vector.broadcast %116 : vector<32x1xf32> to vector<32x32xf32>
    %118 = arith.mulf %117, %96 : vector<32x32xf32>
    %119 = arith.addf %115, %118 : vector<32x32xf32>
    %120 = arith.mulf %109, %112 : vector<32x1xf32>
    %121 = vector.broadcast %120 : vector<32x1xf32> to vector<32x32xf32>
    %122 = arith.mulf %121, %101 : vector<32x32xf32>
    %123 = arith.addf %119, %122 : vector<32x32xf32>
    %124 = vector.extract_strided_slice %7 {offsets = [0, 96], sizes = [32, 32], strides = [1, 1]} : vector<32x128xf32> to vector<32x32xf32>
    %125 = vector.extract_strided_slice %8 {offsets = [0, 0], sizes = [32, 32], strides = [1, 1]} : vector<32x128xf32> to vector<32x32xf32>
    %126 = arith.mulf %124, %125 : vector<32x32xf32>
    %cst_14 = arith.constant dense<0.000000e+00> : vector<32xf32>
    %127 = vector.multi_reduction <add>, %126, %cst_14 [1] : vector<32x32xf32> to vector<32xf32>
    %128 = vector.shape_cast %127 : vector<32xf32> to vector<32x1xf32>
    %129 = vector.extract_strided_slice %9 {offsets = [0, 0], sizes = [32, 32], strides = [1, 1]} : vector<32x128xf32> to vector<32x32xf32>
    %130 = vector.extract_strided_slice %8 {offsets = [0, 32], sizes = [32, 32], strides = [1, 1]} : vector<32x128xf32> to vector<32x32xf32>
    %131 = arith.mulf %124, %130 : vector<32x32xf32>
    %cst_15 = arith.constant dense<0.000000e+00> : vector<32xf32>
    %132 = vector.multi_reduction <add>, %131, %cst_15 [1] : vector<32x32xf32> to vector<32xf32>
    %133 = vector.shape_cast %132 : vector<32xf32> to vector<32x1xf32>
    %134 = vector.extract_strided_slice %9 {offsets = [0, 32], sizes = [32, 32], strides = [1, 1]} : vector<32x128xf32> to vector<32x32xf32>
    %135 = vector.extract_strided_slice %8 {offsets = [0, 64], sizes = [32, 32], strides = [1, 1]} : vector<32x128xf32> to vector<32x32xf32>
    %136 = arith.mulf %124, %135 : vector<32x32xf32>
    %cst_16 = arith.constant dense<0.000000e+00> : vector<32xf32>
    %137 = vector.multi_reduction <add>, %136, %cst_16 [1] : vector<32x32xf32> to vector<32xf32>
    %138 = vector.shape_cast %137 : vector<32xf32> to vector<32x1xf32>
    %139 = vector.extract_strided_slice %9 {offsets = [0, 64], sizes = [32, 32], strides = [1, 1]} : vector<32x128xf32> to vector<32x32xf32>
    %140 = arith.maximumf %128, %133 : vector<32x1xf32>
    %141 = arith.maximumf %140, %138 : vector<32x1xf32>
    %142 = arith.subf %128, %141 : vector<32x1xf32>
    %143 = math.exp %142 : vector<32x1xf32>
    %144 = arith.subf %133, %141 : vector<32x1xf32>
    %145 = math.exp %144 : vector<32x1xf32>
    %146 = arith.subf %138, %141 : vector<32x1xf32>
    %147 = math.exp %146 : vector<32x1xf32>
    %148 = arith.addf %143, %145 : vector<32x1xf32>
    %149 = arith.addf %148, %147 : vector<32x1xf32>
    %150 = tpu.reciprocal %149 {approx = true} : vector<32x1xf32> -> vector<32x1xf32>
    %151 = arith.mulf %143, %150 : vector<32x1xf32>
    %152 = vector.broadcast %151 : vector<32x1xf32> to vector<32x32xf32>
    %153 = arith.mulf %152, %129 : vector<32x32xf32>
    %154 = arith.mulf %145, %150 : vector<32x1xf32>
    %155 = vector.broadcast %154 : vector<32x1xf32> to vector<32x32xf32>
    %156 = arith.mulf %155, %134 : vector<32x32xf32>
    %157 = arith.addf %153, %156 : vector<32x32xf32>
    %158 = arith.mulf %147, %150 : vector<32x1xf32>
    %159 = vector.broadcast %158 : vector<32x1xf32> to vector<32x32xf32>
    %160 = arith.mulf %159, %139 : vector<32x32xf32>
    %161 = arith.addf %157, %160 : vector<32x32xf32>
    %162 = tpu.concatenate %47, %85, %123, %161 in 1 : vector<32x32xf32>, vector<32x32xf32>, vector<32x32xf32>, vector<32x32xf32> -> vector<32x128xf32>
    %163 = arith.truncf %162 : vector<32x128xf32> to vector<32x128xbf16>
    %c0_17 = arith.constant 0 : index
    %c0_18 = arith.constant 0 : index
    %c0_19 = arith.constant 0 : index
    %164 = vector.load %arg3[%c0_17, %c0_18, %c0_19] : memref<2x128x128xbf16, #tpu.memory_space<vmem>>, vector<1x128x128xbf16>
    %165 = vector.shape_cast %164 : vector<1x128x128xbf16> to vector<128x128xbf16>
    %cst_20 = arith.constant dense<0.000000e+00> : vector<32x128xf32>
    %166 = tpu.matmul %163, %165, %cst_20 {dimension_numbers = #tpu.dot_dimension_numbers<[1], [0], [0], [1], [0, 0, 1, 1], [], []>} : vector<32x128xbf16>, vector<128x128xbf16>, vector<32x128xf32> -> vector<32x128xf32>
    %167 = arith.addf %0, %166 : vector<32x128xf32>
    %c0_21 = arith.constant 0 : index
    %c0_22 = arith.constant 0 : index
    %c0_23 = arith.constant 0 : index
    %168 = vector.load %arg8[%c0_21, %c0_22, %c0_23] : memref<2x1x128xf32, #tpu.memory_space<vmem>>, vector<1x1x128xf32>
    %169 = vector.shape_cast %168 : vector<1x1x128xf32> to vector<1x128xf32>
    %c0_24 = arith.constant 0 : index
    %c0_25 = arith.constant 0 : index
    %c0_26 = arith.constant 0 : index
    %170 = vector.load %arg9[%c0_24, %c0_25, %c0_26] : memref<2x1x128xf32, #tpu.memory_space<vmem>>, vector<1x1x128xf32>
    %171 = vector.shape_cast %170 : vector<1x1x128xf32> to vector<1x128xf32>
    %172 = vector.extract_strided_slice %167 {offsets = [0, 0], sizes = [32, 32], strides = [1, 1]} : vector<32x128xf32> to vector<32x32xf32>
    %cst_27 = arith.constant dense<0.000000e+00> : vector<32xf32>
    %173 = vector.multi_reduction <add>, %172, %cst_27 [1] : vector<32x32xf32> to vector<32xf32>
    %174 = vector.shape_cast %173 : vector<32xf32> to vector<32x1xf32>
    %cst_28 = arith.constant 3.200000e+01 : f32
    %175 = vector.broadcast %cst_28 : f32 to vector<32x1xf32>
    %176 = arith.divf %174, %175 : vector<32x1xf32>
    %177 = vector.broadcast %176 : vector<32x1xf32> to vector<32x32xf32>
    %178 = arith.subf %172, %177 : vector<32x32xf32>
    %179 = arith.mulf %178, %178 : vector<32x32xf32>
    %cst_29 = arith.constant dense<0.000000e+00> : vector<32xf32>
    %180 = vector.multi_reduction <add>, %179, %cst_29 [1] : vector<32x32xf32> to vector<32xf32>
    %181 = vector.shape_cast %180 : vector<32xf32> to vector<32x1xf32>
    %cst_30 = arith.constant 3.200000e+01 : f32
    %182 = vector.broadcast %cst_30 : f32 to vector<32x1xf32>
    %183 = arith.divf %181, %182 : vector<32x1xf32>
    %cst_31 = arith.constant 9.99999974E-6 : f32
    %184 = vector.broadcast %cst_31 : f32 to vector<32x1xf32>
    %185 = arith.addf %183, %184 : vector<32x1xf32>
    %186 = math.rsqrt %185 : vector<32x1xf32>
    %187 = vector.broadcast %186 : vector<32x1xf32> to vector<32x32xf32>
    %188 = arith.mulf %178, %187 : vector<32x32xf32>
    %189 = vector.extract_strided_slice %167 {offsets = [0, 32], sizes = [32, 32], strides = [1, 1]} : vector<32x128xf32> to vector<32x32xf32>
    %cst_32 = arith.constant dense<0.000000e+00> : vector<32xf32>
    %190 = vector.multi_reduction <add>, %189, %cst_32 [1] : vector<32x32xf32> to vector<32xf32>
    %191 = vector.shape_cast %190 : vector<32xf32> to vector<32x1xf32>
    %cst_33 = arith.constant 3.200000e+01 : f32
    %192 = vector.broadcast %cst_33 : f32 to vector<32x1xf32>
    %193 = arith.divf %191, %192 : vector<32x1xf32>
    %194 = vector.broadcast %193 : vector<32x1xf32> to vector<32x32xf32>
    %195 = arith.subf %189, %194 : vector<32x32xf32>
    %196 = arith.mulf %195, %195 : vector<32x32xf32>
    %cst_34 = arith.constant dense<0.000000e+00> : vector<32xf32>
    %197 = vector.multi_reduction <add>, %196, %cst_34 [1] : vector<32x32xf32> to vector<32xf32>
    %198 = vector.shape_cast %197 : vector<32xf32> to vector<32x1xf32>
    %cst_35 = arith.constant 3.200000e+01 : f32
    %199 = vector.broadcast %cst_35 : f32 to vector<32x1xf32>
    %200 = arith.divf %198, %199 : vector<32x1xf32>
    %cst_36 = arith.constant 9.99999974E-6 : f32
    %201 = vector.broadcast %cst_36 : f32 to vector<32x1xf32>
    %202 = arith.addf %200, %201 : vector<32x1xf32>
    %203 = math.rsqrt %202 : vector<32x1xf32>
    %204 = vector.broadcast %203 : vector<32x1xf32> to vector<32x32xf32>
    %205 = arith.mulf %195, %204 : vector<32x32xf32>
    %206 = vector.extract_strided_slice %167 {offsets = [0, 64], sizes = [32, 32], strides = [1, 1]} : vector<32x128xf32> to vector<32x32xf32>
    %cst_37 = arith.constant dense<0.000000e+00> : vector<32xf32>
    %207 = vector.multi_reduction <add>, %206, %cst_37 [1] : vector<32x32xf32> to vector<32xf32>
    %208 = vector.shape_cast %207 : vector<32xf32> to vector<32x1xf32>
    %cst_38 = arith.constant 3.200000e+01 : f32
    %209 = vector.broadcast %cst_38 : f32 to vector<32x1xf32>
    %210 = arith.divf %208, %209 : vector<32x1xf32>
    %211 = vector.broadcast %210 : vector<32x1xf32> to vector<32x32xf32>
    %212 = arith.subf %206, %211 : vector<32x32xf32>
    %213 = arith.mulf %212, %212 : vector<32x32xf32>
    %cst_39 = arith.constant dense<0.000000e+00> : vector<32xf32>
    %214 = vector.multi_reduction <add>, %213, %cst_39 [1] : vector<32x32xf32> to vector<32xf32>
    %215 = vector.shape_cast %214 : vector<32xf32> to vector<32x1xf32>
    %cst_40 = arith.constant 3.200000e+01 : f32
    %216 = vector.broadcast %cst_40 : f32 to vector<32x1xf32>
    %217 = arith.divf %215, %216 : vector<32x1xf32>
    %cst_41 = arith.constant 9.99999974E-6 : f32
    %218 = vector.broadcast %cst_41 : f32 to vector<32x1xf32>
    %219 = arith.addf %217, %218 : vector<32x1xf32>
    %220 = math.rsqrt %219 : vector<32x1xf32>
    %221 = vector.broadcast %220 : vector<32x1xf32> to vector<32x32xf32>
    %222 = arith.mulf %212, %221 : vector<32x32xf32>
    %223 = vector.extract_strided_slice %167 {offsets = [0, 96], sizes = [32, 32], strides = [1, 1]} : vector<32x128xf32> to vector<32x32xf32>
    %cst_42 = arith.constant dense<0.000000e+00> : vector<32xf32>
    %224 = vector.multi_reduction <add>, %223, %cst_42 [1] : vector<32x32xf32> to vector<32xf32>
    %225 = vector.shape_cast %224 : vector<32xf32> to vector<32x1xf32>
    %cst_43 = arith.constant 3.200000e+01 : f32
    %226 = vector.broadcast %cst_43 : f32 to vector<32x1xf32>
    %227 = arith.divf %225, %226 : vector<32x1xf32>
    %228 = vector.broadcast %227 : vector<32x1xf32> to vector<32x32xf32>
    %229 = arith.subf %223, %228 : vector<32x32xf32>
    %230 = arith.mulf %229, %229 : vector<32x32xf32>
    %cst_44 = arith.constant dense<0.000000e+00> : vector<32xf32>
    %231 = vector.multi_reduction <add>, %230, %cst_44 [1] : vector<32x32xf32> to vector<32xf32>
    %232 = vector.shape_cast %231 : vector<32xf32> to vector<32x1xf32>
    %cst_45 = arith.constant 3.200000e+01 : f32
    %233 = vector.broadcast %cst_45 : f32 to vector<32x1xf32>
    %234 = arith.divf %232, %233 : vector<32x1xf32>
    %cst_46 = arith.constant 9.99999974E-6 : f32
    %235 = vector.broadcast %cst_46 : f32 to vector<32x1xf32>
    %236 = arith.addf %234, %235 : vector<32x1xf32>
    %237 = math.rsqrt %236 : vector<32x1xf32>
    %238 = vector.broadcast %237 : vector<32x1xf32> to vector<32x32xf32>
    %239 = arith.mulf %229, %238 : vector<32x32xf32>
    %240 = tpu.concatenate %188, %205, %222, %239 in 1 : vector<32x32xf32>, vector<32x32xf32>, vector<32x32xf32>, vector<32x32xf32> -> vector<32x128xf32>
    %241 = vector.broadcast %169 : vector<1x128xf32> to vector<32x128xf32>
    %242 = arith.mulf %240, %241 : vector<32x128xf32>
    %243 = vector.broadcast %171 : vector<1x128xf32> to vector<32x128xf32>
    %244 = arith.addf %242, %243 : vector<32x128xf32>
    %245 = arith.truncf %244 : vector<32x128xf32> to vector<32x128xbf16>
    %c0_47 = arith.constant 0 : index
    %c0_48 = arith.constant 0 : index
    %c0_49 = arith.constant 0 : index
    %246 = vector.load %arg4[%c0_47, %c0_48, %c0_49] : memref<2x128x256xbf16, #tpu.memory_space<vmem>>, vector<1x128x256xbf16>
    %247 = vector.shape_cast %246 : vector<1x128x256xbf16> to vector<128x256xbf16>
    %cst_50 = arith.constant dense<0.000000e+00> : vector<32x256xf32>
    %248 = tpu.matmul %245, %247, %cst_50 {dimension_numbers = #tpu.dot_dimension_numbers<[1], [0], [0], [1], [0, 0, 1, 1], [], []>} : vector<32x128xbf16>, vector<128x256xbf16>, vector<32x256xf32> -> vector<32x256xf32>
    %c0_51 = arith.constant 0 : index
    %c0_52 = arith.constant 0 : index
    %c0_53 = arith.constant 0 : index
    %249 = vector.load %arg5[%c0_51, %c0_52, %c0_53] : memref<2x1x256xf32, #tpu.memory_space<vmem>>, vector<1x1x256xf32>
    %250 = vector.shape_cast %249 : vector<1x1x256xf32> to vector<1x256xf32>
    %251 = vector.broadcast %250 : vector<1x256xf32> to vector<32x256xf32>
    %252 = arith.addf %248, %251 : vector<32x256xf32>
    %253 = arith.mulf %252, %252 : vector<32x256xf32>
    %254 = arith.mulf %252, %253 : vector<32x256xf32>
    %cst_54 = arith.constant 4.471500e-02 : f32
    %255 = vector.broadcast %cst_54 : f32 to vector<32x256xf32>
    %256 = arith.mulf %255, %254 : vector<32x256xf32>
    %257 = arith.addf %252, %256 : vector<32x256xf32>
    %cst_55 = arith.constant 0.797884583 : f32
    %258 = vector.broadcast %cst_55 : f32 to vector<32x256xf32>
    %259 = arith.mulf %258, %257 : vector<32x256xf32>
    %260 = math.tanh %259 : vector<32x256xf32>
    %cst_56 = arith.constant 1.000000e+00 : f32
    %261 = vector.broadcast %cst_56 : f32 to vector<32x256xf32>
    %262 = arith.addf %261, %260 : vector<32x256xf32>
    %cst_57 = arith.constant 5.000000e-01 : f32
    %263 = vector.broadcast %cst_57 : f32 to vector<32x256xf32>
    %264 = arith.mulf %263, %262 : vector<32x256xf32>
    %265 = arith.mulf %252, %264 : vector<32x256xf32>
    %266 = arith.truncf %265 : vector<32x256xf32> to vector<32x256xbf16>
    %c0_58 = arith.constant 0 : index
    %c0_59 = arith.constant 0 : index
    %c0_60 = arith.constant 0 : index
    %267 = vector.load %arg6[%c0_58, %c0_59, %c0_60] : memref<2x256x128xbf16, #tpu.memory_space<vmem>>, vector<1x256x128xbf16>
    %268 = vector.shape_cast %267 : vector<1x256x128xbf16> to vector<256x128xbf16>
    %cst_61 = arith.constant dense<0.000000e+00> : vector<32x128xf32>
    %269 = tpu.matmul %266, %268, %cst_61 {dimension_numbers = #tpu.dot_dimension_numbers<[1], [0], [0], [1], [0, 0, 1, 1], [], []>} : vector<32x256xbf16>, vector<256x128xbf16>, vector<32x128xf32> -> vector<32x128xf32>
    %c0_62 = arith.constant 0 : index
    %c0_63 = arith.constant 0 : index
    %c0_64 = arith.constant 0 : index
    %270 = vector.load %arg7[%c0_62, %c0_63, %c0_64] : memref<2x1x128xf32, #tpu.memory_space<vmem>>, vector<1x1x128xf32>
    %271 = vector.shape_cast %270 : vector<1x1x128xf32> to vector<1x128xf32>
    %272 = vector.broadcast %271 : vector<1x128xf32> to vector<32x128xf32>
    %273 = arith.addf %269, %272 : vector<32x128xf32>
    %274 = arith.addf %244, %273 : vector<32x128xf32>
    %c0_65 = arith.constant 0 : index
    %c0_66 = arith.constant 0 : index
    %c0_67 = arith.constant 0 : index
    %275 = vector.load %arg10[%c0_65, %c0_66, %c0_67] : memref<2x1x128xf32, #tpu.memory_space<vmem>>, vector<1x1x128xf32>
    %276 = vector.shape_cast %275 : vector<1x1x128xf32> to vector<1x128xf32>
    %c0_68 = arith.constant 0 : index
    %c0_69 = arith.constant 0 : index
    %c0_70 = arith.constant 0 : index
    %277 = vector.load %arg11[%c0_68, %c0_69, %c0_70] : memref<2x1x128xf32, #tpu.memory_space<vmem>>, vector<1x1x128xf32>
    %278 = vector.shape_cast %277 : vector<1x1x128xf32> to vector<1x128xf32>
    %279 = vector.extract_strided_slice %274 {offsets = [0, 0], sizes = [32, 32], strides = [1, 1]} : vector<32x128xf32> to vector<32x32xf32>
    %cst_71 = arith.constant dense<0.000000e+00> : vector<32xf32>
    %280 = vector.multi_reduction <add>, %279, %cst_71 [1] : vector<32x32xf32> to vector<32xf32>
    %281 = vector.shape_cast %280 : vector<32xf32> to vector<32x1xf32>
    %cst_72 = arith.constant 3.200000e+01 : f32
    %282 = vector.broadcast %cst_72 : f32 to vector<32x1xf32>
    %283 = arith.divf %281, %282 : vector<32x1xf32>
    %284 = vector.broadcast %283 : vector<32x1xf32> to vector<32x32xf32>
    %285 = arith.subf %279, %284 : vector<32x32xf32>
    %286 = arith.mulf %285, %285 : vector<32x32xf32>
    %cst_73 = arith.constant dense<0.000000e+00> : vector<32xf32>
    %287 = vector.multi_reduction <add>, %286, %cst_73 [1] : vector<32x32xf32> to vector<32xf32>
    %288 = vector.shape_cast %287 : vector<32xf32> to vector<32x1xf32>
    %cst_74 = arith.constant 3.200000e+01 : f32
    %289 = vector.broadcast %cst_74 : f32 to vector<32x1xf32>
    %290 = arith.divf %288, %289 : vector<32x1xf32>
    %cst_75 = arith.constant 9.99999974E-6 : f32
    %291 = vector.broadcast %cst_75 : f32 to vector<32x1xf32>
    %292 = arith.addf %290, %291 : vector<32x1xf32>
    %293 = math.rsqrt %292 : vector<32x1xf32>
    %294 = vector.broadcast %293 : vector<32x1xf32> to vector<32x32xf32>
    %295 = arith.mulf %285, %294 : vector<32x32xf32>
    %296 = vector.extract_strided_slice %274 {offsets = [0, 32], sizes = [32, 32], strides = [1, 1]} : vector<32x128xf32> to vector<32x32xf32>
    %cst_76 = arith.constant dense<0.000000e+00> : vector<32xf32>
    %297 = vector.multi_reduction <add>, %296, %cst_76 [1] : vector<32x32xf32> to vector<32xf32>
    %298 = vector.shape_cast %297 : vector<32xf32> to vector<32x1xf32>
    %cst_77 = arith.constant 3.200000e+01 : f32
    %299 = vector.broadcast %cst_77 : f32 to vector<32x1xf32>
    %300 = arith.divf %298, %299 : vector<32x1xf32>
    %301 = vector.broadcast %300 : vector<32x1xf32> to vector<32x32xf32>
    %302 = arith.subf %296, %301 : vector<32x32xf32>
    %303 = arith.mulf %302, %302 : vector<32x32xf32>
    %cst_78 = arith.constant dense<0.000000e+00> : vector<32xf32>
    %304 = vector.multi_reduction <add>, %303, %cst_78 [1] : vector<32x32xf32> to vector<32xf32>
    %305 = vector.shape_cast %304 : vector<32xf32> to vector<32x1xf32>
    %cst_79 = arith.constant 3.200000e+01 : f32
    %306 = vector.broadcast %cst_79 : f32 to vector<32x1xf32>
    %307 = arith.divf %305, %306 : vector<32x1xf32>
    %cst_80 = arith.constant 9.99999974E-6 : f32
    %308 = vector.broadcast %cst_80 : f32 to vector<32x1xf32>
    %309 = arith.addf %307, %308 : vector<32x1xf32>
    %310 = math.rsqrt %309 : vector<32x1xf32>
    %311 = vector.broadcast %310 : vector<32x1xf32> to vector<32x32xf32>
    %312 = arith.mulf %302, %311 : vector<32x32xf32>
    %313 = vector.extract_strided_slice %274 {offsets = [0, 64], sizes = [32, 32], strides = [1, 1]} : vector<32x128xf32> to vector<32x32xf32>
    %cst_81 = arith.constant dense<0.000000e+00> : vector<32xf32>
    %314 = vector.multi_reduction <add>, %313, %cst_81 [1] : vector<32x32xf32> to vector<32xf32>
    %315 = vector.shape_cast %314 : vector<32xf32> to vector<32x1xf32>
    %cst_82 = arith.constant 3.200000e+01 : f32
    %316 = vector.broadcast %cst_82 : f32 to vector<32x1xf32>
    %317 = arith.divf %315, %316 : vector<32x1xf32>
    %318 = vector.broadcast %317 : vector<32x1xf32> to vector<32x32xf32>
    %319 = arith.subf %313, %318 : vector<32x32xf32>
    %320 = arith.mulf %319, %319 : vector<32x32xf32>
    %cst_83 = arith.constant dense<0.000000e+00> : vector<32xf32>
    %321 = vector.multi_reduction <add>, %320, %cst_83 [1] : vector<32x32xf32> to vector<32xf32>
    %322 = vector.shape_cast %321 : vector<32xf32> to vector<32x1xf32>
    %cst_84 = arith.constant 3.200000e+01 : f32
    %323 = vector.broadcast %cst_84 : f32 to vector<32x1xf32>
    %324 = arith.divf %322, %323 : vector<32x1xf32>
    %cst_85 = arith.constant 9.99999974E-6 : f32
    %325 = vector.broadcast %cst_85 : f32 to vector<32x1xf32>
    %326 = arith.addf %324, %325 : vector<32x1xf32>
    %327 = math.rsqrt %326 : vector<32x1xf32>
    %328 = vector.broadcast %327 : vector<32x1xf32> to vector<32x32xf32>
    %329 = arith.mulf %319, %328 : vector<32x32xf32>
    %330 = vector.extract_strided_slice %274 {offsets = [0, 96], sizes = [32, 32], strides = [1, 1]} : vector<32x128xf32> to vector<32x32xf32>
    %cst_86 = arith.constant dense<0.000000e+00> : vector<32xf32>
    %331 = vector.multi_reduction <add>, %330, %cst_86 [1] : vector<32x32xf32> to vector<32xf32>
    %332 = vector.shape_cast %331 : vector<32xf32> to vector<32x1xf32>
    %cst_87 = arith.constant 3.200000e+01 : f32
    %333 = vector.broadcast %cst_87 : f32 to vector<32x1xf32>
    %334 = arith.divf %332, %333 : vector<32x1xf32>
    %335 = vector.broadcast %334 : vector<32x1xf32> to vector<32x32xf32>
    %336 = arith.subf %330, %335 : vector<32x32xf32>
    %337 = arith.mulf %336, %336 : vector<32x32xf32>
    %cst_88 = arith.constant dense<0.000000e+00> : vector<32xf32>
    %338 = vector.multi_reduction <add>, %337, %cst_88 [1] : vector<32x32xf32> to vector<32xf32>
    %339 = vector.shape_cast %338 : vector<32xf32> to vector<32x1xf32>
    %cst_89 = arith.constant 3.200000e+01 : f32
    %340 = vector.broadcast %cst_89 : f32 to vector<32x1xf32>
    %341 = arith.divf %339, %340 : vector<32x1xf32>
    %cst_90 = arith.constant 9.99999974E-6 : f32
    %342 = vector.broadcast %cst_90 : f32 to vector<32x1xf32>
    %343 = arith.addf %341, %342 : vector<32x1xf32>
    %344 = math.rsqrt %343 : vector<32x1xf32>
    %345 = vector.broadcast %344 : vector<32x1xf32> to vector<32x32xf32>
    %346 = arith.mulf %336, %345 : vector<32x32xf32>
    %347 = tpu.concatenate %295, %312, %329, %346 in 1 : vector<32x32xf32>, vector<32x32xf32>, vector<32x32xf32>, vector<32x32xf32> -> vector<32x128xf32>
    %348 = vector.broadcast %276 : vector<1x128xf32> to vector<32x128xf32>
    %349 = arith.mulf %347, %348 : vector<32x128xf32>
    %350 = vector.broadcast %278 : vector<1x128xf32> to vector<32x128xf32>
    %351 = arith.addf %349, %350 : vector<32x128xf32>
    %c0_91 = arith.constant 0 : index
    %c0_92 = arith.constant 0 : index
    %c0_93 = arith.constant 0 : index
    %352 = vector.load %arg12[%c0_91, %c0_92, %c0_93] : memref<2x32x128xf32, #tpu.memory_space<vmem>>, vector<1x32x128xf32>
    %353 = vector.shape_cast %352 : vector<1x32x128xf32> to vector<32x128xf32>
    %354 = vector.shape_cast %351 : vector<32x128xf32> to vector<1x32x128xf32>
    tpu.vector_store %arg12[%c0_91, %c0_92, %c0_93], %354 {strides = array<i32>} : memref<2x32x128xf32, #tpu.memory_space<vmem>>, vector<1x32x128xf32>,
    %355 = arith.truncf %351 : vector<32x128xf32> to vector<32x128xbf16>
    %c1 = arith.constant 1 : index
    %c0_94 = arith.constant 0 : index
    %c0_95 = arith.constant 0 : index
    %356 = vector.load %arg2[%c1, %c0_94, %c0_95] : memref<2x128x384xbf16, #tpu.memory_space<vmem>>, vector<1x128x384xbf16>
    %357 = vector.shape_cast %356 : vector<1x128x384xbf16> to vector<128x384xbf16>
    %cst_96 = arith.constant dense<0.000000e+00> : vector<32x384xf32>
    %358 = tpu.matmul %355, %357, %cst_96 {dimension_numbers = #tpu.dot_dimension_numbers<[1], [0], [0], [1], [0, 0, 1, 1], [], []>} : vector<32x128xbf16>, vector<128x384xbf16>, vector<32x384xf32> -> vector<32x384xf32>
    %359 = vector.extract_strided_slice %358 {offsets = [0, 0], sizes = [32, 128], strides = [1, 1]} : vector<32x384xf32> to vector<32x128xf32>
    %cst_97 = arith.constant 0.176776692 : f32
    %360 = vector.broadcast %cst_97 : f32 to vector<32x128xf32>
    %361 = arith.mulf %359, %360 : vector<32x128xf32>
    %362 = vector.extract_strided_slice %358 {offsets = [0, 128], sizes = [32, 128], strides = [1, 1]} : vector<32x384xf32> to vector<32x128xf32>
    %363 = vector.extract_strided_slice %358 {offsets = [0, 256], sizes = [32, 128], strides = [1, 1]} : vector<32x384xf32> to vector<32x128xf32>
    %364 = vector.extract_strided_slice %361 {offsets = [0, 0], sizes = [32, 32], strides = [1, 1]} : vector<32x128xf32> to vector<32x32xf32>
    %365 = vector.extract_strided_slice %362 {offsets = [0, 32], sizes = [32, 32], strides = [1, 1]} : vector<32x128xf32> to vector<32x32xf32>
    %366 = arith.mulf %364, %365 : vector<32x32xf32>
    %cst_98 = arith.constant dense<0.000000e+00> : vector<32xf32>
    %367 = vector.multi_reduction <add>, %366, %cst_98 [1] : vector<32x32xf32> to vector<32xf32>
    %368 = vector.shape_cast %367 : vector<32xf32> to vector<32x1xf32>
    %369 = vector.extract_strided_slice %363 {offsets = [0, 32], sizes = [32, 32], strides = [1, 1]} : vector<32x128xf32> to vector<32x32xf32>
    %370 = vector.extract_strided_slice %362 {offsets = [0, 64], sizes = [32, 32], strides = [1, 1]} : vector<32x128xf32> to vector<32x32xf32>
    %371 = arith.mulf %364, %370 : vector<32x32xf32>
    %cst_99 = arith.constant dense<0.000000e+00> : vector<32xf32>
    %372 = vector.multi_reduction <add>, %371, %cst_99 [1] : vector<32x32xf32> to vector<32xf32>
    %373 = vector.shape_cast %372 : vector<32xf32> to vector<32x1xf32>
    %374 = vector.extract_strided_slice %363 {offsets = [0, 64], sizes = [32, 32], strides = [1, 1]} : vector<32x128xf32> to vector<32x32xf32>
    %375 = vector.extract_strided_slice %362 {offsets = [0, 96], sizes = [32, 32], strides = [1, 1]} : vector<32x128xf32> to vector<32x32xf32>
    %376 = arith.mulf %364, %375 : vector<32x32xf32>
    %cst_100 = arith.constant dense<0.000000e+00> : vector<32xf32>
    %377 = vector.multi_reduction <add>, %376, %cst_100 [1] : vector<32x32xf32> to vector<32xf32>
    %378 = vector.shape_cast %377 : vector<32xf32> to vector<32x1xf32>
    %379 = vector.extract_strided_slice %363 {offsets = [0, 96], sizes = [32, 32], strides = [1, 1]} : vector<32x128xf32> to vector<32x32xf32>
    %380 = arith.maximumf %368, %373 : vector<32x1xf32>
    %381 = arith.maximumf %380, %378 : vector<32x1xf32>
    %382 = arith.subf %368, %381 : vector<32x1xf32>
    %383 = math.exp %382 : vector<32x1xf32>
    %384 = arith.subf %373, %381 : vector<32x1xf32>
    %385 = math.exp %384 : vector<32x1xf32>
    %386 = arith.subf %378, %381 : vector<32x1xf32>
    %387 = math.exp %386 : vector<32x1xf32>
    %388 = arith.addf %383, %385 : vector<32x1xf32>
    %389 = arith.addf %388, %387 : vector<32x1xf32>
    %390 = tpu.reciprocal %389 {approx = true} : vector<32x1xf32> -> vector<32x1xf32>
    %391 = arith.mulf %383, %390 : vector<32x1xf32>
    %392 = vector.broadcast %391 : vector<32x1xf32> to vector<32x32xf32>
    %393 = arith.mulf %392, %369 : vector<32x32xf32>
    %394 = arith.mulf %385, %390 : vector<32x1xf32>
    %395 = vector.broadcast %394 : vector<32x1xf32> to vector<32x32xf32>
    %396 = arith.mulf %395, %374 : vector<32x32xf32>
    %397 = arith.addf %393, %396 : vector<32x32xf32>
    %398 = arith.mulf %387, %390 : vector<32x1xf32>
    %399 = vector.broadcast %398 : vector<32x1xf32> to vector<32x32xf32>
    %400 = arith.mulf %399, %379 : vector<32x32xf32>
    %401 = arith.addf %397, %400 : vector<32x32xf32>
    %402 = vector.extract_strided_slice %361 {offsets = [0, 32], sizes = [32, 32], strides = [1, 1]} : vector<32x128xf32> to vector<32x32xf32>
    %403 = vector.extract_strided_slice %362 {offsets = [0, 0], sizes = [32, 32], strides = [1, 1]} : vector<32x128xf32> to vector<32x32xf32>
    %404 = arith.mulf %402, %403 : vector<32x32xf32>
    %cst_101 = arith.constant dense<0.000000e+00> : vector<32xf32>
    %405 = vector.multi_reduction <add>, %404, %cst_101 [1] : vector<32x32xf32> to vector<32xf32>
    %406 = vector.shape_cast %405 : vector<32xf32> to vector<32x1xf32>
    %407 = vector.extract_strided_slice %363 {offsets = [0, 0], sizes = [32, 32], strides = [1, 1]} : vector<32x128xf32> to vector<32x32xf32>
    %408 = vector.extract_strided_slice %362 {offsets = [0, 64], sizes = [32, 32], strides = [1, 1]} : vector<32x128xf32> to vector<32x32xf32>
    %409 = arith.mulf %402, %408 : vector<32x32xf32>
    %cst_102 = arith.constant dense<0.000000e+00> : vector<32xf32>
    %410 = vector.multi_reduction <add>, %409, %cst_102 [1] : vector<32x32xf32> to vector<32xf32>
    %411 = vector.shape_cast %410 : vector<32xf32> to vector<32x1xf32>
    %412 = vector.extract_strided_slice %363 {offsets = [0, 64], sizes = [32, 32], strides = [1, 1]} : vector<32x128xf32> to vector<32x32xf32>
    %413 = vector.extract_strided_slice %362 {offsets = [0, 96], sizes = [32, 32], strides = [1, 1]} : vector<32x128xf32> to vector<32x32xf32>
    %414 = arith.mulf %402, %413 : vector<32x32xf32>
    %cst_103 = arith.constant dense<0.000000e+00> : vector<32xf32>
    %415 = vector.multi_reduction <add>, %414, %cst_103 [1] : vector<32x32xf32> to vector<32xf32>
    %416 = vector.shape_cast %415 : vector<32xf32> to vector<32x1xf32>
    %417 = vector.extract_strided_slice %363 {offsets = [0, 96], sizes = [32, 32], strides = [1, 1]} : vector<32x128xf32> to vector<32x32xf32>
    %418 = arith.maximumf %406, %411 : vector<32x1xf32>
    %419 = arith.maximumf %418, %416 : vector<32x1xf32>
    %420 = arith.subf %406, %419 : vector<32x1xf32>
    %421 = math.exp %420 : vector<32x1xf32>
    %422 = arith.subf %411, %419 : vector<32x1xf32>
    %423 = math.exp %422 : vector<32x1xf32>
    %424 = arith.subf %416, %419 : vector<32x1xf32>
    %425 = math.exp %424 : vector<32x1xf32>
    %426 = arith.addf %421, %423 : vector<32x1xf32>
    %427 = arith.addf %426, %425 : vector<32x1xf32>
    %428 = tpu.reciprocal %427 {approx = true} : vector<32x1xf32> -> vector<32x1xf32>
    %429 = arith.mulf %421, %428 : vector<32x1xf32>
    %430 = vector.broadcast %429 : vector<32x1xf32> to vector<32x32xf32>
    %431 = arith.mulf %430, %407 : vector<32x32xf32>
    %432 = arith.mulf %423, %428 : vector<32x1xf32>
    %433 = vector.broadcast %432 : vector<32x1xf32> to vector<32x32xf32>
    %434 = arith.mulf %433, %412 : vector<32x32xf32>
    %435 = arith.addf %431, %434 : vector<32x32xf32>
    %436 = arith.mulf %425, %428 : vector<32x1xf32>
    %437 = vector.broadcast %436 : vector<32x1xf32> to vector<32x32xf32>
    %438 = arith.mulf %437, %417 : vector<32x32xf32>
    %439 = arith.addf %435, %438 : vector<32x32xf32>
    %440 = vector.extract_strided_slice %361 {offsets = [0, 64], sizes = [32, 32], strides = [1, 1]} : vector<32x128xf32> to vector<32x32xf32>
    %441 = vector.extract_strided_slice %362 {offsets = [0, 0], sizes = [32, 32], strides = [1, 1]} : vector<32x128xf32> to vector<32x32xf32>
    %442 = arith.mulf %440, %441 : vector<32x32xf32>
    %cst_104 = arith.constant dense<0.000000e+00> : vector<32xf32>
    %443 = vector.multi_reduction <add>, %442, %cst_104 [1] : vector<32x32xf32> to vector<32xf32>
    %444 = vector.shape_cast %443 : vector<32xf32> to vector<32x1xf32>
    %445 = vector.extract_strided_slice %363 {offsets = [0, 0], sizes = [32, 32], strides = [1, 1]} : vector<32x128xf32> to vector<32x32xf32>
    %446 = vector.extract_strided_slice %362 {offsets = [0, 32], sizes = [32, 32], strides = [1, 1]} : vector<32x128xf32> to vector<32x32xf32>
    %447 = arith.mulf %440, %446 : vector<32x32xf32>
    %cst_105 = arith.constant dense<0.000000e+00> : vector<32xf32>
    %448 = vector.multi_reduction <add>, %447, %cst_105 [1] : vector<32x32xf32> to vector<32xf32>
    %449 = vector.shape_cast %448 : vector<32xf32> to vector<32x1xf32>
    %450 = vector.extract_strided_slice %363 {offsets = [0, 32], sizes = [32, 32], strides = [1, 1]} : vector<32x128xf32> to vector<32x32xf32>
    %451 = vector.extract_strided_slice %362 {offsets = [0, 96], sizes = [32, 32], strides = [1, 1]} : vector<32x128xf32> to vector<32x32xf32>
    %452 = arith.mulf %440, %451 : vector<32x32xf32>
    %cst_106 = arith.constant dense<0.000000e+00> : vector<32xf32>
    %453 = vector.multi_reduction <add>, %452, %cst_106 [1] : vector<32x32xf32> to vector<32xf32>
    %454 = vector.shape_cast %453 : vector<32xf32> to vector<32x1xf32>
    %455 = vector.extract_strided_slice %363 {offsets = [0, 96], sizes = [32, 32], strides = [1, 1]} : vector<32x128xf32> to vector<32x32xf32>
    %456 = arith.maximumf %444, %449 : vector<32x1xf32>
    %457 = arith.maximumf %456, %454 : vector<32x1xf32>
    %458 = arith.subf %444, %457 : vector<32x1xf32>
    %459 = math.exp %458 : vector<32x1xf32>
    %460 = arith.subf %449, %457 : vector<32x1xf32>
    %461 = math.exp %460 : vector<32x1xf32>
    %462 = arith.subf %454, %457 : vector<32x1xf32>
    %463 = math.exp %462 : vector<32x1xf32>
    %464 = arith.addf %459, %461 : vector<32x1xf32>
    %465 = arith.addf %464, %463 : vector<32x1xf32>
    %466 = tpu.reciprocal %465 {approx = true} : vector<32x1xf32> -> vector<32x1xf32>
    %467 = arith.mulf %459, %466 : vector<32x1xf32>
    %468 = vector.broadcast %467 : vector<32x1xf32> to vector<32x32xf32>
    %469 = arith.mulf %468, %445 : vector<32x32xf32>
    %470 = arith.mulf %461, %466 : vector<32x1xf32>
    %471 = vector.broadcast %470 : vector<32x1xf32> to vector<32x32xf32>
    %472 = arith.mulf %471, %450 : vector<32x32xf32>
    %473 = arith.addf %469, %472 : vector<32x32xf32>
    %474 = arith.mulf %463, %466 : vector<32x1xf32>
    %475 = vector.broadcast %474 : vector<32x1xf32> to vector<32x32xf32>
    %476 = arith.mulf %475, %455 : vector<32x32xf32>
    %477 = arith.addf %473, %476 : vector<32x32xf32>
    %478 = vector.extract_strided_slice %361 {offsets = [0, 96], sizes = [32, 32], strides = [1, 1]} : vector<32x128xf32> to vector<32x32xf32>
    %479 = vector.extract_strided_slice %362 {offsets = [0, 0], sizes = [32, 32], strides = [1, 1]} : vector<32x128xf32> to vector<32x32xf32>
    %480 = arith.mulf %478, %479 : vector<32x32xf32>
    %cst_107 = arith.constant dense<0.000000e+00> : vector<32xf32>
    %481 = vector.multi_reduction <add>, %480, %cst_107 [1] : vector<32x32xf32> to vector<32xf32>
    %482 = vector.shape_cast %481 : vector<32xf32> to vector<32x1xf32>
    %483 = vector.extract_strided_slice %363 {offsets = [0, 0], sizes = [32, 32], strides = [1, 1]} : vector<32x128xf32> to vector<32x32xf32>
    %484 = vector.extract_strided_slice %362 {offsets = [0, 32], sizes = [32, 32], strides = [1, 1]} : vector<32x128xf32> to vector<32x32xf32>
    %485 = arith.mulf %478, %484 : vector<32x32xf32>
    %cst_108 = arith.constant dense<0.000000e+00> : vector<32xf32>
    %486 = vector.multi_reduction <add>, %485, %cst_108 [1] : vector<32x32xf32> to vector<32xf32>
    %487 = vector.shape_cast %486 : vector<32xf32> to vector<32x1xf32>
    %488 = vector.extract_strided_slice %363 {offsets = [0, 32], sizes = [32, 32], strides = [1, 1]} : vector<32x128xf32> to vector<32x32xf32>
    %489 = vector.extract_strided_slice %362 {offsets = [0, 64], sizes = [32, 32], strides = [1, 1]} : vector<32x128xf32> to vector<32x32xf32>
    %490 = arith.mulf %478, %489 : vector<32x32xf32>
    %cst_109 = arith.constant dense<0.000000e+00> : vector<32xf32>
    %491 = vector.multi_reduction <add>, %490, %cst_109 [1] : vector<32x32xf32> to vector<32xf32>
    %492 = vector.shape_cast %491 : vector<32xf32> to vector<32x1xf32>
    %493 = vector.extract_strided_slice %363 {offsets = [0, 64], sizes = [32, 32], strides = [1, 1]} : vector<32x128xf32> to vector<32x32xf32>
    %494 = arith.maximumf %482, %487 : vector<32x1xf32>
    %495 = arith.maximumf %494, %492 : vector<32x1xf32>
    %496 = arith.subf %482, %495 : vector<32x1xf32>
    %497 = math.exp %496 : vector<32x1xf32>
    %498 = arith.subf %487, %495 : vector<32x1xf32>
    %499 = math.exp %498 : vector<32x1xf32>
    %500 = arith.subf %492, %495 : vector<32x1xf32>
    %501 = math.exp %500 : vector<32x1xf32>
    %502 = arith.addf %497, %499 : vector<32x1xf32>
    %503 = arith.addf %502, %501 : vector<32x1xf32>
    %504 = tpu.reciprocal %503 {approx = true} : vector<32x1xf32> -> vector<32x1xf32>
    %505 = arith.mulf %497, %504 : vector<32x1xf32>
    %506 = vector.broadcast %505 : vector<32x1xf32> to vector<32x32xf32>
    %507 = arith.mulf %506, %483 : vector<32x32xf32>
    %508 = arith.mulf %499, %504 : vector<32x1xf32>
    %509 = vector.broadcast %508 : vector<32x1xf32> to vector<32x32xf32>
    %510 = arith.mulf %509, %488 : vector<32x32xf32>
    %511 = arith.addf %507, %510 : vector<32x32xf32>
    %512 = arith.mulf %501, %504 : vector<32x1xf32>
    %513 = vector.broadcast %512 : vector<32x1xf32> to vector<32x32xf32>
    %514 = arith.mulf %513, %493 : vector<32x32xf32>
    %515 = arith.addf %511, %514 : vector<32x32xf32>
    %516 = tpu.concatenate %401, %439, %477, %515 in 1 : vector<32x32xf32>, vector<32x32xf32>, vector<32x32xf32>, vector<32x32xf32> -> vector<32x128xf32>
    %517 = arith.truncf %516 : vector<32x128xf32> to vector<32x128xbf16>
    %c1_110 = arith.constant 1 : index
    %c0_111 = arith.constant 0 : index
    %c0_112 = arith.constant 0 : index
    %518 = vector.load %arg3[%c1_110, %c0_111, %c0_112] : memref<2x128x128xbf16, #tpu.memory_space<vmem>>, vector<1x128x128xbf16>
    %519 = vector.shape_cast %518 : vector<1x128x128xbf16> to vector<128x128xbf16>
    %cst_113 = arith.constant dense<0.000000e+00> : vector<32x128xf32>
    %520 = tpu.matmul %517, %519, %cst_113 {dimension_numbers = #tpu.dot_dimension_numbers<[1], [0], [0], [1], [0, 0, 1, 1], [], []>} : vector<32x128xbf16>, vector<128x128xbf16>, vector<32x128xf32> -> vector<32x128xf32>
    %521 = arith.addf %351, %520 : vector<32x128xf32>
    %c1_114 = arith.constant 1 : index
    %c0_115 = arith.constant 0 : index
    %c0_116 = arith.constant 0 : index
    %522 = vector.load %arg8[%c1_114, %c0_115, %c0_116] : memref<2x1x128xf32, #tpu.memory_space<vmem>>, vector<1x1x128xf32>
    %523 = vector.shape_cast %522 : vector<1x1x128xf32> to vector<1x128xf32>
    %c1_117 = arith.constant 1 : index
    %c0_118 = arith.constant 0 : index
    %c0_119 = arith.constant 0 : index
    %524 = vector.load %arg9[%c1_117, %c0_118, %c0_119] : memref<2x1x128xf32, #tpu.memory_space<vmem>>, vector<1x1x128xf32>
    %525 = vector.shape_cast %524 : vector<1x1x128xf32> to vector<1x128xf32>
    %526 = vector.extract_strided_slice %521 {offsets = [0, 0], sizes = [32, 32], strides = [1, 1]} : vector<32x128xf32> to vector<32x32xf32>
    %cst_120 = arith.constant dense<0.000000e+00> : vector<32xf32>
    %527 = vector.multi_reduction <add>, %526, %cst_120 [1] : vector<32x32xf32> to vector<32xf32>
    %528 = vector.shape_cast %527 : vector<32xf32> to vector<32x1xf32>
    %cst_121 = arith.constant 3.200000e+01 : f32
    %529 = vector.broadcast %cst_121 : f32 to vector<32x1xf32>
    %530 = arith.divf %528, %529 : vector<32x1xf32>
    %531 = vector.broadcast %530 : vector<32x1xf32> to vector<32x32xf32>
    %532 = arith.subf %526, %531 : vector<32x32xf32>
    %533 = arith.mulf %532, %532 : vector<32x32xf32>
    %cst_122 = arith.constant dense<0.000000e+00> : vector<32xf32>
    %534 = vector.multi_reduction <add>, %533, %cst_122 [1] : vector<32x32xf32> to vector<32xf32>
    %535 = vector.shape_cast %534 : vector<32xf32> to vector<32x1xf32>
    %cst_123 = arith.constant 3.200000e+01 : f32
    %536 = vector.broadcast %cst_123 : f32 to vector<32x1xf32>
    %537 = arith.divf %535, %536 : vector<32x1xf32>
    %cst_124 = arith.constant 9.99999974E-6 : f32
    %538 = vector.broadcast %cst_124 : f32 to vector<32x1xf32>
    %539 = arith.addf %537, %538 : vector<32x1xf32>
    %540 = math.rsqrt %539 : vector<32x1xf32>
    %541 = vector.broadcast %540 : vector<32x1xf32> to vector<32x32xf32>
    %542 = arith.mulf %532, %541 : vector<32x32xf32>
    %543 = vector.extract_strided_slice %521 {offsets = [0, 32], sizes = [32, 32], strides = [1, 1]} : vector<32x128xf32> to vector<32x32xf32>
    %cst_125 = arith.constant dense<0.000000e+00> : vector<32xf32>
    %544 = vector.multi_reduction <add>, %543, %cst_125 [1] : vector<32x32xf32> to vector<32xf32>
    %545 = vector.shape_cast %544 : vector<32xf32> to vector<32x1xf32>
    %cst_126 = arith.constant 3.200000e+01 : f32
    %546 = vector.broadcast %cst_126 : f32 to vector<32x1xf32>
    %547 = arith.divf %545, %546 : vector<32x1xf32>
    %548 = vector.broadcast %547 : vector<32x1xf32> to vector<32x32xf32>
    %549 = arith.subf %543, %548 : vector<32x32xf32>
    %550 = arith.mulf %549, %549 : vector<32x32xf32>
    %cst_127 = arith.constant dense<0.000000e+00> : vector<32xf32>
    %551 = vector.multi_reduction <add>, %550, %cst_127 [1] : vector<32x32xf32> to vector<32xf32>
    %552 = vector.shape_cast %551 : vector<32xf32> to vector<32x1xf32>
    %cst_128 = arith.constant 3.200000e+01 : f32
    %553 = vector.broadcast %cst_128 : f32 to vector<32x1xf32>
    %554 = arith.divf %552, %553 : vector<32x1xf32>
    %cst_129 = arith.constant 9.99999974E-6 : f32
    %555 = vector.broadcast %cst_129 : f32 to vector<32x1xf32>
    %556 = arith.addf %554, %555 : vector<32x1xf32>
    %557 = math.rsqrt %556 : vector<32x1xf32>
    %558 = vector.broadcast %557 : vector<32x1xf32> to vector<32x32xf32>
    %559 = arith.mulf %549, %558 : vector<32x32xf32>
    %560 = vector.extract_strided_slice %521 {offsets = [0, 64], sizes = [32, 32], strides = [1, 1]} : vector<32x128xf32> to vector<32x32xf32>
    %cst_130 = arith.constant dense<0.000000e+00> : vector<32xf32>
    %561 = vector.multi_reduction <add>, %560, %cst_130 [1] : vector<32x32xf32> to vector<32xf32>
    %562 = vector.shape_cast %561 : vector<32xf32> to vector<32x1xf32>
    %cst_131 = arith.constant 3.200000e+01 : f32
    %563 = vector.broadcast %cst_131 : f32 to vector<32x1xf32>
    %564 = arith.divf %562, %563 : vector<32x1xf32>
    %565 = vector.broadcast %564 : vector<32x1xf32> to vector<32x32xf32>
    %566 = arith.subf %560, %565 : vector<32x32xf32>
    %567 = arith.mulf %566, %566 : vector<32x32xf32>
    %cst_132 = arith.constant dense<0.000000e+00> : vector<32xf32>
    %568 = vector.multi_reduction <add>, %567, %cst_132 [1] : vector<32x32xf32> to vector<32xf32>
    %569 = vector.shape_cast %568 : vector<32xf32> to vector<32x1xf32>
    %cst_133 = arith.constant 3.200000e+01 : f32
    %570 = vector.broadcast %cst_133 : f32 to vector<32x1xf32>
    %571 = arith.divf %569, %570 : vector<32x1xf32>
    %cst_134 = arith.constant 9.99999974E-6 : f32
    %572 = vector.broadcast %cst_134 : f32 to vector<32x1xf32>
    %573 = arith.addf %571, %572 : vector<32x1xf32>
    %574 = math.rsqrt %573 : vector<32x1xf32>
    %575 = vector.broadcast %574 : vector<32x1xf32> to vector<32x32xf32>
    %576 = arith.mulf %566, %575 : vector<32x32xf32>
    %577 = vector.extract_strided_slice %521 {offsets = [0, 96], sizes = [32, 32], strides = [1, 1]} : vector<32x128xf32> to vector<32x32xf32>
    %cst_135 = arith.constant dense<0.000000e+00> : vector<32xf32>
    %578 = vector.multi_reduction <add>, %577, %cst_135 [1] : vector<32x32xf32> to vector<32xf32>
    %579 = vector.shape_cast %578 : vector<32xf32> to vector<32x1xf32>
    %cst_136 = arith.constant 3.200000e+01 : f32
    %580 = vector.broadcast %cst_136 : f32 to vector<32x1xf32>
    %581 = arith.divf %579, %580 : vector<32x1xf32>
    %582 = vector.broadcast %581 : vector<32x1xf32> to vector<32x32xf32>
    %583 = arith.subf %577, %582 : vector<32x32xf32>
    %584 = arith.mulf %583, %583 : vector<32x32xf32>
    %cst_137 = arith.constant dense<0.000000e+00> : vector<32xf32>
    %585 = vector.multi_reduction <add>, %584, %cst_137 [1] : vector<32x32xf32> to vector<32xf32>
    %586 = vector.shape_cast %585 : vector<32xf32> to vector<32x1xf32>
    %cst_138 = arith.constant 3.200000e+01 : f32
    %587 = vector.broadcast %cst_138 : f32 to vector<32x1xf32>
    %588 = arith.divf %586, %587 : vector<32x1xf32>
    %cst_139 = arith.constant 9.99999974E-6 : f32
    %589 = vector.broadcast %cst_139 : f32 to vector<32x1xf32>
    %590 = arith.addf %588, %589 : vector<32x1xf32>
    %591 = math.rsqrt %590 : vector<32x1xf32>
    %592 = vector.broadcast %591 : vector<32x1xf32> to vector<32x32xf32>
    %593 = arith.mulf %583, %592 : vector<32x32xf32>
    %594 = tpu.concatenate %542, %559, %576, %593 in 1 : vector<32x32xf32>, vector<32x32xf32>, vector<32x32xf32>, vector<32x32xf32> -> vector<32x128xf32>
    %595 = vector.broadcast %523 : vector<1x128xf32> to vector<32x128xf32>
    %596 = arith.mulf %594, %595 : vector<32x128xf32>
    %597 = vector.broadcast %525 : vector<1x128xf32> to vector<32x128xf32>
    %598 = arith.addf %596, %597 : vector<32x128xf32>
    %599 = arith.truncf %598 : vector<32x128xf32> to vector<32x128xbf16>
    %c1_140 = arith.constant 1 : index
    %c0_141 = arith.constant 0 : index
    %c0_142 = arith.constant 0 : index
    %600 = vector.load %arg4[%c1_140, %c0_141, %c0_142] : memref<2x128x256xbf16, #tpu.memory_space<vmem>>, vector<1x128x256xbf16>
    %601 = vector.shape_cast %600 : vector<1x128x256xbf16> to vector<128x256xbf16>
    %cst_143 = arith.constant dense<0.000000e+00> : vector<32x256xf32>
    %602 = tpu.matmul %599, %601, %cst_143 {dimension_numbers = #tpu.dot_dimension_numbers<[1], [0], [0], [1], [0, 0, 1, 1], [], []>} : vector<32x128xbf16>, vector<128x256xbf16>, vector<32x256xf32> -> vector<32x256xf32>
    %c1_144 = arith.constant 1 : index
    %c0_145 = arith.constant 0 : index
    %c0_146 = arith.constant 0 : index
    %603 = vector.load %arg5[%c1_144, %c0_145, %c0_146] : memref<2x1x256xf32, #tpu.memory_space<vmem>>, vector<1x1x256xf32>
    %604 = vector.shape_cast %603 : vector<1x1x256xf32> to vector<1x256xf32>
    %605 = vector.broadcast %604 : vector<1x256xf32> to vector<32x256xf32>
    %606 = arith.addf %602, %605 : vector<32x256xf32>
    %607 = arith.mulf %606, %606 : vector<32x256xf32>
    %608 = arith.mulf %606, %607 : vector<32x256xf32>
    %cst_147 = arith.constant 4.471500e-02 : f32
    %609 = vector.broadcast %cst_147 : f32 to vector<32x256xf32>
    %610 = arith.mulf %609, %608 : vector<32x256xf32>
    %611 = arith.addf %606, %610 : vector<32x256xf32>
    %cst_148 = arith.constant 0.797884583 : f32
    %612 = vector.broadcast %cst_148 : f32 to vector<32x256xf32>
    %613 = arith.mulf %612, %611 : vector<32x256xf32>
    %614 = math.tanh %613 : vector<32x256xf32>
    %cst_149 = arith.constant 1.000000e+00 : f32
    %615 = vector.broadcast %cst_149 : f32 to vector<32x256xf32>
    %616 = arith.addf %615, %614 : vector<32x256xf32>
    %cst_150 = arith.constant 5.000000e-01 : f32
    %617 = vector.broadcast %cst_150 : f32 to vector<32x256xf32>
    %618 = arith.mulf %617, %616 : vector<32x256xf32>
    %619 = arith.mulf %606, %618 : vector<32x256xf32>
    %620 = arith.truncf %619 : vector<32x256xf32> to vector<32x256xbf16>
    %c1_151 = arith.constant 1 : index
    %c0_152 = arith.constant 0 : index
    %c0_153 = arith.constant 0 : index
    %621 = vector.load %arg6[%c1_151, %c0_152, %c0_153] : memref<2x256x128xbf16, #tpu.memory_space<vmem>>, vector<1x256x128xbf16>
    %622 = vector.shape_cast %621 : vector<1x256x128xbf16> to vector<256x128xbf16>
    %cst_154 = arith.constant dense<0.000000e+00> : vector<32x128xf32>
    %623 = tpu.matmul %620, %622, %cst_154 {dimension_numbers = #tpu.dot_dimension_numbers<[1], [0], [0], [1], [0, 0, 1, 1], [], []>} : vector<32x256xbf16>, vector<256x128xbf16>, vector<32x128xf32> -> vector<32x128xf32>
    %c1_155 = arith.constant 1 : index
    %c0_156 = arith.constant 0 : index
    %c0_157 = arith.constant 0 : index
    %624 = vector.load %arg7[%c1_155, %c0_156, %c0_157] : memref<2x1x128xf32, #tpu.memory_space<vmem>>, vector<1x1x128xf32>
    %625 = vector.shape_cast %624 : vector<1x1x128xf32> to vector<1x128xf32>
    %626 = vector.broadcast %625 : vector<1x128xf32> to vector<32x128xf32>
    %627 = arith.addf %623, %626 : vector<32x128xf32>
    %628 = arith.addf %598, %627 : vector<32x128xf32>
    %c1_158 = arith.constant 1 : index
    %c0_159 = arith.constant 0 : index
    %c0_160 = arith.constant 0 : index
    %629 = vector.load %arg10[%c1_158, %c0_159, %c0_160] : memref<2x1x128xf32, #tpu.memory_space<vmem>>, vector<1x1x128xf32>
    %630 = vector.shape_cast %629 : vector<1x1x128xf32> to vector<1x128xf32>
    %c1_161 = arith.constant 1 : index
    %c0_162 = arith.constant 0 : index
    %c0_163 = arith.constant 0 : index
    %631 = vector.load %arg11[%c1_161, %c0_162, %c0_163] : memref<2x1x128xf32, #tpu.memory_space<vmem>>, vector<1x1x128xf32>
    %632 = vector.shape_cast %631 : vector<1x1x128xf32> to vector<1x128xf32>
    %633 = vector.extract_strided_slice %628 {offsets = [0, 0], sizes = [32, 32], strides = [1, 1]} : vector<32x128xf32> to vector<32x32xf32>
    %cst_164 = arith.constant dense<0.000000e+00> : vector<32xf32>
    %634 = vector.multi_reduction <add>, %633, %cst_164 [1] : vector<32x32xf32> to vector<32xf32>
    %635 = vector.shape_cast %634 : vector<32xf32> to vector<32x1xf32>
    %cst_165 = arith.constant 3.200000e+01 : f32
    %636 = vector.broadcast %cst_165 : f32 to vector<32x1xf32>
    %637 = arith.divf %635, %636 : vector<32x1xf32>
    %638 = vector.broadcast %637 : vector<32x1xf32> to vector<32x32xf32>
    %639 = arith.subf %633, %638 : vector<32x32xf32>
    %640 = arith.mulf %639, %639 : vector<32x32xf32>
    %cst_166 = arith.constant dense<0.000000e+00> : vector<32xf32>
    %641 = vector.multi_reduction <add>, %640, %cst_166 [1] : vector<32x32xf32> to vector<32xf32>
    %642 = vector.shape_cast %641 : vector<32xf32> to vector<32x1xf32>
    %cst_167 = arith.constant 3.200000e+01 : f32
    %643 = vector.broadcast %cst_167 : f32 to vector<32x1xf32>
    %644 = arith.divf %642, %643 : vector<32x1xf32>
    %cst_168 = arith.constant 9.99999974E-6 : f32
    %645 = vector.broadcast %cst_168 : f32 to vector<32x1xf32>
    %646 = arith.addf %644, %645 : vector<32x1xf32>
    %647 = math.rsqrt %646 : vector<32x1xf32>
    %648 = vector.broadcast %647 : vector<32x1xf32> to vector<32x32xf32>
    %649 = arith.mulf %639, %648 : vector<32x32xf32>
    %650 = vector.extract_strided_slice %628 {offsets = [0, 32], sizes = [32, 32], strides = [1, 1]} : vector<32x128xf32> to vector<32x32xf32>
    %cst_169 = arith.constant dense<0.000000e+00> : vector<32xf32>
    %651 = vector.multi_reduction <add>, %650, %cst_169 [1] : vector<32x32xf32> to vector<32xf32>
    %652 = vector.shape_cast %651 : vector<32xf32> to vector<32x1xf32>
    %cst_170 = arith.constant 3.200000e+01 : f32
    %653 = vector.broadcast %cst_170 : f32 to vector<32x1xf32>
    %654 = arith.divf %652, %653 : vector<32x1xf32>
    %655 = vector.broadcast %654 : vector<32x1xf32> to vector<32x32xf32>
    %656 = arith.subf %650, %655 : vector<32x32xf32>
    %657 = arith.mulf %656, %656 : vector<32x32xf32>
    %cst_171 = arith.constant dense<0.000000e+00> : vector<32xf32>
    %658 = vector.multi_reduction <add>, %657, %cst_171 [1] : vector<32x32xf32> to vector<32xf32>
    %659 = vector.shape_cast %658 : vector<32xf32> to vector<32x1xf32>
    %cst_172 = arith.constant 3.200000e+01 : f32
    %660 = vector.broadcast %cst_172 : f32 to vector<32x1xf32>
    %661 = arith.divf %659, %660 : vector<32x1xf32>
    %cst_173 = arith.constant 9.99999974E-6 : f32
    %662 = vector.broadcast %cst_173 : f32 to vector<32x1xf32>
    %663 = arith.addf %661, %662 : vector<32x1xf32>
    %664 = math.rsqrt %663 : vector<32x1xf32>
    %665 = vector.broadcast %664 : vector<32x1xf32> to vector<32x32xf32>
    %666 = arith.mulf %656, %665 : vector<32x32xf32>
    %667 = vector.extract_strided_slice %628 {offsets = [0, 64], sizes = [32, 32], strides = [1, 1]} : vector<32x128xf32> to vector<32x32xf32>
    %cst_174 = arith.constant dense<0.000000e+00> : vector<32xf32>
    %668 = vector.multi_reduction <add>, %667, %cst_174 [1] : vector<32x32xf32> to vector<32xf32>
    %669 = vector.shape_cast %668 : vector<32xf32> to vector<32x1xf32>
    %cst_175 = arith.constant 3.200000e+01 : f32
    %670 = vector.broadcast %cst_175 : f32 to vector<32x1xf32>
    %671 = arith.divf %669, %670 : vector<32x1xf32>
    %672 = vector.broadcast %671 : vector<32x1xf32> to vector<32x32xf32>
    %673 = arith.subf %667, %672 : vector<32x32xf32>
    %674 = arith.mulf %673, %673 : vector<32x32xf32>
    %cst_176 = arith.constant dense<0.000000e+00> : vector<32xf32>
    %675 = vector.multi_reduction <add>, %674, %cst_176 [1] : vector<32x32xf32> to vector<32xf32>
    %676 = vector.shape_cast %675 : vector<32xf32> to vector<32x1xf32>
    %cst_177 = arith.constant 3.200000e+01 : f32
    %677 = vector.broadcast %cst_177 : f32 to vector<32x1xf32>
    %678 = arith.divf %676, %677 : vector<32x1xf32>
    %cst_178 = arith.constant 9.99999974E-6 : f32
    %679 = vector.broadcast %cst_178 : f32 to vector<32x1xf32>
    %680 = arith.addf %678, %679 : vector<32x1xf32>
    %681 = math.rsqrt %680 : vector<32x1xf32>
    %682 = vector.broadcast %681 : vector<32x1xf32> to vector<32x32xf32>
    %683 = arith.mulf %673, %682 : vector<32x32xf32>
    %684 = vector.extract_strided_slice %628 {offsets = [0, 96], sizes = [32, 32], strides = [1, 1]} : vector<32x128xf32> to vector<32x32xf32>
    %cst_179 = arith.constant dense<0.000000e+00> : vector<32xf32>
    %685 = vector.multi_reduction <add>, %684, %cst_179 [1] : vector<32x32xf32> to vector<32xf32>
    %686 = vector.shape_cast %685 : vector<32xf32> to vector<32x1xf32>
    %cst_180 = arith.constant 3.200000e+01 : f32
    %687 = vector.broadcast %cst_180 : f32 to vector<32x1xf32>
    %688 = arith.divf %686, %687 : vector<32x1xf32>
    %689 = vector.broadcast %688 : vector<32x1xf32> to vector<32x32xf32>
    %690 = arith.subf %684, %689 : vector<32x32xf32>
    %691 = arith.mulf %690, %690 : vector<32x32xf32>
    %cst_181 = arith.constant dense<0.000000e+00> : vector<32xf32>
    %692 = vector.multi_reduction <add>, %691, %cst_181 [1] : vector<32x32xf32> to vector<32xf32>
    %693 = vector.shape_cast %692 : vector<32xf32> to vector<32x1xf32>
    %cst_182 = arith.constant 3.200000e+01 : f32
    %694 = vector.broadcast %cst_182 : f32 to vector<32x1xf32>
    %695 = arith.divf %693, %694 : vector<32x1xf32>
    %cst_183 = arith.constant 9.99999974E-6 : f32
    %696 = vector.broadcast %cst_183 : f32 to vector<32x1xf32>
    %697 = arith.addf %695, %696 : vector<32x1xf32>
    %698 = math.rsqrt %697 : vector<32x1xf32>
    %699 = vector.broadcast %698 : vector<32x1xf32> to vector<32x32xf32>
    %700 = arith.mulf %690, %699 : vector<32x32xf32>
    %701 = tpu.concatenate %649, %666, %683, %700 in 1 : vector<32x32xf32>, vector<32x32xf32>, vector<32x32xf32>, vector<32x32xf32> -> vector<32x128xf32>
    %702 = vector.broadcast %630 : vector<1x128xf32> to vector<32x128xf32>
    %703 = arith.mulf %701, %702 : vector<32x128xf32>
    %704 = vector.broadcast %632 : vector<1x128xf32> to vector<32x128xf32>
    %705 = arith.addf %703, %704 : vector<32x128xf32>
    %c1_184 = arith.constant 1 : index
    %c0_185 = arith.constant 0 : index
    %c0_186 = arith.constant 0 : index
    %706 = vector.load %arg12[%c1_184, %c0_185, %c0_186] : memref<2x32x128xf32, #tpu.memory_space<vmem>>, vector<1x32x128xf32>
    %707 = vector.shape_cast %706 : vector<1x32x128xf32> to vector<32x128xf32>
    %708 = vector.shape_cast %705 : vector<32x128xf32> to vector<1x32x128xf32>
    tpu.vector_store %arg12[%c1_184, %c0_185, %c0_186], %708 {strides = array<i32>} : memref<2x32x128xf32, #tpu.memory_space<vmem>>, vector<1x32x128xf32>,
    return
  }
  func.func @transform_0(%arg0: i32) -> (i32, i32) {
    %c0_i32 = arith.constant 0 : i32
    %c0_i32_0 = arith.constant 0 : i32
    return %arg0, %c0_i32 : i32, i32
  }
  func.func @transform_1(%arg0: i32) -> (i32, i32, i32) {
    %c0_i32 = arith.constant 0 : i32
    %c0_i32_0 = arith.constant 0 : i32
    %c0_i32_1 = arith.constant 0 : i32
    %c0_i32_2 = arith.constant 0 : i32
    return %c0_i32, %c0_i32_0, %c0_i32_1 : i32, i32, i32
  }
  func.func @transform_2(%arg0: i32) -> (i32, i32, i32) {
    %c0_i32 = arith.constant 0 : i32
    %c0_i32_0 = arith.constant 0 : i32
    %c0_i32_1 = arith.constant 0 : i32
    %c0_i32_2 = arith.constant 0 : i32
    return %c0_i32, %c0_i32_0, %c0_i32_1 : i32, i32, i32
  }
  func.func @transform_3(%arg0: i32) -> (i32, i32, i32) {
    %c0_i32 = arith.constant 0 : i32
    %c0_i32_0 = arith.constant 0 : i32
    %c0_i32_1 = arith.constant 0 : i32
    %c0_i32_2 = arith.constant 0 : i32
    return %c0_i32, %c0_i32_0, %c0_i32_1 : i32, i32, i32
  }
  func.func @transform_4(%arg0: i32) -> (i32, i32, i32) {
    %c0_i32 = arith.constant 0 : i32
    %c0_i32_0 = arith.constant 0 : i32
    %c0_i32_1 = arith.constant 0 : i32
    %c0_i32_2 = arith.constant 0 : i32
    return %c0_i32, %c0_i32_0, %c0_i32_1 : i32, i32, i32
  }
  func.func @transform_5(%arg0: i32) -> (i32, i32, i32) {
    %c0_i32 = arith.constant 0 : i32
    %c0_i32_0 = arith.constant 0 : i32
    %c0_i32_1 = arith.constant 0 : i32
    %c0_i32_2 = arith.constant 0 : i32
    return %c0_i32, %c0_i32_0, %c0_i32_1 : i32, i32, i32
  }
  func.func @transform_6(%arg0: i32) -> (i32, i32, i32) {
    %c0_i32 = arith.constant 0 : i32
    %c0_i32_0 = arith.constant 0 : i32
    %c0_i32_1 = arith.constant 0 : i32
    %c0_i32_2 = arith.constant 0 : i32
    return %c0_i32, %c0_i32_0, %c0_i32_1 : i32, i32, i32
  }
  func.func @transform_7(%arg0: i32) -> (i32, i32, i32) {
    %c0_i32 = arith.constant 0 : i32
    %c0_i32_0 = arith.constant 0 : i32
    %c0_i32_1 = arith.constant 0 : i32
    %c0_i32_2 = arith.constant 0 : i32
    return %c0_i32, %c0_i32_0, %c0_i32_1 : i32, i32, i32
  }
  func.func @transform_8(%arg0: i32) -> (i32, i32, i32) {
    %c0_i32 = arith.constant 0 : i32
    %c0_i32_0 = arith.constant 0 : i32
    %c0_i32_1 = arith.constant 0 : i32
    %c0_i32_2 = arith.constant 0 : i32
    return %c0_i32, %c0_i32_0, %c0_i32_1 : i32, i32, i32
  }
  func.func @transform_9(%arg0: i32) -> (i32, i32, i32) {
    %c0_i32 = arith.constant 0 : i32
    %c0_i32_0 = arith.constant 0 : i32
    %c0_i32_1 = arith.constant 0 : i32
    %c0_i32_2 = arith.constant 0 : i32
    return %c0_i32, %c0_i32_0, %c0_i32_1 : i32, i32, i32
  }
  func.func @transform_10(%arg0: i32) -> (i32, i32, i32) {
    %c0_i32 = arith.constant 0 : i32
    %c0_i32_0 = arith.constant 0 : i32
    %c0_i32_1 = arith.constant 0 : i32
    %c0_i32_2 = arith.constant 0 : i32
    return %c0_i32, %c0_i32_0, %c0_i32_1 : i32, i32, i32
  }
  func.func @transform_11(%arg0: i32) -> (i32, i32, i32) {
    %c0_i32 = arith.constant 0 : i32
    %c0_i32_0 = arith.constant 0 : i32
    %c0_i32_1 = arith.constant 0 : i32
    return %c0_i32, %arg0, %c0_i32_0 : i32, i32, i32
  }
}

</mosaic_0001>

<llo_original>
// kernel: squeeze.5
$region0: #{squeeze.5}
  %s0 = inlined_call_operand.vmem [shape: f32[1,32,128], index: 0, kind: input, shape index: {}]
  %s1 = inlined_call_operand.hbm [shape: f32[2,4,16,32], index: 1, kind: output, shape index: {}]
  $region1: #{squeeze.5} parent=0
    #allocation0 [shape = 'u8[65536]{0}', space=vmem, size = 0x10000, scoped, tag = 'operand span for operand 1']
    #allocation1 [shape = 's32[1]{0}', space=sflag, size = 0x4, scoped, tag = 'scoped memory for squeeze.5']
    %2 = vsyncpa [#allocation1], 0
    %v3 = vld [vmem:[%s0] sm:$0xff]
    %vm4 = vcmask 261120
    %5 = vst.msk [vmem:[#allocation0] ss:$4 sm:$0xff] %vm4, %v3
    %s6 = scalar_lea.vmem %s0, 8
    %v7 = vld [vmem:[%s6] sm:$0xff]
    %vm8 = vcmask 261120
    %s9 = scalar_lea.vmem [#allocation0], 32
    %10 = vst.msk [vmem:[%s9] ss:$4 sm:$0xff] %vm8, %v7
    %s11 = scalar_lea.vmem %s0, 16
    %v12 = vld [vmem:[%s11] sm:$0xff]
    %vm13 = vcmask 261120
    %s14 = scalar_lea.vmem [#allocation0], 64
    %15 = vst.msk [vmem:[%s14] ss:$4 sm:$0xff] %vm13, %v12
    %s16 = scalar_lea.vmem %s0, 24
    %v17 = vld [vmem:[%s16] sm:$0xff]
    %vm18 = vcmask 261120
    %s19 = scalar_lea.vmem [#allocation0], 96
    %20 = vst.msk [vmem:[%s19] ss:$4 sm:$0xff] %vm18, %v17
    %v21 = vld [vmem:[%s0] sm:$0xff]
    %22 = vrot.lane.b32.xlu0 %v21, 96
    %v23 = vpop.permute.xlu0 %22
    %vm24 = vcmask 261120
    %s25 = scalar_lea.vmem [#allocation0], 1
    %26 = vst.msk [vmem:[%s25] ss:$4 sm:$0xff] %vm24, %v23
    %s27 = scalar_lea.vmem %s0, 8
    %v28 = vld [vmem:[%s27] sm:$0xff]
    %29 = vrot.lane.b32.xlu0 %v28, 96
    %v30 = vpop.permute.xlu0 %29
    %vm31 = vcmask 261120
    %s32 = scalar_lea.vmem [#allocation0], 33
    %33 = vst.msk [vmem:[%s32] ss:$4 sm:$0xff] %vm31, %v30
    %s34 = scalar_lea.vmem %s0, 16
    %v35 = vld [vmem:[%s34] sm:$0xff]
    %36 = vrot.lane.b32.xlu0 %v35, 96
    %v37 = vpop.permute.xlu0 %36
    %vm38 = vcmask 261120
    %s39 = scalar_lea.vmem [#allocation0], 65
    %40 = vst.msk [vmem:[%s39] ss:$4 sm:$0xff] %vm38, %v37
    %s41 = scalar_lea.vmem %s0, 24
    %v42 = vld [vmem:[%s41] sm:$0xff]
    %43 = vrot.lane.b32.xlu0 %v42, 96
    %v44 = vpop.permute.xlu0 %43
    %vm45 = vcmask 261120
    %s46 = scalar_lea.vmem [#allocation0], 97
    %47 = vst.msk [vmem:[%s46] ss:$4 sm:$0xff] %vm45, %v44
    %v48 = vld [vmem:[%s0] sm:$0xff]
    %49 = vrot.lane.b32.xlu0 %v48, 64
    %v50 = vpop.permute.xlu0 %49
    %vm51 = vcmask 261120
    %s52 = scalar_lea.vmem [#allocation0], 2
    %53 = vst.msk [vmem:[%s52] ss:$4 sm:$0xff] %vm51, %v50
    %s54 = scalar_lea.vmem %s0, 8
    %v55 = vld [vmem:[%s54] sm:$0xff]
    %56 = vrot.lane.b32.xlu0 %v55, 64
    %v57 = vpop.permute.xlu0 %56
    %vm58 = vcmask 261120
    %s59 = scalar_lea.vmem [#allocation0], 34
    %60 = vst.msk [vmem:[%s59] ss:$4 sm:$0xff] %vm58, %v57
    %s61 = scalar_lea.vmem %s0, 16
    %v62 = vld [vmem:[%s61] sm:$0xff]
    %63 = vrot.lane.b32.xlu0 %v62, 64
    %v64 = vpop.permute.xlu0 %63
    %vm65 = vcmask 261120
    %s66 = scalar_lea.vmem [#allocation0], 66
    %67 = vst.msk [vmem:[%s66] ss:$4 sm:$0xff] %vm65, %v64
    %s68 = scalar_lea.vmem %s0, 24
    %v69 = vld [vmem:[%s68] sm:$0xff]
    %70 = vrot.lane.b32.xlu0 %v69, 64
    %v71 = vpop.permute.xlu0 %70
    %vm72 = vcmask 261120
    %s73 = scalar_lea.vmem [#allocation0], 98
    %74 = vst.msk [vmem:[%s73] ss:$4 sm:$0xff] %vm72, %v71
    %v75 = vld [vmem:[%s0] sm:$0xff]
    %76 = vrot.lane.b32.xlu0 %v75, 32
    %v77 = vpop.permute.xlu0 %76
    %vm78 = vcmask 261120
    %s79 = scalar_lea.vmem [#allocation0], 3
    %80 = vst.msk [vmem:[%s79] ss:$4 sm:$0xff] %vm78, %v77
    %s81 = scalar_lea.vmem %s0, 8
    %v82 = vld [vmem:[%s81] sm:$0xff]
    %83 = vrot.lane.b32.xlu0 %v82, 32
    %v84 = vpop.permute.xlu0 %83
    %vm85 = vcmask 261120
    %s86 = scalar_lea.vmem [#allocation0], 35
    %87 = vst.msk [vmem:[%s86] ss:$4 sm:$0xff] %vm85, %v84
    %s88 = scalar_lea.vmem %s0, 16
    %v89 = vld [vmem:[%s88] sm:$0xff]
    %90 = vrot.lane.b32.xlu0 %v89, 32
    %v91 = vpop.permute.xlu0 %90
    %vm92 = vcmask 261120
    %s93 = scalar_lea.vmem [#allocation0], 67
    %94 = vst.msk [vmem:[%s93] ss:$4 sm:$0xff] %vm92, %v91
    %s95 = scalar_lea.vmem %s0, 24
    %v96 = vld [vmem:[%s95] sm:$0xff]
    %97 = vrot.lane.b32.xlu0 %v96, 32
    %v98 = vpop.permute.xlu0 %97
    %vm99 = vcmask 261120
    %s100 = scalar_lea.vmem [#allocation0], 99
    %101 = vst.msk [vmem:[%s100] ss:$4 sm:$0xff] %vm99, %v98
    %s103 = ssub.s32 2048, 2048
    %104 = vsyncadd [#allocation1], %s103
    %s106 = sshll.u32 [#allocation0], 4
    %s107 = int_to_ptr.vmem [resolvable:$true] %s106
    %109 = dma.vmem_to_hbm [thread:$0]  %s107, 2048, %s1, [#allocation1]
    %110 = dma.done [#allocation1], 2048
    %111 = vsyncpa [#allocation1], 1

// kernel: squeeze.3
$region0: #{squeeze.3}
  %s0 = inlined_call_operand.vmem [shape: f32[1,32,128], index: 0, kind: input, shape index: {}]
  %s1 = inlined_call_operand.hbm [shape: f32[2,4,4,4,32], index: 1, kind: output, shape index: {}]
  $region1: #{squeeze.3} parent=0
    #allocation0 [shape = 'u8[65536]{0}', space=vmem, size = 0x10000, scoped, tag = 'operand span for operand 1']
    #allocation1 [shape = 's32[1]{0}', space=sflag, size = 0x4, scoped, tag = 'scoped memory for squeeze.3']
    #allocation2 [shape = 'u8[131072]{0}', space=vmem, size = 0x20000, scoped, tag = 'scoped mem for output reshape']
    %2 = vsyncpa [#allocation1], 0
    %v3 = vld [vmem:[%s0] sm:$0xff]
    %vm4 = vcmask 261120
    %5 = vst.msk [vmem:[#allocation2] ss:$8 sm:$0xf] %vm4, %v3
    %6 = vst.msk [vmem:[#allocation2] ss:$8 sm:$0xf0] %vm4, %v3
    %s7 = scalar_lea.vmem %s0, 8
    %v8 = vld [vmem:[%s7] sm:$0xff]
    %vm9 = vcmask 261120
    %s10 = scalar_lea.vmem [#allocation2], 64
    %11 = vst.msk [vmem:[%s10] ss:$8 sm:$0xf] %vm9, %v8
    %s12 = scalar_lea.vmem [#allocation2], 64
    %13 = vst.msk [vmem:[%s12] ss:$8 sm:$0xf0] %vm9, %v8
    %s14 = scalar_lea.vmem %s0, 16
    %v15 = vld [vmem:[%s14] sm:$0xff]
    %vm16 = vcmask 261120
    %s17 = scalar_lea.vmem [#allocation2], 128
    %18 = vst.msk [vmem:[%s17] ss:$8 sm:$0xf] %vm16, %v15
    %s19 = scalar_lea.vmem [#allocation2], 128
    %20 = vst.msk [vmem:[%s19] ss:$8 sm:$0xf0] %vm16, %v15
    %s21 = scalar_lea.vmem %s0, 24
    %v22 = vld [vmem:[%s21] sm:$0xff]
    %vm23 = vcmask 261120
    %s24 = scalar_lea.vmem [#allocation2], 192
    %25 = vst.msk [vmem:[%s24] ss:$8 sm:$0xf] %vm23, %v22
    %s26 = scalar_lea.vmem [#allocation2], 192
    %27 = vst.msk [vmem:[%s26] ss:$8 sm:$0xf0] %vm23, %v22
    %v28 = vld [vmem:[%s0] sm:$0xff]
    %29 = vrot.lane.b32.xlu0 %v28, 96
    %v30 = vpop.permute.xlu0 %29
    %vm31 = vcmask 261120
    %s32 = scalar_lea.vmem [#allocation2], 1
    %33 = vst.msk [vmem:[%s32] ss:$8 sm:$0xf] %vm31, %v30
    %s34 = scalar_lea.vmem [#allocation2], 1
    %35 = vst.msk [vmem:[%s34] ss:$8 sm:$0xf0] %vm31, %v30
    %s36 = scalar_lea.vmem %s0, 8
    %v37 = vld [vmem:[%s36] sm:$0xff]
    %38 = vrot.lane.b32.xlu0 %v37, 96
    %v39 = vpop.permute.xlu0 %38
    %vm40 = vcmask 261120
    %s41 = scalar_lea.vmem [#allocation2], 65
    %42 = vst.msk [vmem:[%s41] ss:$8 sm:$0xf] %vm40, %v39
    %s43 = scalar_lea.vmem [#allocation2], 65
    %44 = vst.msk [vmem:[%s43] ss:$8 sm:$0xf0] %vm40, %v39
    %s45 = scalar_lea.vmem %s0, 16
    %v46 = vld [vmem:[%s45] sm:$0xff]
    %47 = vrot.lane.b32.xlu0 %v46, 96
    %v48 = vpop.permute.xlu0 %47
    %vm49 = vcmask 261120
    %s50 = scalar_lea.vmem [#allocation2], 129
    %51 = vst.msk [vmem:[%s50] ss:$8 sm:$0xf] %vm49, %v48
    %s52 = scalar_lea.vmem [#allocation2], 129
    %53 = vst.msk [vmem:[%s52] ss:$8 sm:$0xf0] %vm49, %v48
    %s54 = scalar_lea.vmem %s0, 24
    %v55 = vld [vmem:[%s54] sm:$0xff]
    %56 = vrot.lane.b32.xlu0 %v55, 96
    %v57 = vpop.permute.xlu0 %56
    %vm58 = vcmask 261120
    %s59 = scalar_lea.vmem [#allocation2], 193
    %60 = vst.msk [vmem:[%s59] ss:$8 sm:$0xf] %vm58, %v57
    %s61 = scalar_lea.vmem [#allocation2], 193
    %62 = vst.msk [vmem:[%s61] ss:$8 sm:$0xf0] %vm58, %v57
    %v63 = vld [vmem:[%s0] sm:$0xff]
    %64 = vrot.lane.b32.xlu0 %v63, 64
    %v65 = vpop.permute.xlu0 %64
    %vm66 = vcmask 261120
    %s67 = scalar_lea.vmem [#allocation2], 2
    %68 = vst.msk [vmem:[%s67] ss:$8 sm:$0xf] %vm66, %v65
    %s69 = scalar_lea.vmem [#allocation2], 2
    %70 = vst.msk [vmem:[%s69] ss:$8 sm:$0xf0] %vm66, %v65
    %s71 = scalar_lea.vmem %s0, 8
    %v72 = vld [vmem:[%s71] sm:$0xff]
    %73 = vrot.lane.b32.xlu0 %v72, 64
    %v74 = vpop.permute.xlu0 %73
    %vm75 = vcmask 261120
    %s76 = scalar_lea.vmem [#allocation2], 66
    %77 = vst.msk [vmem:[%s76] ss:$8 sm:$0xf] %vm75, %v74
    %s78 = scalar_lea.vmem [#allocation2], 66
    %79 = vst.msk [vmem:[%s78] ss:$8 sm:$0xf0] %vm75, %v74
    %s80 = scalar_lea.vmem %s0, 16
    %v81 = vld [vmem:[%s80] sm:$0xff]
    %82 = vrot.lane.b32.xlu0 %v81, 64
    %v83 = vpop.permute.xlu0 %82
    %vm84 = vcmask 261120
    %s85 = scalar_lea.vmem [#allocation2], 130
    %86 = vst.msk [vmem:[%s85] ss:$8 sm:$0xf] %vm84, %v83
    %s87 = scalar_lea.vmem [#allocation2], 130
    %88 = vst.msk [vmem:[%s87] ss:$8 sm:$0xf0] %vm84, %v83
    %s89 = scalar_lea.vmem %s0, 24
    %v90 = vld [vmem:[%s89] sm:$0xff]
    %91 = vrot.lane.b32.xlu0 %v90, 64
    %v92 = vpop.permute.xlu0 %91
    %vm93 = vcmask 261120
    %s94 = scalar_lea.vmem [#allocation2], 194
    %95 = vst.msk [vmem:[%s94] ss:$8 sm:$0xf] %vm93, %v92
    %s96 = scalar_lea.vmem [#allocation2], 194
    %97 = vst.msk [vmem:[%s96] ss:$8 sm:$0xf0] %vm93, %v92
    %v98 = vld [vmem:[%s0] sm:$0xff]
    %99 = vrot.lane.b32.xlu0 %v98, 32
    %v100 = vpop.permute.xlu0 %99
    %vm101 = vcmask 261120
    %s102 = scalar_lea.vmem [#allocation2], 3
    %103 = vst.msk [vmem:[%s102] ss:$8 sm:$0xf] %vm101, %v100
    %s104 = scalar_lea.vmem [#allocation2], 3
    %105 = vst.msk [vmem:[%s104] ss:$8 sm:$0xf0] %vm101, %v100
    %s106 = scalar_lea.vmem %s0, 8
    %v107 = vld [vmem:[%s106] sm:$0xff]
    %108 = vrot.lane.b32.xlu0 %v107, 32
    %v109 = vpop.permute.xlu0 %108
    %vm110 = vcmask 261120
    %s111 = scalar_lea.vmem [#allocation2], 67
    %112 = vst.msk [vmem:[%s111] ss:$8 sm:$0xf] %vm110, %v109
    %s113 = scalar_lea.vmem [#allocation2], 67
    %114 = vst.msk [vmem:[%s113] ss:$8 sm:$0xf0] %vm110, %v109
    %s115 = scalar_lea.vmem %s0, 16
    %v116 = vld [vmem:[%s115] sm:$0xff]
    %117 = vrot.lane.b32.xlu0 %v116, 32
    %v118 = vpop.permute.xlu0 %117
    %vm119 = vcmask 261120
    %s120 = scalar_lea.vmem [#allocation2], 131
    %121 = vst.msk [vmem:[%s120] ss:$8 sm:$0xf] %vm119, %v118
    %s122 = scalar_lea.vmem [#allocation2], 131
    %123 = vst.msk [vmem:[%s122] ss:$8 sm:$0xf0] %vm119, %v118
    %s124 = scalar_lea.vmem %s0, 24
    %v125 = vld [vmem:[%s124] sm:$0xff]
    %126 = vrot.lane.b32.xlu0 %v125, 32
    %v127 = vpop.permute.xlu0 %126
    %vm128 = vcmask 261120
    %s129 = scalar_lea.vmem [#allocation2], 195
    %130 = vst.msk [vmem:[%s129] ss:$8 sm:$0xf] %vm128, %v127
    %s131 = scalar_lea.vmem [#allocation2], 195
    %132 = vst.msk [vmem:[%s131] ss:$8 sm:$0xf0] %vm128, %v127
    %s134 = sshllo.u32 0, 4
    %v136 = vld [vmem:[#allocation2] sm:%s134]
    %s137 = sshllo.u32 0, 4
    %138 = vst [vmem:[#allocation0] sm:%s137] %v136
    %s139 = scalar_lea.vmem [#allocation2], 8
    %v140 = vld [vmem:[%s139] sm:%s134]
    %s141 = sshllo.u32 0, 4
    %s142 = scalar_lea.vmem [#allocation0], 4
    %143 = vst [vmem:[%s142] sm:%s141] %v140
    %s144 = scalar_lea.vmem [#allocation2], 16
    %v145 = vld [vmem:[%s144] sm:%s134]
    %s146 = sshllo.u32 0, 4
    %s147 = smul.addr 4, 2
    %s148 = scalar_lea.vmem [#allocation0], %s147
    %149 = vst [vmem:[%s148] sm:%s146] %v145
    %s150 = scalar_lea.vmem [#allocation2], 24
    %v151 = vld [vmem:[%s150] sm:%s134]
    %s152 = sshllo.u32 0, 4
    %s153 = smul.addr 4, 3
    %s154 = scalar_lea.vmem [#allocation0], %s153
    %155 = vst [vmem:[%s154] sm:%s152] %v151
    %s156 = scalar_lea.vmem [#allocation2], 32
    %v157 = vld [vmem:[%s156] sm:%s134]
    %s158 = sshllo.u32 0, 4
    %s159 = smul.addr 4, 4
    %s160 = scalar_lea.vmem [#allocation0], %s159
    %161 = vst [vmem:[%s160] sm:%s158] %v157
    %s162 = scalar_lea.vmem [#allocation2], 40
    %v163 = vld [vmem:[%s162] sm:%s134]
    %s164 = sshllo.u32 0, 4
    %s165 = smul.addr 4, 5
    %s166 = scalar_lea.vmem [#allocation0], %s165
    %167 = vst [vmem:[%s166] sm:%s164] %v163
    %s168 = scalar_lea.vmem [#allocation2], 48
    %v169 = vld [vmem:[%s168] sm:%s134]
    %s170 = sshllo.u32 0, 4
    %s171 = smul.addr 4, 6
    %s172 = scalar_lea.vmem [#allocation0], %s171
    %173 = vst [vmem:[%s172] sm:%s170] %v169
    %s174 = scalar_lea.vmem [#allocation2], 56
    %v175 = vld [vmem:[%s174] sm:%s134]
    %s176 = sshllo.u32 0, 4
    %s177 = smul.addr 4, 7
    %s178 = scalar_lea.vmem [#allocation0], %s177
    %179 = vst [vmem:[%s178] sm:%s176] %v175
    %s180 = scalar_lea.vmem [#allocation2], 64
    %v181 = vld [vmem:[%s180] sm:%s134]
    %s182 = sshllo.u32 0, 4
    %s183 = smul.addr 4, 8
    %s184 = scalar_lea.vmem [#allocation0], %s183
    %185 = vst [vmem:[%s184] sm:%s182] %v181
    %s186 = scalar_lea.vmem [#allocation2], 72
    %v187 = vld [vmem:[%s186] sm:%s134]
    %s188 = sshllo.u32 0, 4
    %s189 = smul.addr 4, 9
    %s190 = scalar_lea.vmem [#allocation0], %s189
    %191 = vst [vmem:[%s190] sm:%s188] %v187
    %s192 = scalar_lea.vmem [#allocation2], 80
    %v193 = vld [vmem:[%s192] sm:%s134]
    %s194 = sshllo.u32 0, 4
    %s195 = smul.addr 4, 10
    %s196 = scalar_lea.vmem [#allocation0], %s195
    %197 = vst [vmem:[%s196] sm:%s194] %v193
    %s198 = scalar_lea.vmem [#allocation2], 88
    %v199 = vld [vmem:[%s198] sm:%s134]
    %s200 = sshllo.u32 0, 4
    %s201 = smul.addr 4, 11
    %s202 = scalar_lea.vmem [#allocation0], %s201
    %203 = vst [vmem:[%s202] sm:%s200] %v199
    %s204 = scalar_lea.vmem [#allocation2], 96
    %v205 = vld [vmem:[%s204] sm:%s134]
    %s206 = sshllo.u32 0, 4
    %s207 = smul.addr 4, 12
    %s208 = scalar_lea.vmem [#allocation0], %s207
    %209 = vst [vmem:[%s208] sm:%s206] %v205
    %s210 = scalar_lea.vmem [#allocation2], 104
    %v211 = vld [vmem:[%s210] sm:%s134]
    %s212 = sshllo.u32 0, 4
    %s213 = smul.addr 4, 13
    %s214 = scalar_lea.vmem [#allocation0], %s213
    %215 = vst [vmem:[%s214] sm:%s212] %v211
    %s216 = scalar_lea.vmem [#allocation2], 112
    %v217 = vld [vmem:[%s216] sm:%s134]
    %s218 = sshllo.u32 0, 4
    %s219 = smul.addr 4, 14
    %s220 = scalar_lea.vmem [#allocation0], %s219
    %221 = vst [vmem:[%s220] sm:%s218] %v217
    %s222 = scalar_lea.vmem [#allocation2], 120
    %v223 = vld [vmem:[%s222] sm:%s134]
    %s224 = sshllo.u32 0, 4
    %s225 = smul.addr 4, 15
    %s226 = scalar_lea.vmem [#allocation0], %s225
    %227 = vst [vmem:[%s226] sm:%s224] %v223
    %s228 = scalar_lea.vmem [#allocation2], 128
    %v229 = vld [vmem:[%s228] sm:%s134]
    %s230 = sshllo.u32 0, 4
    %s231 = smul.addr 4, 16
    %s232 = scalar_lea.vmem [#allocation0], %s231
    %233 = vst [vmem:[%s232] sm:%s230] %v229
    %s234 = scalar_lea.vmem [#allocation2], 136
    %v235 = vld [vmem:[%s234] sm:%s134]
    %s236 = sshllo.u32 0, 4
    %s237 = smul.addr 4, 17
    %s238 = scalar_lea.vmem [#allocation0], %s237
    %239 = vst [vmem:[%s238] sm:%s236] %v235
    %s240 = scalar_lea.vmem [#allocation2], 144
    %v241 = vld [vmem:[%s240] sm:%s134]
    %s242 = sshllo.u32 0, 4
    %s243 = smul.addr 4, 18
    %s244 = scalar_lea.vmem [#allocation0], %s243
    %245 = vst [vmem:[%s244] sm:%s242] %v241
    %s246 = scalar_lea.vmem [#allocation2], 152
    %v247 = vld [vmem:[%s246] sm:%s134]
    %s248 = sshllo.u32 0, 4
    %s249 = smul.addr 4, 19
    %s250 = scalar_lea.vmem [#allocation0], %s249
    %251 = vst [vmem:[%s250] sm:%s248] %v247
    %s252 = scalar_lea.vmem [#allocation2], 160
    %v253 = vld [vmem:[%s252] sm:%s134]
    %s254 = sshllo.u32 0, 4
    %s255 = smul.addr 4, 20
    %s256 = scalar_lea.vmem [#allocation0], %s255
    %257 = vst [vmem:[%s256] sm:%s254] %v253
    %s258 = scalar_lea.vmem [#allocation2], 168
    %v259 = vld [vmem:[%s258] sm:%s134]
    %s260 = sshllo.u32 0, 4
    %s261 = smul.addr 4, 21
    %s262 = scalar_lea.vmem [#allocation0], %s261
    %263 = vst [vmem:[%s262] sm:%s260] %v259
    %s264 = scalar_lea.vmem [#allocation2], 176
    %v265 = vld [vmem:[%s264] sm:%s134]
    %s266 = sshllo.u32 0, 4
    %s267 = smul.addr 4, 22
    %s268 = scalar_lea.vmem [#allocation0], %s267
    %269 = vst [vmem:[%s268] sm:%s266] %v265
    %s270 = scalar_lea.vmem [#allocation2], 184
    %v271 = vld [vmem:[%s270] sm:%s134]
    %s272 = sshllo.u32 0, 4
    %s273 = smul.addr 4, 23
    %s274 = scalar_lea.vmem [#allocation0], %s273
    %275 = vst [vmem:[%s274] sm:%s272] %v271
    %s276 = scalar_lea.vmem [#allocation2], 192
    %v277 = vld [vmem:[%s276] sm:%s134]
    %s278 = sshllo.u32 0, 4
    %s279 = smul.addr 4, 24
    %s280 = scalar_lea.vmem [#allocation0], %s279
    %281 = vst [vmem:[%s280] sm:%s278] %v277
    %s282 = scalar_lea.vmem [#allocation2], 200
    %v283 = vld [vmem:[%s282] sm:%s134]
    %s284 = sshllo.u32 0, 4
    %s285 = smul.addr 4, 25
    %s286 = scalar_lea.vmem [#allocation0], %s285
    %287 = vst [vmem:[%s286] sm:%s284] %v283
    %s288 = scalar_lea.vmem [#allocation2], 208
    %v289 = vld [vmem:[%s288] sm:%s134]
    %s290 = sshllo.u32 0, 4
    %s291 = smul.addr 4, 26
    %s292 = scalar_lea.vmem [#allocation0], %s291
    %293 = vst [vmem:[%s292] sm:%s290] %v289
    %s294 = scalar_lea.vmem [#allocation2], 216
    %v295 = vld [vmem:[%s294] sm:%s134]
    %s296 = sshllo.u32 0, 4
    %s297 = smul.addr 4, 27
    %s298 = scalar_lea.vmem [#allocation0], %s297
    %299 = vst [vmem:[%s298] sm:%s296] %v295
    %s300 = scalar_lea.vmem [#allocation2], 224
    %v301 = vld [vmem:[%s300] sm:%s134]
    %s302 = sshllo.u32 0, 4
    %s303 = smul.addr 4, 28
    %s304 = scalar_lea.vmem [#allocation0], %s303
    %305 = vst [vmem:[%s304] sm:%s302] %v301
    %s306 = scalar_lea.vmem [#allocation2], 232
    %v307 = vld [vmem:[%s306] sm:%s134]
    %s308 = sshllo.u32 0, 4
    %s309 = smul.addr 4, 29
    %s310 = scalar_lea.vmem [#allocation0], %s309
    %311 = vst [vmem:[%s310] sm:%s308] %v307
    %s312 = scalar_lea.vmem [#allocation2], 240
    %v313 = vld [vmem:[%s312] sm:%s134]
    %s314 = sshllo.u32 0, 4
    %s315 = smul.addr 4, 30
    %s316 = scalar_lea.vmem [#allocation0], %s315
    %317 = vst [vmem:[%s316] sm:%s314] %v313
    %s318 = scalar_lea.vmem [#allocation2], 248
    %v319 = vld [vmem:[%s318] sm:%s134]
    %s320 = sshllo.u32 0, 4
    %s321 = smul.addr 4, 31
    %s322 = scalar_lea.vmem [#allocation0], %s321
    %323 = vst [vmem:[%s322] sm:%s320] %v319
    %s325 = ssub.s32 2048, 2048
    %326 = vsyncadd [#allocation1], %s325
    %s328 = sshll.u32 [#allocation0], 4
    %s329 = int_to_ptr.vmem [resolvable:$true] %s328
    %331 = dma.vmem_to_hbm [thread:$0]  %s329, 2048, %s1, [#allocation1]
    %332 = dma.done [#allocation1], 2048
    %333 = vsyncpa [#allocation1], 1

// kernel: encoder_process.1
$region0: #{encoder_process.1}
  #allocation0 [shape = 'u32[]', space=smem, size = 0x4, offset = 0x4, fixed_abs, tag = 'smem constant byte address 0x4 - core index']
  #allocation1 [shape = 'u32[144,128]{1,0:T(1,128)}', space=vmem, size = 0x12000, scoped, tag = 'internal scratch']
  %s0 = inlined_call_operand.vmem [shape: f32[32,128], index: 0, kind: input, shape index: {}]
  %s1 = inlined_call_operand.vmem [shape: bf16[2,128,384], index: 1, kind: input, shape index: {}]
  %s2 = inlined_call_operand.vmem [shape: bf16[2,128,128], index: 2, kind: input, shape index: {}]
  %s3 = inlined_call_operand.vmem [shape: bf16[2,128,256], index: 3, kind: input, shape index: {}]
  %s4 = inlined_call_operand.vmem [shape: f32[2,1,256], index: 4, kind: input, shape index: {}]
  %s5 = inlined_call_operand.vmem [shape: bf16[2,256,128], index: 5, kind: input, shape index: {}]
  %s6 = inlined_call_operand.vmem [shape: f32[2,1,128], index: 6, kind: input, shape index: {}, may-alias: {6,8,10}]
  %s7 = inlined_call_operand.vmem [shape: f32[2,1,128], index: 7, kind: input, shape index: {}, may-alias: {7,9}]
  %s8 = inlined_call_operand.vmem [shape: f32[2,1,128], index: 8, kind: input, shape index: {}, may-alias: {6,8,10}]
  %s9 = inlined_call_operand.vmem [shape: f32[2,1,128], index: 9, kind: input, shape index: {}, may-alias: {7,9}]
  %s10 = inlined_call_operand.vmem [shape: f32[2,1,128], index: 10, kind: input, shape index: {}, may-alias: {6,8,10}]
  %s11 = inlined_call_operand.vmem [shape: f32[2,32,128], index: 11, kind: output, shape index: {}]
  %s12 = sld [smem:[#allocation0]]
  $region54: #{encoder_process.1} parent=0
    _
  %s14 = ssub.s32 1, %s12
  %s15 = scalar_select 0, %s14, %s12
  // Predicated region
  $region2: #{encoder_process.1} parent=0 // pred_check
    _
  $region3: #{encoder_process.1} parent=0 // pred_check_branch
    %17 = sbr.rel (0) target = $region5
  $region4: #{encoder_process.1} parent=0 // pred_region
    _
  $region5: #{encoder_process.1} parent=0 // pred_fallthru
    _
  // Predicated region
  $region6: #{encoder_process.1} parent=0 // pred_check
    _
  $region7: #{encoder_process.1} parent=0 // pred_check_branch
    %19 = sbr.rel (0) target = $region9
  $region8: #{encoder_process.1} parent=0 // pred_region
    _
  $region9: #{encoder_process.1} parent=0 // pred_fallthru
    _
  // Predicated region
  $region10: #{encoder_process.1} parent=0 // pred_check
    _
  $region11: #{encoder_process.1} parent=0 // pred_check_branch
    %21 = sbr.rel (0) target = $region13
  $region12: #{encoder_process.1} parent=0 // pred_region
    _
  $region13: #{encoder_process.1} parent=0 // pred_fallthru
    _
  // Predicated region
  $region14: #{encoder_process.1} parent=0 // pred_check
    _
  $region15: #{encoder_process.1} parent=0 // pred_check_branch
    %23 = sbr.rel (0) target = $region17
  $region16: #{encoder_process.1} parent=0 // pred_region
    _
  $region17: #{encoder_process.1} parent=0 // pred_fallthru
    _
  // Predicated region
  $region18: #{encoder_process.1} parent=0 // pred_check
    _
  $region19: #{encoder_process.1} parent=0 // pred_check_branch
    %25 = sbr.rel (0) target = $region21
  $region20: #{encoder_process.1} parent=0 // pred_region
    _
  $region21: #{encoder_process.1} parent=0 // pred_fallthru
    _
  // Predicated region
  $region22: #{encoder_process.1} parent=0 // pred_check
    _
  $region23: #{encoder_process.1} parent=0 // pred_check_branch
    %27 = sbr.rel (0) target = $region25
  $region24: #{encoder_process.1} parent=0 // pred_region
    _
  $region25: #{encoder_process.1} parent=0 // pred_fallthru
    _
  // Predicated region
  $region26: #{encoder_process.1} parent=0 // pred_check
    _
  $region27: #{encoder_process.1} parent=0 // pred_check_branch
    %29 = sbr.rel (0) target = $region29
  $region28: #{encoder_process.1} parent=0 // pred_region
    _
  $region29: #{encoder_process.1} parent=0 // pred_fallthru
    _
  // Predicated region
  $region30: #{encoder_process.1} parent=0 // pred_check
    _
  $region31: #{encoder_process.1} parent=0 // pred_check_branch
    %31 = sbr.rel (0) target = $region33
  $region32: #{encoder_process.1} parent=0 // pred_region
    _
  $region33: #{encoder_process.1} parent=0 // pred_fallthru
    _
  // Predicated region
  $region34: #{encoder_process.1} parent=0 // pred_check
    _
  $region35: #{encoder_process.1} parent=0 // pred_check_branch
    %33 = sbr.rel (0) target = $region37
  $region36: #{encoder_process.1} parent=0 // pred_region
    _
  $region37: #{encoder_process.1} parent=0 // pred_fallthru
    _
  // Predicated region
  $region38: #{encoder_process.1} parent=0 // pred_check
    _
  $region39: #{encoder_process.1} parent=0 // pred_check_branch
    %35 = sbr.rel (0) target = $region41
  $region40: #{encoder_process.1} parent=0 // pred_region
    _
  $region41: #{encoder_process.1} parent=0 // pred_fallthru
    _
  // Predicated region
  $region42: #{encoder_process.1} parent=0 // pred_check
    _
  $region43: #{encoder_process.1} parent=0 // pred_check_branch
    %37 = sbr.rel (0) target = $region45
  $region44: #{encoder_process.1} parent=0 // pred_region
    _
  $region45: #{encoder_process.1} parent=0 // pred_fallthru
    _
  %v39 = vld [vmem:[%s0] sm:$0xff]
  %v40 = vld [vmem:[%s0 + $0x8] sm:$0xff]
  %v41 = vld [vmem:[%s0 + $0x10] sm:$0xff]
  %v42 = vld [vmem:[%s0 + $0x18] sm:$0xff]
  %v43 = vpack.c.bf16 %v40, %v39
  %v44 = vpack.c.bf16 %v42, %v41
  %v45 = vld [vmem:[%s1] sm:$0xff]
  %v46 = vld [vmem:[%s1 + $0x8] sm:$0xf]
  %v47 = vld [vmem:[%s1 + $0xc] sm:$0xff]
  %v48 = vld [vmem:[%s1 + $0x14] sm:$0xf]
  %v49 = vld [vmem:[%s1 + $0x18] sm:$0xff]
  %v50 = vld [vmem:[%s1 + $0x20] sm:$0xf]
  %v51 = vld [vmem:[%s1 + $0x24] sm:$0xff]
  %v52 = vld [vmem:[%s1 + $0x2c] sm:$0xf]
  %v53 = vld [vmem:[%s1 + $0x30] sm:$0xff]
  %v54 = vld [vmem:[%s1 + $0x38] sm:$0xf]
  %v55 = vld [vmem:[%s1 + $0x3c] sm:$0xff]
  %v56 = vld [vmem:[%s1 + $0x44] sm:$0xf]
  %v57 = vld [vmem:[%s1 + $0x48] sm:$0xff]
  %v58 = vld [vmem:[%s1 + $0x50] sm:$0xf]
  %v59 = vld [vmem:[%s1 + $0x54] sm:$0xff]
  %v60 = vld [vmem:[%s1 + $0x5c] sm:$0xf]
  %v61 = vld [vmem:[%s1 + $0x60] sm:$0xff]
  %v62 = vld [vmem:[%s1 + $0x68] sm:$0xf]
  %v63 = vld [vmem:[%s1 + $0x6c] sm:$0xff]
  %v64 = vld [vmem:[%s1 + $0x74] sm:$0xf]
  %v65 = vld [vmem:[%s1 + $0x78] sm:$0xff]
  %v66 = vld [vmem:[%s1 + $0x80] sm:$0xf]
  %v67 = vld [vmem:[%s1 + $0x84] sm:$0xff]
  %v68 = vld [vmem:[%s1 + $0x8c] sm:$0xf]
  %v69 = vld [vmem:[%s1 + $0x90] sm:$0xff]
  %v70 = vld [vmem:[%s1 + $0x98] sm:$0xf]
  %v71 = vld [vmem:[%s1 + $0x9c] sm:$0xff]
  %v72 = vld [vmem:[%s1 + $0xa4] sm:$0xf]
  %v73 = vld [vmem:[%s1 + $0xa8] sm:$0xff]
  %v74 = vld [vmem:[%s1 + $0xb0] sm:$0xf]
  %v75 = vld [vmem:[%s1 + $0xb4] sm:$0xff]
  %v76 = vld [vmem:[%s1 + $0xbc] sm:$0xf]
  %v109 = vunpack.c.l.b16 %v45
  %v110 = vunpack.c.h.b16 %v45
  %v111 = vunpack.c.l.b16 %v46
  %v112 = vunpack.c.l.b16 %v47
  %v113 = vunpack.c.h.b16 %v47
  %v114 = vunpack.c.l.b16 %v48
  %v115 = vunpack.c.l.b16 %v49
  %v116 = vunpack.c.h.b16 %v49
  %v117 = vunpack.c.l.b16 %v50
  %v118 = vunpack.c.l.b16 %v51
  %v119 = vunpack.c.h.b16 %v51
  %v120 = vunpack.c.l.b16 %v52
  %v121 = vunpack.c.l.b16 %v53
  %v122 = vunpack.c.h.b16 %v53
  %v123 = vunpack.c.l.b16 %v54
  %v124 = vunpack.c.l.b16 %v55
  %v125 = vunpack.c.h.b16 %v55
  %v126 = vunpack.c.l.b16 %v56
  %v127 = vunpack.c.l.b16 %v57
  %v128 = vunpack.c.h.b16 %v57
  %v129 = vunpack.c.l.b16 %v58
  %v130 = vunpack.c.l.b16 %v59
  %v131 = vunpack.c.h.b16 %v59
  %v132 = vunpack.c.l.b16 %v60
  %v133 = vunpack.c.l.b16 %v61
  %v134 = vunpack.c.h.b16 %v61
  %v135 = vunpack.c.l.b16 %v62
  %v136 = vunpack.c.l.b16 %v63
  %v137 = vunpack.c.h.b16 %v63
  %v138 = vunpack.c.l.b16 %v64
  %v139 = vunpack.c.l.b16 %v65
  %v140 = vunpack.c.h.b16 %v65
  %v141 = vunpack.c.l.b16 %v66
  %v142 = vunpack.c.l.b16 %v67
  %v143 = vunpack.c.h.b16 %v67
  %v144 = vunpack.c.l.b16 %v68
  %v145 = vunpack.c.l.b16 %v69
  %v146 = vunpack.c.h.b16 %v69
  %v147 = vunpack.c.l.b16 %v70
  %v148 = vunpack.c.l.b16 %v71
  %v149 = vunpack.c.h.b16 %v71
  %v150 = vunpack.c.l.b16 %v72
  %v151 = vunpack.c.l.b16 %v73
  %v152 = vunpack.c.h.b16 %v73
  %v153 = vunpack.c.l.b16 %v74
  %v154 = vunpack.c.l.b16 %v75
  %v155 = vunpack.c.h.b16 %v75
  %v156 = vunpack.c.l.b16 %v76
  %v157 = vpack.c.b16 %v112, %v109
  %v158 = vpack.c.b16 %v113, %v110
  %v159 = vpack.c.b16 %v114, %v111
  %v160 = vpack.c.b16 %v118, %v115
  %v161 = vpack.c.b16 %v119, %v116
  %v162 = vpack.c.b16 %v120, %v117
  %v163 = vpack.c.b16 %v124, %v121
  %v164 = vpack.c.b16 %v125, %v122
  %v165 = vpack.c.b16 %v126, %v123
  %v166 = vpack.c.b16 %v130, %v127
  %v167 = vpack.c.b16 %v131, %v128
  %v168 = vpack.c.b16 %v132, %v129
  %v169 = vpack.c.b16 %v136, %v133
  %v170 = vpack.c.b16 %v137, %v134
  %v171 = vpack.c.b16 %v138, %v135
  %v172 = vpack.c.b16 %v142, %v139
  %v173 = vpack.c.b16 %v143, %v140
  %v174 = vpack.c.b16 %v144, %v141
  %v175 = vpack.c.b16 %v148, %v145
  %v176 = vpack.c.b16 %v149, %v146
  %v177 = vpack.c.b16 %v150, %v147
  %v178 = vpack.c.b16 %v154, %v151
  %v179 = vpack.c.b16 %v155, %v152
  %v180 = vpack.c.b16 %v156, %v153
  %205 = vmatprep.subr.bf16.mxu0 %v158
  %206 = vmatpush1.bf16.msra.mxu0 %v157
  %207 = vmatprep.subr.bf16.mxu0 %v161
  %208 = vmatpush1.bf16.msra.mxu0 %v160
  %209 = vmatprep.subr.bf16.mxu0 %v164
  %210 = vmatpush1.bf16.msra.mxu0 %v163
  %211 = vmatprep.subr.bf16.mxu0 %v167
  %212 = vmatpush1.bf16.msra.mxu0 %v166
  %213 = vmatprep.subr.bf16.mxu0 %v170
  %214 = vmatpush1.bf16.msra.mxu0 %v169
  %215 = vmatprep.subr.bf16.mxu0 %v173
  %216 = vmatpush1.bf16.msra.mxu0 %v172
  %217 = vmatprep.subr.bf16.mxu0 %v176
  %218 = vmatpush1.bf16.msra.mxu0 %v175
  %219 = vmatprep.subr.bf16.mxu0 %v179
  %220 = vmatpush1.bf16.msra.mxu0 %v178
  %221 = vmatprep.subr.bf16.mxu0 0
  %222 = vmatpush1.bf16.msra.mxu0 0
  %223 = vmatprep.subr.bf16.mxu0 0
  %224 = vmatpush1.bf16.msra.mxu0 0
  %225 = vmatprep.subr.bf16.mxu0 0
  %226 = vmatpush1.bf16.msra.mxu0 0
  %227 = vmatprep.subr.bf16.mxu0 0
  %228 = vmatpush1.bf16.msra.mxu0 0
  %229 = vmatprep.subr.bf16.mxu0 0
  %230 = vmatpush1.bf16.msra.mxu0 0
  %231 = vmatprep.subr.bf16.mxu0 0
  %232 = vmatpush1.bf16.msra.mxu0 0
  %233 = vmatprep.subr.bf16.mxu0 0
  %234 = vmatpush1.bf16.msra.mxu0 0
  %235 = vmatprep.subr.bf16.mxu0 0
  %236 = vmatpush1.bf16.msra.mxu0 0
  %237 = vmatprep.mubr.bf16.mxu0 0
  %238 = vmatmul.mubr.bf16.gmra.mrb[0].mxu0 %v43
  %v239 = vpop.f32.mrb[0].mxu0
  %v240 = vadd.f32 0.0, %v239
  %v241 = vpop.f32.mrb[0].mxu0
  %v242 = vadd.f32 0.0, %v241
  %v243 = vpop.f32.mrb[0].mxu0
  %v244 = vadd.f32 0.0, %v243
  %v245 = vpop.f32.mrb[0].mxu0
  %v246 = vadd.f32 0.0, %v245
  %247 = vmatprep.mubr.bf16.mxu0 0
  %248 = vmatmul.mubr.bf16.gmra.mrb[0].mxu0 %v44
  %v249 = vpop.f32.mrb[0].mxu0
  %v250 = vadd.f32 0.0, %v249
  %v251 = vpop.f32.mrb[0].mxu0
  %v252 = vadd.f32 0.0, %v251
  %v253 = vpop.f32.mrb[0].mxu0
  %v254 = vadd.f32 0.0, %v253
  %v255 = vpop.f32.mrb[0].mxu0
  %v256 = vadd.f32 0.0, %v255
  %257 = vdwg.mxu0
  %258 = vmatprep.subr.bf16.mxu0 0
  %259 = vmatpush1.bf16.msra.mxu0 %v159
  %260 = vmatprep.subr.bf16.mxu0 0
  %261 = vmatpush1.bf16.msra.mxu0 %v162
  %262 = vmatprep.subr.bf16.mxu0 0
  %263 = vmatpush1.bf16.msra.mxu0 %v165
  %264 = vmatprep.subr.bf16.mxu0 0
  %265 = vmatpush1.bf16.msra.mxu0 %v168
  %266 = vmatprep.subr.bf16.mxu0 0
  %267 = vmatpush1.bf16.msra.mxu0 %v171
  %268 = vmatprep.subr.bf16.mxu0 0
  %269 = vmatpush1.bf16.msra.mxu0 %v174
  %270 = vmatprep.subr.bf16.mxu0 0
  %271 = vmatpush1.bf16.msra.mxu0 %v177
  %272 = vmatprep.subr.bf16.mxu0 0
  %273 = vmatpush1.bf16.msra.mxu0 %v180
  %274 = vmatprep.subr.bf16.mxu0 0
  %275 = vmatpush1.bf16.msra.mxu0 0
  %276 = vmatprep.subr.bf16.mxu0 0
  %277 = vmatpush1.bf16.msra.mxu0 0
  %278 = vmatprep.subr.bf16.mxu0 0
  %279 = vmatpush1.bf16.msra.mxu0 0
  %280 = vmatprep.subr.bf16.mxu0 0
  %281 = vmatpush1.bf16.msra.mxu0 0
  %282 = vmatprep.subr.bf16.mxu0 0
  %283 = vmatpush1.bf16.msra.mxu0 0
  %284 = vmatprep.subr.bf16.mxu0 0
  %285 = vmatpush1.bf16.msra.mxu0 0
  %286 = vmatprep.subr.bf16.mxu0 0
  %287 = vmatpush1.bf16.msra.mxu0 0
  %288 = vmatprep.subr.bf16.mxu0 0
  %289 = vmatpush1.bf16.msra.mxu0 0
  %290 = vmatprep.mubr.bf16.mxu0 0
  %291 = vmatmul.mubr.bf16.gmra.mrb[0].mxu0 %v43
  %v292 = vpop.f32.mrb[0].mxu0
  %v293 = vadd.f32 0.0, %v292
  %v294 = vpop.f32.mrb[0].mxu0
  %v295 = vpop.f32.mrb[0].mxu0
  %v296 = vadd.f32 0.0, %v295
  %v297 = vpop.f32.mrb[0].mxu0
  %298 = vmatprep.mubr.bf16.mxu0 0
  %299 = vmatmul.mubr.bf16.gmra.mrb[0].mxu0 %v44
  %v300 = vpop.f32.mrb[0].mxu0
  %v301 = vadd.f32 0.0, %v300
  %v302 = vpop.f32.mrb[0].mxu0
  %v303 = vpop.f32.mrb[0].mxu0
  %v304 = vadd.f32 0.0, %v303
  %v305 = vpop.f32.mrb[0].mxu0
  %306 = vdwg.mxu0
  %v307 = vmul.f32 %v240, 0.17677669
  %v308 = vmul.f32 %v244, 0.17677669
  %v309 = vmul.f32 %v250, 0.17677669
  %v310 = vmul.f32 %v254, 0.17677669
  %315 = vrot.lane.b32.xlu0 %v242, 96
  %v316 = vpop.permute.xlu0 %315
  %317 = vrot.lane.b32.xlu0 %v246, 96
  %v318 = vpop.permute.xlu0 %317
  %319 = vrot.lane.b32.xlu0 %v252, 96
  %v320 = vpop.permute.xlu0 %319
  %321 = vrot.lane.b32.xlu0 %v256, 96
  %v322 = vpop.permute.xlu0 %321
  %v327 = vmul.f32 %v307, %v316
  %v328 = vmul.f32 %v308, %v318
  %v329 = vmul.f32 %v309, %v320
  %v330 = vmul.f32 %v310, %v322
  %vm331 = vcmask 261120
  %v332 = vsel %vm331, %v327, 0.0
  %333 = vadd.xlane.f32.xlu0 %v332
  %v334 = vpop.xlane.xlu0 %333
  %v335 = vsel %vm331, %v328, 0.0
  %336 = vadd.xlane.f32.xlu0 %v335
  %v337 = vpop.xlane.xlu0 %336
  %v338 = vsel %vm331, %v329, 0.0
  %339 = vadd.xlane.f32.xlu0 %v338
  %v340 = vpop.xlane.xlu0 %339
  %v341 = vsel %vm331, %v330, 0.0
  %342 = vadd.xlane.f32.xlu0 %v341
  %v343 = vpop.xlane.xlu0 %342
  %344 = vrot.lane.b32.xlu0 %v242, 64
  %v345 = vpop.permute.xlu0 %344
  %346 = vrot.lane.b32.xlu0 %v246, 64
  %v347 = vpop.permute.xlu0 %346
  %348 = vrot.lane.b32.xlu0 %v252, 64
  %v349 = vpop.permute.xlu0 %348
  %350 = vrot.lane.b32.xlu0 %v256, 64
  %v351 = vpop.permute.xlu0 %350
  %v356 = vmul.f32 %v307, %v345
  %v357 = vmul.f32 %v308, %v347
  %v358 = vmul.f32 %v309, %v349
  %v359 = vmul.f32 %v310, %v351
  %v360 = vsel %vm331, %v356, 0.0
  %361 = vadd.xlane.f32.xlu0 %v360
  %v362 = vpop.xlane.xlu0 %361
  %v363 = vsel %vm331, %v357, 0.0
  %364 = vadd.xlane.f32.xlu0 %v363
  %v365 = vpop.xlane.xlu0 %364
  %v366 = vsel %vm331, %v358, 0.0
  %367 = vadd.xlane.f32.xlu0 %v366
  %v368 = vpop.xlane.xlu0 %367
  %v369 = vsel %vm331, %v359, 0.0
  %370 = vadd.xlane.f32.xlu0 %v369
  %v371 = vpop.xlane.xlu0 %370
  %372 = vrot.lane.b32.xlu0 %v242, 32
  %v373 = vpop.permute.xlu0 %372
  %374 = vrot.lane.b32.xlu0 %v246, 32
  %v375 = vpop.permute.xlu0 %374
  %376 = vrot.lane.b32.xlu0 %v252, 32
  %v377 = vpop.permute.xlu0 %376
  %378 = vrot.lane.b32.xlu0 %v256, 32
  %v379 = vpop.permute.xlu0 %378
  %v384 = vmul.f32 %v307, %v373
  %v385 = vmul.f32 %v308, %v375
  %v386 = vmul.f32 %v309, %v377
  %v387 = vmul.f32 %v310, %v379
  %v388 = vsel %vm331, %v384, 0.0
  %389 = vadd.xlane.f32.xlu0 %v388
  %v390 = vpop.xlane.xlu0 %389
  %v391 = vsel %vm331, %v385, 0.0
  %392 = vadd.xlane.f32.xlu0 %v391
  %v393 = vpop.xlane.xlu0 %392
  %v394 = vsel %vm331, %v386, 0.0
  %395 = vadd.xlane.f32.xlu0 %v394
  %v396 = vpop.xlane.xlu0 %395
  %v397 = vsel %vm331, %v387, 0.0
  %398 = vadd.xlane.f32.xlu0 %v397
  %v399 = vpop.xlane.xlu0 %398
  %v400 = vmax.f32 %v334, %v362
  %v401 = vmax.f32 %v337, %v365
  %v402 = vmax.f32 %v340, %v368
  %v403 = vmax.f32 %v343, %v371
  %v404 = vmax.f32 %v400, %v390
  %v405 = vmax.f32 %v401, %v393
  %v406 = vmax.f32 %v402, %v396
  %v407 = vmax.f32 %v403, %v399
  %v408 = vsub.f32 %v334, %v404
  %v409 = vsub.f32 %v337, %v405
  %v410 = vsub.f32 %v340, %v406
  %v411 = vsub.f32 %v343, %v407
  %v412 = vmul.f32 %v408, 1.442695
  %v413 = vpow.pop %v412
  %v414 = vmul.f32 %v409, 1.442695
  %v415 = vpow.pop %v414
  %v416 = vmul.f32 %v410, 1.442695
  %v417 = vpow.pop %v416
  %v418 = vmul.f32 %v411, 1.442695
  %v419 = vpow.pop %v418
  %v420 = vsub.f32 %v362, %v404
  %v421 = vsub.f32 %v365, %v405
  %v422 = vsub.f32 %v368, %v406
  %v423 = vsub.f32 %v371, %v407
  %v424 = vmul.f32 %v420, 1.442695
  %v425 = vpow.pop %v424
  %v426 = vmul.f32 %v421, 1.442695
  %v427 = vpow.pop %v426
  %v428 = vmul.f32 %v422, 1.442695
  %v429 = vpow.pop %v428
  %v430 = vmul.f32 %v423, 1.442695
  %v431 = vpow.pop %v430
  %v432 = vsub.f32 %v390, %v404
  %v433 = vsub.f32 %v393, %v405
  %v434 = vsub.f32 %v396, %v406
  %v435 = vsub.f32 %v399, %v407
  %v436 = vmul.f32 %v432, 1.442695
  %v437 = vpow.pop %v436
  %v438 = vmul.f32 %v433, 1.442695
  %v439 = vpow.pop %v438
  %v440 = vmul.f32 %v434, 1.442695
  %v441 = vpow.pop %v440
  %v442 = vmul.f32 %v435, 1.442695
  %v443 = vpow.pop %v442
  %v444 = vadd.f32 %v413, %v425
  %v445 = vadd.f32 %v415, %v427
  %v446 = vadd.f32 %v417, %v429
  %v447 = vadd.f32 %v419, %v431
  %v448 = vadd.f32 %v444, %v437
  %v449 = vadd.f32 %v445, %v439
  %v450 = vadd.f32 %v446, %v441
  %v451 = vadd.f32 %v447, %v443
  %v452 = vrcp.pop %v448
  %v453 = vrcp.pop %v449
  %v454 = vrcp.pop %v450
  %v455 = vrcp.pop %v451
  %v456 = vmul.f32 %v413, %v452
  %v457 = vmul.f32 %v415, %v453
  %v458 = vmul.f32 %v417, %v454
  %v459 = vmul.f32 %v419, %v455
  %v460 = vmul.f32 %v456, %v293
  %v461 = vmul.f32 %v457, %v296
  %v462 = vmul.f32 %v458, %v301
  %v463 = vmul.f32 %v459, %v304
  %v464 = vmul.f32 %v425, %v452
  %v465 = vmul.f32 %v427, %v453
  %v466 = vmul.f32 %v429, %v454
  %v467 = vmul.f32 %v431, %v455
  %v468 = vmul.f32 %v464, %v293
  %v469 = vmul.f32 %v465, %v296
  %v470 = vmul.f32 %v466, %v301
  %v471 = vmul.f32 %v467, %v304
  %476 = vrot.lane.b32.xlu0 %v468, 96
  %v477 = vpop.permute.xlu0 %476
  %478 = vrot.lane.b32.xlu0 %v469, 96
  %v479 = vpop.permute.xlu0 %478
  %480 = vrot.lane.b32.xlu0 %v470, 96
  %v481 = vpop.permute.xlu0 %480
  %482 = vrot.lane.b32.xlu0 %v471, 96
  %v483 = vpop.permute.xlu0 %482
  %v488 = vadd.f32 %v460, %v477
  %v489 = vadd.f32 %v461, %v479
  %v490 = vadd.f32 %v462, %v481
  %v491 = vadd.f32 %v463, %v483
  %v492 = vmul.f32 %v437, %v452
  %v493 = vmul.f32 %v439, %v453
  %v494 = vmul.f32 %v441, %v454
  %v495 = vmul.f32 %v443, %v455
  %v496 = vmul.f32 %v492, %v293
  %v497 = vmul.f32 %v493, %v296
  %v498 = vmul.f32 %v494, %v301
  %v499 = vmul.f32 %v495, %v304
  %504 = vrot.lane.b32.xlu0 %v496, 64
  %v505 = vpop.permute.xlu0 %504
  %506 = vrot.lane.b32.xlu0 %v497, 64
  %v507 = vpop.permute.xlu0 %506
  %508 = vrot.lane.b32.xlu0 %v498, 64
  %v509 = vpop.permute.xlu0 %508
  %510 = vrot.lane.b32.xlu0 %v499, 64
  %v511 = vpop.permute.xlu0 %510
  %v516 = vadd.f32 %v488, %v505
  %v517 = vadd.f32 %v489, %v507
  %v518 = vadd.f32 %v490, %v509
  %v519 = vadd.f32 %v491, %v511
  %524 = vrot.lane.b32.xlu0 %v384, 96
  %v525 = vpop.permute.xlu0 %524
  %526 = vrot.lane.b32.xlu0 %v385, 96
  %v527 = vpop.permute.xlu0 %526
  %528 = vrot.lane.b32.xlu0 %v386, 96
  %v529 = vpop.permute.xlu0 %528
  %530 = vrot.lane.b32.xlu0 %v387, 96
  %v531 = vpop.permute.xlu0 %530
  %v536 = vsel %vm331, %v525, 0.0
  %537 = vadd.xlane.f32.xlu0 %v536
  %v538 = vpop.xlane.xlu0 %537
  %v539 = vsel %vm331, %v527, 0.0
  %540 = vadd.xlane.f32.xlu0 %v539
  %v541 = vpop.xlane.xlu0 %540
  %v542 = vsel %vm331, %v529, 0.0
  %543 = vadd.xlane.f32.xlu0 %v542
  %v544 = vpop.xlane.xlu0 %543
  %v545 = vsel %vm331, %v531, 0.0
  %546 = vadd.xlane.f32.xlu0 %v545
  %v547 = vpop.xlane.xlu0 %546
  %552 = vrot.lane.b32.xlu0 %v327, 96
  %v553 = vpop.permute.xlu0 %552
  %554 = vrot.lane.b32.xlu0 %v328, 96
  %v555 = vpop.permute.xlu0 %554
  %556 = vrot.lane.b32.xlu0 %v329, 96
  %v557 = vpop.permute.xlu0 %556
  %558 = vrot.lane.b32.xlu0 %v330, 96
  %v559 = vpop.permute.xlu0 %558
  %v564 = vsel %vm331, %v553, 0.0
  %565 = vadd.xlane.f32.xlu0 %v564
  %v566 = vpop.xlane.xlu0 %565
  %v567 = vsel %vm331, %v555, 0.0
  %568 = vadd.xlane.f32.xlu0 %v567
  %v569 = vpop.xlane.xlu0 %568
  %v570 = vsel %vm331, %v557, 0.0
  %571 = vadd.xlane.f32.xlu0 %v570
  %v572 = vpop.xlane.xlu0 %571
  %v573 = vsel %vm331, %v559, 0.0
  %574 = vadd.xlane.f32.xlu0 %v573
  %v575 = vpop.xlane.xlu0 %574
  %580 = vrot.lane.b32.xlu0 %v356, 96
  %v581 = vpop.permute.xlu0 %580
  %582 = vrot.lane.b32.xlu0 %v357, 96
  %v583 = vpop.permute.xlu0 %582
  %584 = vrot.lane.b32.xlu0 %v358, 96
  %v585 = vpop.permute.xlu0 %584
  %586 = vrot.lane.b32.xlu0 %v359, 96
  %v587 = vpop.permute.xlu0 %586
  %v592 = vsel %vm331, %v581, 0.0
  %593 = vadd.xlane.f32.xlu0 %v592
  %v594 = vpop.xlane.xlu0 %593
  %v595 = vsel %vm331, %v583, 0.0
  %596 = vadd.xlane.f32.xlu0 %v595
  %v597 = vpop.xlane.xlu0 %596
  %v598 = vsel %vm331, %v585, 0.0
  %599 = vadd.xlane.f32.xlu0 %v598
  %v600 = vpop.xlane.xlu0 %599
  %v601 = vsel %vm331, %v587, 0.0
  %602 = vadd.xlane.f32.xlu0 %v601
  %v603 = vpop.xlane.xlu0 %602
  %v604 = vmax.f32 %v538, %v566
  %v605 = vmax.f32 %v541, %v569
  %v606 = vmax.f32 %v544, %v572
  %v607 = vmax.f32 %v547, %v575
  %v608 = vmax.f32 %v604, %v594
  %v609 = vmax.f32 %v605, %v597
  %v610 = vmax.f32 %v606, %v600
  %v611 = vmax.f32 %v607, %v603
  %v612 = vsub.f32 %v538, %v608
  %v613 = vsub.f32 %v541, %v609
  %v614 = vsub.f32 %v544, %v610
  %v615 = vsub.f32 %v547, %v611
  %v616 = vmul.f32 %v612, 1.442695
  %v617 = vpow.pop %v616
  %v618 = vmul.f32 %v613, 1.442695
  %v619 = vpow.pop %v618
  %v620 = vmul.f32 %v614, 1.442695
  %v621 = vpow.pop %v620
  %v622 = vmul.f32 %v615, 1.442695
  %v623 = vpow.pop %v622
  %v624 = vsub.f32 %v566, %v608
  %v625 = vsub.f32 %v569, %v609
  %v626 = vsub.f32 %v572, %v610
  %v627 = vsub.f32 %v575, %v611
  %v628 = vmul.f32 %v624, 1.442695
  %v629 = vpow.pop %v628
  %v630 = vmul.f32 %v625, 1.442695
  %v631 = vpow.pop %v630
  %v632 = vmul.f32 %v626, 1.442695
  %v633 = vpow.pop %v632
  %v634 = vmul.f32 %v627, 1.442695
  %v635 = vpow.pop %v634
  %v636 = vsub.f32 %v594, %v608
  %v637 = vsub.f32 %v597, %v609
  %v638 = vsub.f32 %v600, %v610
  %v639 = vsub.f32 %v603, %v611
  %v640 = vmul.f32 %v636, 1.442695
  %v641 = vpow.pop %v640
  %v642 = vmul.f32 %v637, 1.442695
  %v643 = vpow.pop %v642
  %v644 = vmul.f32 %v638, 1.442695
  %v645 = vpow.pop %v644
  %v646 = vmul.f32 %v639, 1.442695
  %v647 = vpow.pop %v646
  %v648 = vadd.f32 %v617, %v629
  %v649 = vadd.f32 %v619, %v631
  %v650 = vadd.f32 %v621, %v633
  %v651 = vadd.f32 %v623, %v635
  %v652 = vadd.f32 %v648, %v641
  %v653 = vadd.f32 %v649, %v643
  %v654 = vadd.f32 %v650, %v645
  %v655 = vadd.f32 %v651, %v647
  %v656 = vrcp.pop %v652
  %v657 = vrcp.pop %v653
  %v658 = vrcp.pop %v654
  %v659 = vrcp.pop %v655
  %v660 = vmul.f32 %v617, %v656
  %v661 = vmul.f32 %v619, %v657
  %v662 = vmul.f32 %v621, %v658
  %v663 = vmul.f32 %v623, %v659
  %v664 = vmul.f32 %v660, %v293
  %v665 = vmul.f32 %v661, %v296
  %v666 = vmul.f32 %v662, %v301
  %v667 = vmul.f32 %v663, %v304
  %v668 = vmul.f32 %v629, %v656
  %v669 = vmul.f32 %v631, %v657
  %v670 = vmul.f32 %v633, %v658
  %v671 = vmul.f32 %v635, %v659
  %v672 = vmul.f32 %v668, %v293
  %v673 = vmul.f32 %v669, %v296
  %v674 = vmul.f32 %v670, %v301
  %v675 = vmul.f32 %v671, %v304
  %680 = vrot.lane.b32.xlu0 %v672, 64
  %v681 = vpop.permute.xlu0 %680
  %682 = vrot.lane.b32.xlu0 %v673, 64
  %v683 = vpop.permute.xlu0 %682
  %684 = vrot.lane.b32.xlu0 %v674, 64
  %v685 = vpop.permute.xlu0 %684
  %686 = vrot.lane.b32.xlu0 %v675, 64
  %v687 = vpop.permute.xlu0 %686
  %v692 = vadd.f32 %v664, %v681
  %v693 = vadd.f32 %v665, %v683
  %v694 = vadd.f32 %v666, %v685
  %v695 = vadd.f32 %v667, %v687
  %v696 = vmul.f32 %v641, %v656
  %v697 = vmul.f32 %v643, %v657
  %v698 = vmul.f32 %v645, %v658
  %v699 = vmul.f32 %v647, %v659
  %v700 = vmul.f32 %v696, %v293
  %v701 = vmul.f32 %v697, %v296
  %v702 = vmul.f32 %v698, %v301
  %v703 = vmul.f32 %v699, %v304
  %708 = vrot.lane.b32.xlu0 %v700, 32
  %v709 = vpop.permute.xlu0 %708
  %710 = vrot.lane.b32.xlu0 %v701, 32
  %v711 = vpop.permute.xlu0 %710
  %712 = vrot.lane.b32.xlu0 %v702, 32
  %v713 = vpop.permute.xlu0 %712
  %714 = vrot.lane.b32.xlu0 %v703, 32
  %v715 = vpop.permute.xlu0 %714
  %v720 = vadd.f32 %v692, %v709
  %v721 = vadd.f32 %v693, %v711
  %v722 = vadd.f32 %v694, %v713
  %v723 = vadd.f32 %v695, %v715
  %724 = vrot.lane.b32.xlu0 %v356, 64
  %v725 = vpop.permute.xlu0 %724
  %726 = vrot.lane.b32.xlu0 %v357, 64
  %v727 = vpop.permute.xlu0 %726
  %728 = vrot.lane.b32.xlu0 %v358, 64
  %v729 = vpop.permute.xlu0 %728
  %730 = vrot.lane.b32.xlu0 %v359, 64
  %v731 = vpop.permute.xlu0 %730
  %v736 = vsel %vm331, %v725, 0.0
  %737 = vadd.xlane.f32.xlu0 %v736
  %v738 = vpop.xlane.xlu0 %737
  %v739 = vsel %vm331, %v727, 0.0
  %740 = vadd.xlane.f32.xlu0 %v739
  %v741 = vpop.xlane.xlu0 %740
  %v742 = vsel %vm331, %v729, 0.0
  %743 = vadd.xlane.f32.xlu0 %v742
  %v744 = vpop.xlane.xlu0 %743
  %v745 = vsel %vm331, %v731, 0.0
  %746 = vadd.xlane.f32.xlu0 %v745
  %v747 = vpop.xlane.xlu0 %746
  %748 = vrot.lane.b32.xlu0 %v384, 64
  %v749 = vpop.permute.xlu0 %748
  %750 = vrot.lane.b32.xlu0 %v385, 64
  %v751 = vpop.permute.xlu0 %750
  %752 = vrot.lane.b32.xlu0 %v386, 64
  %v753 = vpop.permute.xlu0 %752
  %754 = vrot.lane.b32.xlu0 %v387, 64
  %v755 = vpop.permute.xlu0 %754
  %v760 = vsel %vm331, %v749, 0.0
  %761 = vadd.xlane.f32.xlu0 %v760
  %v762 = vpop.xlane.xlu0 %761
  %v763 = vsel %vm331, %v751, 0.0
  %764 = vadd.xlane.f32.xlu0 %v763
  %v765 = vpop.xlane.xlu0 %764
  %v766 = vsel %vm331, %v753, 0.0
  %767 = vadd.xlane.f32.xlu0 %v766
  %v768 = vpop.xlane.xlu0 %767
  %v769 = vsel %vm331, %v755, 0.0
  %770 = vadd.xlane.f32.xlu0 %v769
  %v771 = vpop.xlane.xlu0 %770
  %772 = vrot.lane.b32.xlu0 %v327, 64
  %v773 = vpop.permute.xlu0 %772
  %774 = vrot.lane.b32.xlu0 %v328, 64
  %v775 = vpop.permute.xlu0 %774
  %776 = vrot.lane.b32.xlu0 %v329, 64
  %v777 = vpop.permute.xlu0 %776
  %778 = vrot.lane.b32.xlu0 %v330, 64
  %v779 = vpop.permute.xlu0 %778
  %v784 = vsel %vm331, %v773, 0.0
  %785 = vadd.xlane.f32.xlu0 %v784
  %v786 = vpop.xlane.xlu0 %785
  %v787 = vsel %vm331, %v775, 0.0
  %788 = vadd.xlane.f32.xlu0 %v787
  %v789 = vpop.xlane.xlu0 %788
  %v790 = vsel %vm331, %v777, 0.0
  %791 = vadd.xlane.f32.xlu0 %v790
  %v792 = vpop.xlane.xlu0 %791
  %v793 = vsel %vm331, %v779, 0.0
  %794 = vadd.xlane.f32.xlu0 %v793
  %v795 = vpop.xlane.xlu0 %794
  %v796 = vmax.f32 %v738, %v762
  %v797 = vmax.f32 %v741, %v765
  %v798 = vmax.f32 %v744, %v768
  %v799 = vmax.f32 %v747, %v771
  %v800 = vmax.f32 %v796, %v786
  %v801 = vmax.f32 %v797, %v789
  %v802 = vmax.f32 %v798, %v792
  %v803 = vmax.f32 %v799, %v795
  %v804 = vsub.f32 %v738, %v800
  %v805 = vsub.f32 %v741, %v801
  %v806 = vsub.f32 %v744, %v802
  %v807 = vsub.f32 %v747, %v803
  %v808 = vmul.f32 %v804, 1.442695
  %v809 = vpow.pop %v808
  %v810 = vmul.f32 %v805, 1.442695
  %v811 = vpow.pop %v810
  %v812 = vmul.f32 %v806, 1.442695
  %v813 = vpow.pop %v812
  %v814 = vmul.f32 %v807, 1.442695
  %v815 = vpow.pop %v814
  %v816 = vsub.f32 %v762, %v800
  %v817 = vsub.f32 %v765, %v801
  %v818 = vsub.f32 %v768, %v802
  %v819 = vsub.f32 %v771, %v803
  %v820 = vmul.f32 %v816, 1.442695
  %v821 = vpow.pop %v820
  %v822 = vmul.f32 %v817, 1.442695
  %v823 = vpow.pop %v822
  %v824 = vmul.f32 %v818, 1.442695
  %v825 = vpow.pop %v824
  %v826 = vmul.f32 %v819, 1.442695
  %v827 = vpow.pop %v826
  %v828 = vsub.f32 %v786, %v800
  %v829 = vsub.f32 %v789, %v801
  %v830 = vsub.f32 %v792, %v802
  %v831 = vsub.f32 %v795, %v803
  %v832 = vmul.f32 %v828, 1.442695
  %v833 = vpow.pop %v832
  %v834 = vmul.f32 %v829, 1.442695
  %v835 = vpow.pop %v834
  %v836 = vmul.f32 %v830, 1.442695
  %v837 = vpow.pop %v836
  %v838 = vmul.f32 %v831, 1.442695
  %v839 = vpow.pop %v838
  %v840 = vadd.f32 %v809, %v821
  %v841 = vadd.f32 %v811, %v823
  %v842 = vadd.f32 %v813, %v825
  %v843 = vadd.f32 %v815, %v827
  %v844 = vadd.f32 %v840, %v833
  %v845 = vadd.f32 %v841, %v835
  %v846 = vadd.f32 %v842, %v837
  %v847 = vadd.f32 %v843, %v839
  %v848 = vrcp.pop %v844
  %v849 = vrcp.pop %v845
  %v850 = vrcp.pop %v846
  %v851 = vrcp.pop %v847
  %v852 = vmul.f32 %v809, %v848
  %v853 = vmul.f32 %v811, %v849
  %v854 = vmul.f32 %v813, %v850
  %v855 = vmul.f32 %v815, %v851
  %v856 = vmul.f32 %v852, %v293
  %v857 = vmul.f32 %v853, %v296
  %v858 = vmul.f32 %v854, %v301
  %v859 = vmul.f32 %v855, %v304
  %v860 = vmul.f32 %v821, %v848
  %v861 = vmul.f32 %v823, %v849
  %v862 = vmul.f32 %v825, %v850
  %v863 = vmul.f32 %v827, %v851
  %v864 = vmul.f32 %v860, %v293
  %v865 = vmul.f32 %v861, %v296
  %v866 = vmul.f32 %v862, %v301
  %v867 = vmul.f32 %v863, %v304
  %872 = vrot.lane.b32.xlu0 %v864, 96
  %v873 = vpop.permute.xlu0 %872
  %874 = vrot.lane.b32.xlu0 %v865, 96
  %v875 = vpop.permute.xlu0 %874
  %876 = vrot.lane.b32.xlu0 %v866, 96
  %v877 = vpop.permute.xlu0 %876
  %878 = vrot.lane.b32.xlu0 %v867, 96
  %v879 = vpop.permute.xlu0 %878
  %v884 = vadd.f32 %v856, %v873
  %v885 = vadd.f32 %v857, %v875
  %v886 = vadd.f32 %v858, %v877
  %v887 = vadd.f32 %v859, %v879
  %v888 = vmul.f32 %v833, %v848
  %v889 = vmul.f32 %v835, %v849
  %v890 = vmul.f32 %v837, %v850
  %v891 = vmul.f32 %v839, %v851
  %v892 = vmul.f32 %v888, %v293
  %v893 = vmul.f32 %v889, %v296
  %v894 = vmul.f32 %v890, %v301
  %v895 = vmul.f32 %v891, %v304
  %900 = vrot.lane.b32.xlu0 %v892, 32
  %v901 = vpop.permute.xlu0 %900
  %902 = vrot.lane.b32.xlu0 %v893, 32
  %v903 = vpop.permute.xlu0 %902
  %904 = vrot.lane.b32.xlu0 %v894, 32
  %v905 = vpop.permute.xlu0 %904
  %906 = vrot.lane.b32.xlu0 %v895, 32
  %v907 = vpop.permute.xlu0 %906
  %v912 = vadd.f32 %v884, %v901
  %v913 = vadd.f32 %v885, %v903
  %v914 = vadd.f32 %v886, %v905
  %v915 = vadd.f32 %v887, %v907
  %916 = vrot.lane.b32.xlu0 %v327, 32
  %v917 = vpop.permute.xlu0 %916
  %918 = vrot.lane.b32.xlu0 %v328, 32
  %v919 = vpop.permute.xlu0 %918
  %920 = vrot.lane.b32.xlu0 %v329, 32
  %v921 = vpop.permute.xlu0 %920
  %922 = vrot.lane.b32.xlu0 %v330, 32
  %v923 = vpop.permute.xlu0 %922
  %v928 = vsel %vm331, %v917, 0.0
  %929 = vadd.xlane.f32.xlu0 %v928
  %v930 = vpop.xlane.xlu0 %929
  %v931 = vsel %vm331, %v919, 0.0
  %932 = vadd.xlane.f32.xlu0 %v931
  %v933 = vpop.xlane.xlu0 %932
  %v934 = vsel %vm331, %v921, 0.0
  %935 = vadd.xlane.f32.xlu0 %v934
  %v936 = vpop.xlane.xlu0 %935
  %v937 = vsel %vm331, %v923, 0.0
  %938 = vadd.xlane.f32.xlu0 %v937
  %v939 = vpop.xlane.xlu0 %938
  %940 = vrot.lane.b32.xlu0 %v356, 32
  %v941 = vpop.permute.xlu0 %940
  %942 = vrot.lane.b32.xlu0 %v357, 32
  %v943 = vpop.permute.xlu0 %942
  %944 = vrot.lane.b32.xlu0 %v358, 32
  %v945 = vpop.permute.xlu0 %944
  %946 = vrot.lane.b32.xlu0 %v359, 32
  %v947 = vpop.permute.xlu0 %946
  %v952 = vsel %vm331, %v941, 0.0
  %953 = vadd.xlane.f32.xlu0 %v952
  %v954 = vpop.xlane.xlu0 %953
  %v955 = vsel %vm331, %v943, 0.0
  %956 = vadd.xlane.f32.xlu0 %v955
  %v957 = vpop.xlane.xlu0 %956
  %v958 = vsel %vm331, %v945, 0.0
  %959 = vadd.xlane.f32.xlu0 %v958
  %v960 = vpop.xlane.xlu0 %959
  %v961 = vsel %vm331, %v947, 0.0
  %962 = vadd.xlane.f32.xlu0 %v961
  %v963 = vpop.xlane.xlu0 %962
  %964 = vrot.lane.b32.xlu0 %v384, 32
  %v965 = vpop.permute.xlu0 %964
  %966 = vrot.lane.b32.xlu0 %v385, 32
  %v967 = vpop.permute.xlu0 %966
  %968 = vrot.lane.b32.xlu0 %v386, 32
  %v969 = vpop.permute.xlu0 %968
  %970 = vrot.lane.b32.xlu0 %v387, 32
  %v971 = vpop.permute.xlu0 %970
  %v976 = vsel %vm331, %v965, 0.0
  %977 = vadd.xlane.f32.xlu0 %v976
  %v978 = vpop.xlane.xlu0 %977
  %v979 = vsel %vm331, %v967, 0.0
  %980 = vadd.xlane.f32.xlu0 %v979
  %v981 = vpop.xlane.xlu0 %980
  %v982 = vsel %vm331, %v969, 0.0
  %983 = vadd.xlane.f32.xlu0 %v982
  %v984 = vpop.xlane.xlu0 %983
  %v985 = vsel %vm331, %v971, 0.0
  %986 = vadd.xlane.f32.xlu0 %v985
  %v987 = vpop.xlane.xlu0 %986
  %v988 = vmax.f32 %v930, %v954
  %v989 = vmax.f32 %v933, %v957
  %v990 = vmax.f32 %v936, %v960
  %v991 = vmax.f32 %v939, %v963
  %v992 = vmax.f32 %v988, %v978
  %v993 = vmax.f32 %v989, %v981
  %v994 = vmax.f32 %v990, %v984
  %v995 = vmax.f32 %v991, %v987
  %v996 = vsub.f32 %v930, %v992
  %v997 = vsub.f32 %v933, %v993
  %v998 = vsub.f32 %v936, %v994
  %v999 = vsub.f32 %v939, %v995
  %v1000 = vmul.f32 %v996, 1.442695
  %v1001 = vpow.pop %v1000
  %v1002 = vmul.f32 %v997, 1.442695
  %v1003 = vpow.pop %v1002
  %v1004 = vmul.f32 %v998, 1.442695
  %v1005 = vpow.pop %v1004
  %v1006 = vmul.f32 %v999, 1.442695
  %v1007 = vpow.pop %v1006
  %v1008 = vsub.f32 %v954, %v992
  %v1009 = vsub.f32 %v957, %v993
  %v1010 = vsub.f32 %v960, %v994
  %v1011 = vsub.f32 %v963, %v995
  %v1012 = vmul.f32 %v1008, 1.442695
  %v1013 = vpow.pop %v1012
  %v1014 = vmul.f32 %v1009, 1.442695
  %v1015 = vpow.pop %v1014
  %v1016 = vmul.f32 %v1010, 1.442695
  %v1017 = vpow.pop %v1016
  %v1018 = vmul.f32 %v1011, 1.442695
  %v1019 = vpow.pop %v1018
  %v1020 = vsub.f32 %v978, %v992
  %v1021 = vsub.f32 %v981, %v993
  %v1022 = vsub.f32 %v984, %v994
  %v1023 = vsub.f32 %v987, %v995
  %v1024 = vmul.f32 %v1020, 1.442695
  %v1025 = vpow.pop %v1024
  %v1026 = vmul.f32 %v1021, 1.442695
  %v1027 = vpow.pop %v1026
  %v1028 = vmul.f32 %v1022, 1.442695
  %v1029 = vpow.pop %v1028
  %v1030 = vmul.f32 %v1023, 1.442695
  %v1031 = vpow.pop %v1030
  %v1032 = vadd.f32 %v1001, %v1013
  %v1033 = vadd.f32 %v1003, %v1015
  %v1034 = vadd.f32 %v1005, %v1017
  %v1035 = vadd.f32 %v1007, %v1019
  %v1036 = vadd.f32 %v1032, %v1025
  %v1037 = vadd.f32 %v1033, %v1027
  %v1038 = vadd.f32 %v1034, %v1029
  %v1039 = vadd.f32 %v1035, %v1031
  %v1040 = vrcp.pop %v1036
  %v1041 = vrcp.pop %v1037
  %v1042 = vrcp.pop %v1038
  %v1043 = vrcp.pop %v1039
  %v1044 = vmul.f32 %v1001, %v1040
  %v1045 = vmul.f32 %v1003, %v1041
  %v1046 = vmul.f32 %v1005, %v1042
  %v1047 = vmul.f32 %v1007, %v1043
  %v1048 = vmul.f32 %v1044, %v293
  %v1049 = vmul.f32 %v1045, %v296
  %v1050 = vmul.f32 %v1046, %v301
  %v1051 = vmul.f32 %v1047, %v304
  %v1052 = vmul.f32 %v1013, %v1040
  %v1053 = vmul.f32 %v1015, %v1041
  %v1054 = vmul.f32 %v1017, %v1042
  %v1055 = vmul.f32 %v1019, %v1043
  %v1056 = vmul.f32 %v1052, %v293
  %v1057 = vmul.f32 %v1053, %v296
  %v1058 = vmul.f32 %v1054, %v301
  %v1059 = vmul.f32 %v1055, %v304
  %1064 = vrot.lane.b32.xlu0 %v1056, 96
  %v1065 = vpop.permute.xlu0 %1064
  %1066 = vrot.lane.b32.xlu0 %v1057, 96
  %v1067 = vpop.permute.xlu0 %1066
  %1068 = vrot.lane.b32.xlu0 %v1058, 96
  %v1069 = vpop.permute.xlu0 %1068
  %1070 = vrot.lane.b32.xlu0 %v1059, 96
  %v1071 = vpop.permute.xlu0 %1070
  %v1076 = vadd.f32 %v1048, %v1065
  %v1077 = vadd.f32 %v1049, %v1067
  %v1078 = vadd.f32 %v1050, %v1069
  %v1079 = vadd.f32 %v1051, %v1071
  %v1080 = vmul.f32 %v1025, %v1040
  %v1081 = vmul.f32 %v1027, %v1041
  %v1082 = vmul.f32 %v1029, %v1042
  %v1083 = vmul.f32 %v1031, %v1043
  %v1084 = vmul.f32 %v1080, %v293
  %v1085 = vmul.f32 %v1081, %v296
  %v1086 = vmul.f32 %v1082, %v301
  %v1087 = vmul.f32 %v1083, %v304
  %1092 = vrot.lane.b32.xlu0 %v1084, 64
  %v1093 = vpop.permute.xlu0 %1092
  %1094 = vrot.lane.b32.xlu0 %v1085, 64
  %v1095 = vpop.permute.xlu0 %1094
  %1096 = vrot.lane.b32.xlu0 %v1086, 64
  %v1097 = vpop.permute.xlu0 %1096
  %1098 = vrot.lane.b32.xlu0 %v1087, 64
  %v1099 = vpop.permute.xlu0 %1098
  %v1104 = vadd.f32 %v1076, %v1093
  %v1105 = vadd.f32 %v1077, %v1095
  %v1106 = vadd.f32 %v1078, %v1097
  %v1107 = vadd.f32 %v1079, %v1099
  %1112 = vrot.lane.b32.xlu0 %v516, 96
  %v1113 = vpop.permute.xlu0 %1112
  %1114 = vrot.lane.b32.xlu0 %v517, 96
  %v1115 = vpop.permute.xlu0 %1114
  %1116 = vrot.lane.b32.xlu0 %v518, 96
  %v1117 = vpop.permute.xlu0 %1116
  %1118 = vrot.lane.b32.xlu0 %v519, 96
  %v1119 = vpop.permute.xlu0 %1118
  %1128 = vrot.lane.b32.xlu0 %v720, 32
  %v1129 = vpop.permute.xlu0 %1128
  %1130 = vrot.lane.b32.xlu0 %v721, 32
  %v1131 = vpop.permute.xlu0 %1130
  %1132 = vrot.lane.b32.xlu0 %v722, 32
  %v1133 = vpop.permute.xlu0 %1132
  %1134 = vrot.lane.b32.xlu0 %v723, 32
  %v1135 = vpop.permute.xlu0 %1134
  %1144 = vrot.lane.b32.xlu0 %v912, 64
  %v1145 = vpop.permute.xlu0 %1144
  %1146 = vrot.lane.b32.xlu0 %v913, 64
  %v1147 = vpop.permute.xlu0 %1146
  %1148 = vrot.lane.b32.xlu0 %v914, 64
  %v1149 = vpop.permute.xlu0 %1148
  %1150 = vrot.lane.b32.xlu0 %v915, 64
  %v1151 = vpop.permute.xlu0 %1150
  %1160 = vrot.lane.b32.xlu0 %v1104, 96
  %v1161 = vpop.permute.xlu0 %1160
  %1162 = vrot.lane.b32.xlu0 %v1105, 96
  %v1163 = vpop.permute.xlu0 %1162
  %1164 = vrot.lane.b32.xlu0 %v1106, 96
  %v1165 = vpop.permute.xlu0 %1164
  %1166 = vrot.lane.b32.xlu0 %v1107, 96
  %v1167 = vpop.permute.xlu0 %1166
  %v1172 = vsel %vm331, %v1113, %v1129
  %v1173 = vsel %vm331, %v1115, %v1131
  %v1174 = vsel %vm331, %v1117, %v1133
  %v1175 = vsel %vm331, %v1119, %v1135
  %vm1176 = vcmask 523264
  %v1177 = vsel %vm1176, %v1172, %v1145
  %v1178 = vsel %vm1176, %v1173, %v1147
  %v1179 = vsel %vm1176, %v1174, %v1149
  %v1180 = vsel %vm1176, %v1175, %v1151
  %vm1181 = vcmask 785408
  %v1182 = vsel %vm1181, %v1177, %v1161
  %v1183 = vsel %vm1181, %v1178, %v1163
  %v1184 = vsel %vm1181, %v1179, %v1165
  %v1185 = vsel %vm1181, %v1180, %v1167
  %v1186 = vpack.c.bf16 %v1183, %v1182
  %v1187 = vpack.c.bf16 %v1185, %v1184
  %v1188 = vld [vmem:[%s2] sm:$0xf]
  %v1189 = vld [vmem:[%s2 + $0x4] sm:$0xf]
  %v1190 = vld [vmem:[%s2 + $0x8] sm:$0xf]
  %v1191 = vld [vmem:[%s2 + $0xc] sm:$0xf]
  %v1192 = vld [vmem:[%s2 + $0x10] sm:$0xf]
  %v1193 = vld [vmem:[%s2 + $0x14] sm:$0xf]
  %v1194 = vld [vmem:[%s2 + $0x18] sm:$0xf]
  %v1195 = vld [vmem:[%s2 + $0x1c] sm:$0xf]
  %v1196 = vld [vmem:[%s2 + $0x20] sm:$0xf]
  %v1197 = vld [vmem:[%s2 + $0x24] sm:$0xf]
  %v1198 = vld [vmem:[%s2 + $0x28] sm:$0xf]
  %v1199 = vld [vmem:[%s2 + $0x2c] sm:$0xf]
  %v1200 = vld [vmem:[%s2 + $0x30] sm:$0xf]
  %v1201 = vld [vmem:[%s2 + $0x34] sm:$0xf]
  %v1202 = vld [vmem:[%s2 + $0x38] sm:$0xf]
  %v1203 = vld [vmem:[%s2 + $0x3c] sm:$0xf]
  %v1220 = vunpack.c.l.b16 %v1188
  %v1221 = vunpack.c.l.b16 %v1189
  %v1222 = vunpack.c.l.b16 %v1190
  %v1223 = vunpack.c.l.b16 %v1191
  %v1224 = vunpack.c.l.b16 %v1192
  %v1225 = vunpack.c.l.b16 %v1193
  %v1226 = vunpack.c.l.b16 %v1194
  %v1227 = vunpack.c.l.b16 %v1195
  %v1228 = vunpack.c.l.b16 %v1196
  %v1229 = vunpack.c.l.b16 %v1197
  %v1230 = vunpack.c.l.b16 %v1198
  %v1231 = vunpack.c.l.b16 %v1199
  %v1232 = vunpack.c.l.b16 %v1200
  %v1233 = vunpack.c.l.b16 %v1201
  %v1234 = vunpack.c.l.b16 %v1202
  %v1235 = vunpack.c.l.b16 %v1203
  %v1236 = vpack.c.b16 %v1221, %v1220
  %v1237 = vpack.c.b16 %v1223, %v1222
  %v1238 = vpack.c.b16 %v1225, %v1224
  %v1239 = vpack.c.b16 %v1227, %v1226
  %v1240 = vpack.c.b16 %v1229, %v1228
  %v1241 = vpack.c.b16 %v1231, %v1230
  %v1242 = vpack.c.b16 %v1233, %v1232
  %v1243 = vpack.c.b16 %v1235, %v1234
  %1252 = vmatprep.subr.bf16.mxu0 0
  %1253 = vmatpush1.bf16.msra.mxu0 %v1236
  %1254 = vmatprep.subr.bf16.mxu0 0
  %1255 = vmatpush1.bf16.msra.mxu0 %v1237
  %1256 = vmatprep.subr.bf16.mxu0 0
  %1257 = vmatpush1.bf16.msra.mxu0 %v1238
  %1258 = vmatprep.subr.bf16.mxu0 0
  %1259 = vmatpush1.bf16.msra.mxu0 %v1239
  %1260 = vmatprep.subr.bf16.mxu0 0
  %1261 = vmatpush1.bf16.msra.mxu0 %v1240
  %1262 = vmatprep.subr.bf16.mxu0 0
  %1263 = vmatpush1.bf16.msra.mxu0 %v1241
  %1264 = vmatprep.subr.bf16.mxu0 0
  %1265 = vmatpush1.bf16.msra.mxu0 %v1242
  %1266 = vmatprep.subr.bf16.mxu0 0
  %1267 = vmatpush1.bf16.msra.mxu0 %v1243
  %1268 = vmatprep.subr.bf16.mxu0 0
  %1269 = vmatpush1.bf16.msra.mxu0 0
  %1270 = vmatprep.subr.bf16.mxu0 0
  %1271 = vmatpush1.bf16.msra.mxu0 0
  %1272 = vmatprep.subr.bf16.mxu0 0
  %1273 = vmatpush1.bf16.msra.mxu0 0
  %1274 = vmatprep.subr.bf16.mxu0 0
  %1275 = vmatpush1.bf16.msra.mxu0 0
  %1276 = vmatprep.subr.bf16.mxu0 0
  %1277 = vmatpush1.bf16.msra.mxu0 0
  %1278 = vmatprep.subr.bf16.mxu0 0
  %1279 = vmatpush1.bf16.msra.mxu0 0
  %1280 = vmatprep.subr.bf16.mxu0 0
  %1281 = vmatpush1.bf16.msra.mxu0 0
  %1282 = vmatprep.subr.bf16.mxu0 0
  %1283 = vmatpush1.bf16.msra.mxu0 0
  %1284 = vmatprep.mubr.bf16.mxu0 0
  %1285 = vmatmul.mubr.bf16.gmra.mrb[0].mxu0 %v1186
  %v1286 = vpop.f32.mrb[0].mxu0
  %v1287 = vadd.f32 0.0, %v1286
  %v1288 = vpop.f32.mrb[0].mxu0
  %v1289 = vpop.f32.mrb[0].mxu0
  %v1290 = vadd.f32 0.0, %v1289
  %v1291 = vpop.f32.mrb[0].mxu0
  %1292 = vmatprep.mubr.bf16.mxu0 0
  %1293 = vmatmul.mubr.bf16.gmra.mrb[0].mxu0 %v1187
  %v1294 = vpop.f32.mrb[0].mxu0
  %v1295 = vadd.f32 0.0, %v1294
  %v1296 = vpop.f32.mrb[0].mxu0
  %v1297 = vpop.f32.mrb[0].mxu0
  %v1298 = vadd.f32 0.0, %v1297
  %v1299 = vpop.f32.mrb[0].mxu0
  %1300 = vdwg.mxu0
  %v1301 = vadd.f32 %v39, %v1287
  %v1302 = vadd.f32 %v40, %v1290
  %v1303 = vadd.f32 %v41, %v1295
  %v1304 = vadd.f32 %v42, %v1298
  %v1305 = vld [vmem:[%s7] sm:$0x1]
  %v1306 = vld [vmem:[%s8] sm:$0x1]
  %v1307 = vsel %vm331, %v1301, 0.0
  %1308 = vadd.xlane.f32.xlu0 %v1307
  %v1309 = vpop.xlane.xlu0 %1308
  %v1310 = vsel %vm331, %v1302, 0.0
  %1311 = vadd.xlane.f32.xlu0 %v1310
  %v1312 = vpop.xlane.xlu0 %1311
  %v1313 = vsel %vm331, %v1303, 0.0
  %1314 = vadd.xlane.f32.xlu0 %v1313
  %v1315 = vpop.xlane.xlu0 %1314
  %v1316 = vsel %vm331, %v1304, 0.0
  %1317 = vadd.xlane.f32.xlu0 %v1316
  %v1318 = vpop.xlane.xlu0 %1317
  %v1319 = vrcp.pop 32.0
  %v1320 = vmul.f32 %v1309, %v1319
  %v1321 = vmul.f32 %v1312, %v1319
  %v1322 = vmul.f32 %v1315, %v1319
  %v1323 = vmul.f32 %v1318, %v1319
  %v1324 = vsub.f32 %v1301, %v1320
  %v1325 = vsub.f32 %v1302, %v1321
  %v1326 = vsub.f32 %v1303, %v1322
  %v1327 = vsub.f32 %v1304, %v1323
  %v1328 = vmul.f32 %v1324, %v1324
  %v1329 = vmul.f32 %v1325, %v1325
  %v1330 = vmul.f32 %v1326, %v1326
  %v1331 = vmul.f32 %v1327, %v1327
  %v1332 = vsel %vm331, %v1328, 0.0
  %1333 = vadd.xlane.f32.xlu0 %v1332
  %v1334 = vpop.xlane.xlu0 %1333
  %v1335 = vsel %vm331, %v1329, 0.0
  %1336 = vadd.xlane.f32.xlu0 %v1335
  %v1337 = vpop.xlane.xlu0 %1336
  %v1338 = vsel %vm331, %v1330, 0.0
  %1339 = vadd.xlane.f32.xlu0 %v1338
  %v1340 = vpop.xlane.xlu0 %1339
  %v1341 = vsel %vm331, %v1331, 0.0
  %1342 = vadd.xlane.f32.xlu0 %v1341
  %v1343 = vpop.xlane.xlu0 %1342
  %v1344 = vmul.f32 %v1334, %v1319
  %v1345 = vmul.f32 %v1337, %v1319
  %v1346 = vmul.f32 %v1340, %v1319
  %v1347 = vmul.f32 %v1343, %v1319
  %v1348 = vadd.f32 %v1344, 1e-05
  %v1349 = vadd.f32 %v1345, 1e-05
  %v1350 = vadd.f32 %v1346, 1e-05
  %v1351 = vadd.f32 %v1347, 1e-05
  %v1352 = vrsqrt.pop %v1348
  %v1353 = vrsqrt.pop %v1349
  %v1354 = vrsqrt.pop %v1350
  %v1355 = vrsqrt.pop %v1351
  %v1356 = vmul.f32 %v1324, %v1352
  %v1357 = vmul.f32 %v1325, %v1353
  %v1358 = vmul.f32 %v1326, %v1354
  %v1359 = vmul.f32 %v1327, %v1355
  %1364 = vrot.lane.b32.xlu0 %v1301, 96
  %v1365 = vpop.permute.xlu0 %1364
  %1366 = vrot.lane.b32.xlu0 %v1302, 96
  %v1367 = vpop.permute.xlu0 %1366
  %1368 = vrot.lane.b32.xlu0 %v1303, 96
  %v1369 = vpop.permute.xlu0 %1368
  %1370 = vrot.lane.b32.xlu0 %v1304, 96
  %v1371 = vpop.permute.xlu0 %1370
  %v1376 = vsel %vm331, %v1365, 0.0
  %1377 = vadd.xlane.f32.xlu0 %v1376
  %v1378 = vpop.xlane.xlu0 %1377
  %v1379 = vsel %vm331, %v1367, 0.0
  %1380 = vadd.xlane.f32.xlu0 %v1379
  %v1381 = vpop.xlane.xlu0 %1380
  %v1382 = vsel %vm331, %v1369, 0.0
  %1383 = vadd.xlane.f32.xlu0 %v1382
  %v1384 = vpop.xlane.xlu0 %1383
  %v1385 = vsel %vm331, %v1371, 0.0
  %1386 = vadd.xlane.f32.xlu0 %v1385
  %v1387 = vpop.xlane.xlu0 %1386
  %v1388 = vmul.f32 %v1378, %v1319
  %v1389 = vmul.f32 %v1381, %v1319
  %v1390 = vmul.f32 %v1384, %v1319
  %v1391 = vmul.f32 %v1387, %v1319
  %v1392 = vsub.f32 %v1301, %v1388
  %v1393 = vsub.f32 %v1302, %v1389
  %v1394 = vsub.f32 %v1303, %v1390
  %v1395 = vsub.f32 %v1304, %v1391
  %v1396 = vmul.f32 %v1392, %v1392
  %v1397 = vmul.f32 %v1393, %v1393
  %v1398 = vmul.f32 %v1394, %v1394
  %v1399 = vmul.f32 %v1395, %v1395
  %1404 = vrot.lane.b32.xlu0 %v1396, 96
  %v1405 = vpop.permute.xlu0 %1404
  %1406 = vrot.lane.b32.xlu0 %v1397, 96
  %v1407 = vpop.permute.xlu0 %1406
  %1408 = vrot.lane.b32.xlu0 %v1398, 96
  %v1409 = vpop.permute.xlu0 %1408
  %1410 = vrot.lane.b32.xlu0 %v1399, 96
  %v1411 = vpop.permute.xlu0 %1410
  %v1416 = vsel %vm331, %v1405, 0.0
  %1417 = vadd.xlane.f32.xlu0 %v1416
  %v1418 = vpop.xlane.xlu0 %1417
  %v1419 = vsel %vm331, %v1407, 0.0
  %1420 = vadd.xlane.f32.xlu0 %v1419
  %v1421 = vpop.xlane.xlu0 %1420
  %v1422 = vsel %vm331, %v1409, 0.0
  %1423 = vadd.xlane.f32.xlu0 %v1422
  %v1424 = vpop.xlane.xlu0 %1423
  %v1425 = vsel %vm331, %v1411, 0.0
  %1426 = vadd.xlane.f32.xlu0 %v1425
  %v1427 = vpop.xlane.xlu0 %1426
  %v1428 = vmul.f32 %v1418, %v1319
  %v1429 = vmul.f32 %v1421, %v1319
  %v1430 = vmul.f32 %v1424, %v1319
  %v1431 = vmul.f32 %v1427, %v1319
  %v1432 = vadd.f32 %v1428, 1e-05
  %v1433 = vadd.f32 %v1429, 1e-05
  %v1434 = vadd.f32 %v1430, 1e-05
  %v1435 = vadd.f32 %v1431, 1e-05
  %v1436 = vrsqrt.pop %v1432
  %v1437 = vrsqrt.pop %v1433
  %v1438 = vrsqrt.pop %v1434
  %v1439 = vrsqrt.pop %v1435
  %v1440 = vmul.f32 %v1392, %v1436
  %v1441 = vmul.f32 %v1393, %v1437
  %v1442 = vmul.f32 %v1394, %v1438
  %v1443 = vmul.f32 %v1395, %v1439
  %1444 = vrot.lane.b32.xlu0 %v1301, 64
  %v1445 = vpop.permute.xlu0 %1444
  %1446 = vrot.lane.b32.xlu0 %v1302, 64
  %v1447 = vpop.permute.xlu0 %1446
  %1448 = vrot.lane.b32.xlu0 %v1303, 64
  %v1449 = vpop.permute.xlu0 %1448
  %1450 = vrot.lane.b32.xlu0 %v1304, 64
  %v1451 = vpop.permute.xlu0 %1450
  %v1456 = vsel %vm331, %v1445, 0.0
  %1457 = vadd.xlane.f32.xlu0 %v1456
  %v1458 = vpop.xlane.xlu0 %1457
  %v1459 = vsel %vm331, %v1447, 0.0
  %1460 = vadd.xlane.f32.xlu0 %v1459
  %v1461 = vpop.xlane.xlu0 %1460
  %v1462 = vsel %vm331, %v1449, 0.0
  %1463 = vadd.xlane.f32.xlu0 %v1462
  %v1464 = vpop.xlane.xlu0 %1463
  %v1465 = vsel %vm331, %v1451, 0.0
  %1466 = vadd.xlane.f32.xlu0 %v1465
  %v1467 = vpop.xlane.xlu0 %1466
  %v1468 = vmul.f32 %v1458, %v1319
  %v1469 = vmul.f32 %v1461, %v1319
  %v1470 = vmul.f32 %v1464, %v1319
  %v1471 = vmul.f32 %v1467, %v1319
  %v1472 = vsub.f32 %v1301, %v1468
  %v1473 = vsub.f32 %v1302, %v1469
  %v1474 = vsub.f32 %v1303, %v1470
  %v1475 = vsub.f32 %v1304, %v1471
  %v1476 = vmul.f32 %v1472, %v1472
  %v1477 = vmul.f32 %v1473, %v1473
  %v1478 = vmul.f32 %v1474, %v1474
  %v1479 = vmul.f32 %v1475, %v1475
  %1484 = vrot.lane.b32.xlu0 %v1476, 64
  %v1485 = vpop.permute.xlu0 %1484
  %1486 = vrot.lane.b32.xlu0 %v1477, 64
  %v1487 = vpop.permute.xlu0 %1486
  %1488 = vrot.lane.b32.xlu0 %v1478, 64
  %v1489 = vpop.permute.xlu0 %1488
  %1490 = vrot.lane.b32.xlu0 %v1479, 64
  %v1491 = vpop.permute.xlu0 %1490
  %v1496 = vsel %vm331, %v1485, 0.0
  %1497 = vadd.xlane.f32.xlu0 %v1496
  %v1498 = vpop.xlane.xlu0 %1497
  %v1499 = vsel %vm331, %v1487, 0.0
  %1500 = vadd.xlane.f32.xlu0 %v1499
  %v1501 = vpop.xlane.xlu0 %1500
  %v1502 = vsel %vm331, %v1489, 0.0
  %1503 = vadd.xlane.f32.xlu0 %v1502
  %v1504 = vpop.xlane.xlu0 %1503
  %v1505 = vsel %vm331, %v1491, 0.0
  %1506 = vadd.xlane.f32.xlu0 %v1505
  %v1507 = vpop.xlane.xlu0 %1506
  %v1508 = vmul.f32 %v1498, %v1319
  %v1509 = vmul.f32 %v1501, %v1319
  %v1510 = vmul.f32 %v1504, %v1319
  %v1511 = vmul.f32 %v1507, %v1319
  %v1512 = vadd.f32 %v1508, 1e-05
  %v1513 = vadd.f32 %v1509, 1e-05
  %v1514 = vadd.f32 %v1510, 1e-05
  %v1515 = vadd.f32 %v1511, 1e-05
  %v1516 = vrsqrt.pop %v1512
  %v1517 = vrsqrt.pop %v1513
  %v1518 = vrsqrt.pop %v1514
  %v1519 = vrsqrt.pop %v1515
  %v1520 = vmul.f32 %v1472, %v1516
  %v1521 = vmul.f32 %v1473, %v1517
  %v1522 = vmul.f32 %v1474, %v1518
  %v1523 = vmul.f32 %v1475, %v1519
  %1524 = vrot.lane.b32.xlu0 %v1301, 32
  %v1525 = vpop.permute.xlu0 %1524
  %1526 = vrot.lane.b32.xlu0 %v1302, 32
  %v1527 = vpop.permute.xlu0 %1526
  %1528 = vrot.lane.b32.xlu0 %v1303, 32
  %v1529 = vpop.permute.xlu0 %1528
  %1530 = vrot.lane.b32.xlu0 %v1304, 32
  %v1531 = vpop.permute.xlu0 %1530
  %v1536 = vsel %vm331, %v1525, 0.0
  %1537 = vadd.xlane.f32.xlu0 %v1536
  %v1538 = vpop.xlane.xlu0 %1537
  %v1539 = vsel %vm331, %v1527, 0.0
  %1540 = vadd.xlane.f32.xlu0 %v1539
  %v1541 = vpop.xlane.xlu0 %1540
  %v1542 = vsel %vm331, %v1529, 0.0
  %1543 = vadd.xlane.f32.xlu0 %v1542
  %v1544 = vpop.xlane.xlu0 %1543
  %v1545 = vsel %vm331, %v1531, 0.0
  %1546 = vadd.xlane.f32.xlu0 %v1545
  %v1547 = vpop.xlane.xlu0 %1546
  %v1548 = vmul.f32 %v1538, %v1319
  %v1549 = vmul.f32 %v1541, %v1319
  %v1550 = vmul.f32 %v1544, %v1319
  %v1551 = vmul.f32 %v1547, %v1319
  %v1552 = vsub.f32 %v1301, %v1548
  %v1553 = vsub.f32 %v1302, %v1549
  %v1554 = vsub.f32 %v1303, %v1550
  %v1555 = vsub.f32 %v1304, %v1551
  %v1556 = vmul.f32 %v1552, %v1552
  %v1557 = vmul.f32 %v1553, %v1553
  %v1558 = vmul.f32 %v1554, %v1554
  %v1559 = vmul.f32 %v1555, %v1555
  %1564 = vrot.lane.b32.xlu0 %v1556, 32
  %v1565 = vpop.permute.xlu0 %1564
  %1566 = vrot.lane.b32.xlu0 %v1557, 32
  %v1567 = vpop.permute.xlu0 %1566
  %1568 = vrot.lane.b32.xlu0 %v1558, 32
  %v1569 = vpop.permute.xlu0 %1568
  %1570 = vrot.lane.b32.xlu0 %v1559, 32
  %v1571 = vpop.permute.xlu0 %1570
  %v1576 = vsel %vm331, %v1565, 0.0
  %1577 = vadd.xlane.f32.xlu0 %v1576
  %v1578 = vpop.xlane.xlu0 %1577
  %v1579 = vsel %vm331, %v1567, 0.0
  %1580 = vadd.xlane.f32.xlu0 %v1579
  %v1581 = vpop.xlane.xlu0 %1580
  %v1582 = vsel %vm331, %v1569, 0.0
  %1583 = vadd.xlane.f32.xlu0 %v1582
  %v1584 = vpop.xlane.xlu0 %1583
  %v1585 = vsel %vm331, %v1571, 0.0
  %1586 = vadd.xlane.f32.xlu0 %v1585
  %v1587 = vpop.xlane.xlu0 %1586
  %v1588 = vmul.f32 %v1578, %v1319
  %v1589 = vmul.f32 %v1581, %v1319
  %v1590 = vmul.f32 %v1584, %v1319
  %v1591 = vmul.f32 %v1587, %v1319
  %v1592 = vadd.f32 %v1588, 1e-05
  %v1593 = vadd.f32 %v1589, 1e-05
  %v1594 = vadd.f32 %v1590, 1e-05
  %v1595 = vadd.f32 %v1591, 1e-05
  %v1596 = vrsqrt.pop %v1592
  %v1597 = vrsqrt.pop %v1593
  %v1598 = vrsqrt.pop %v1594
  %v1599 = vrsqrt.pop %v1595
  %v1600 = vmul.f32 %v1552, %v1596
  %v1601 = vmul.f32 %v1553, %v1597
  %v1602 = vmul.f32 %v1554, %v1598
  %v1603 = vmul.f32 %v1555, %v1599
  %v1604 = vsel %vm331, %v1356, %v1440
  %v1605 = vsel %vm331, %v1357, %v1441
  %v1606 = vsel %vm331, %v1358, %v1442
  %v1607 = vsel %vm331, %v1359, %v1443
  %v1608 = vsel %vm1176, %v1604, %v1520
  %v1609 = vsel %vm1176, %v1605, %v1521
  %v1610 = vsel %vm1176, %v1606, %v1522
  %v1611 = vsel %vm1176, %v1607, %v1523
  %v1612 = vsel %vm1181, %v1608, %v1600
  %v1613 = vsel %vm1181, %v1609, %v1601
  %v1614 = vsel %vm1181, %v1610, %v1602
  %v1615 = vsel %vm1181, %v1611, %v1603
  %v1617 = vlaneseq
  %v1618 = vshrl.u32 %v1617, 7
  %v1619 = vsub.s32 0, %v1618
  %v1620 = vrot.slane %v1305, %v1619
  %v1622 = vmul.f32 %v1612, %v1620
  %v1623 = vmul.f32 %v1613, %v1620
  %v1624 = vmul.f32 %v1614, %v1620
  %v1625 = vmul.f32 %v1615, %v1620
  %v1627 = vlaneseq
  %v1628 = vshrl.u32 %v1627, 7
  %v1629 = vsub.s32 0, %v1628
  %v1630 = vrot.slane %v1306, %v1629
  %v1632 = vadd.f32 %v1622, %v1630
  %v1633 = vadd.f32 %v1623, %v1630
  %v1634 = vadd.f32 %v1624, %v1630
  %v1635 = vadd.f32 %v1625, %v1630
  %v1636 = vpack.c.bf16 %v1633, %v1632
  %v1637 = vpack.c.bf16 %v1635, %v1634
  %v1638 = vld [vmem:[%s3] sm:$0xff]
  %v1639 = vld [vmem:[%s3 + $0x8] sm:$0xff]
  %v1640 = vld [vmem:[%s3 + $0x10] sm:$0xff]
  %v1641 = vld [vmem:[%s3 + $0x18] sm:$0xff]
  %v1642 = vld [vmem:[%s3 + $0x20] sm:$0xff]
  %v1643 = vld [vmem:[%s3 + $0x28] sm:$0xff]
  %v1644 = vld [vmem:[%s3 + $0x30] sm:$0xff]
  %v1645 = vld [vmem:[%s3 + $0x38] sm:$0xff]
  %v1646 = vld [vmem:[%s3 + $0x40] sm:$0xff]
  %v1647 = vld [vmem:[%s3 + $0x48] sm:$0xff]
  %v1648 = vld [vmem:[%s3 + $0x50] sm:$0xff]
  %v1649 = vld [vmem:[%s3 + $0x58] sm:$0xff]
  %v1650 = vld [vmem:[%s3 + $0x60] sm:$0xff]
  %v1651 = vld [vmem:[%s3 + $0x68] sm:$0xff]
  %v1652 = vld [vmem:[%s3 + $0x70] sm:$0xff]
  %v1653 = vld [vmem:[%s3 + $0x78] sm:$0xff]
  %v1654 = vld [vmem:[%s4] sm:$0x3]
  %v1656 = vlaneseq
  %v1657 = vshrl.u32 %v1656, 7
  %v1658 = vsub.s32 0, %v1657
  %v1659 = vrot.slane %v1654, %v1658
  %v1660 = vlaneseq
  %v1661 = vshrl.u32 %v1660, 7
  %v1662 = vsub.s32 1, %v1661
  %v1663 = vrot.slane %v1654, %v1662
  %v1682 = vunpack.c.l.b16 %v1638
  %v1683 = vunpack.c.h.b16 %v1638
  %v1684 = vunpack.c.l.b16 %v1639
  %v1685 = vunpack.c.h.b16 %v1639
  %v1686 = vunpack.c.l.b16 %v1640
  %v1687 = vunpack.c.h.b16 %v1640
  %v1688 = vunpack.c.l.b16 %v1641
  %v1689 = vunpack.c.h.b16 %v1641
  %v1690 = vunpack.c.l.b16 %v1642
  %v1691 = vunpack.c.h.b16 %v1642
  %v1692 = vunpack.c.l.b16 %v1643
  %v1693 = vunpack.c.h.b16 %v1643
  %v1694 = vunpack.c.l.b16 %v1644
  %v1695 = vunpack.c.h.b16 %v1644
  %v1696 = vunpack.c.l.b16 %v1645
  %v1697 = vunpack.c.h.b16 %v1645
  %v1698 = vunpack.c.l.b16 %v1646
  %v1699 = vunpack.c.h.b16 %v1646
  %v1700 = vunpack.c.l.b16 %v1647
  %v1701 = vunpack.c.h.b16 %v1647
  %v1702 = vunpack.c.l.b16 %v1648
  %v1703 = vunpack.c.h.b16 %v1648
  %v1704 = vunpack.c.l.b16 %v1649
  %v1705 = vunpack.c.h.b16 %v1649
  %v1706 = vunpack.c.l.b16 %v1650
  %v1707 = vunpack.c.h.b16 %v1650
  %v1708 = vunpack.c.l.b16 %v1651
  %v1709 = vunpack.c.h.b16 %v1651
  %v1710 = vunpack.c.l.b16 %v1652
  %v1711 = vunpack.c.h.b16 %v1652
  %v1712 = vunpack.c.l.b16 %v1653
  %v1713 = vunpack.c.h.b16 %v1653
  %v1714 = vpack.c.b16 %v1684, %v1682
  %v1715 = vpack.c.b16 %v1685, %v1683
  %v1716 = vpack.c.b16 %v1688, %v1686
  %v1717 = vpack.c.b16 %v1689, %v1687
  %v1718 = vpack.c.b16 %v1692, %v1690
  %v1719 = vpack.c.b16 %v1693, %v1691
  %v1720 = vpack.c.b16 %v1696, %v1694
  %v1721 = vpack.c.b16 %v1697, %v1695
  %v1722 = vpack.c.b16 %v1700, %v1698
  %v1723 = vpack.c.b16 %v1701, %v1699
  %v1724 = vpack.c.b16 %v1704, %v1702
  %v1725 = vpack.c.b16 %v1705, %v1703
  %v1726 = vpack.c.b16 %v1708, %v1706
  %v1727 = vpack.c.b16 %v1709, %v1707
  %v1728 = vpack.c.b16 %v1712, %v1710
  %v1729 = vpack.c.b16 %v1713, %v1711
  %1746 = vmatprep.subr.bf16.mxu0 %v1715
  %1747 = vmatpush1.bf16.msra.mxu0 %v1714
  %1748 = vmatprep.subr.bf16.mxu0 %v1717
  %1749 = vmatpush1.bf16.msra.mxu0 %v1716
  %1750 = vmatprep.subr.bf16.mxu0 %v1719
  %1751 = vmatpush1.bf16.msra.mxu0 %v1718
  %1752 = vmatprep.subr.bf16.mxu0 %v1721
  %1753 = vmatpush1.bf16.msra.mxu0 %v1720
  %1754 = vmatprep.subr.bf16.mxu0 %v1723
  %1755 = vmatpush1.bf16.msra.mxu0 %v1722
  %1756 = vmatprep.subr.bf16.mxu0 %v1725
  %1757 = vmatpush1.bf16.msra.mxu0 %v1724
  %1758 = vmatprep.subr.bf16.mxu0 %v1727
  %1759 = vmatpush1.bf16.msra.mxu0 %v1726
  %1760 = vmatprep.subr.bf16.mxu0 %v1729
  %1761 = vmatpush1.bf16.msra.mxu0 %v1728
  %1762 = vmatprep.subr.bf16.mxu0 0
  %1763 = vmatpush1.bf16.msra.mxu0 0
  %1764 = vmatprep.subr.bf16.mxu0 0
  %1765 = vmatpush1.bf16.msra.mxu0 0
  %1766 = vmatprep.subr.bf16.mxu0 0
  %1767 = vmatpush1.bf16.msra.mxu0 0
  %1768 = vmatprep.subr.bf16.mxu0 0
  %1769 = vmatpush1.bf16.msra.mxu0 0
  %1770 = vmatprep.subr.bf16.mxu0 0
  %1771 = vmatpush1.bf16.msra.mxu0 0
  %1772 = vmatprep.subr.bf16.mxu0 0
  %1773 = vmatpush1.bf16.msra.mxu0 0
  %1774 = vmatprep.subr.bf16.mxu0 0
  %1775 = vmatpush1.bf16.msra.mxu0 0
  %1776 = vmatprep.subr.bf16.mxu0 0
  %1777 = vmatpush1.bf16.msra.mxu0 0
  %1778 = vmatprep.mubr.bf16.mxu0 0
  %1779 = vmatmul.mubr.bf16.gmra.mrb[0].mxu0 %v1636
  %v1780 = vpop.f32.mrb[0].mxu0
  %v1781 = vadd.f32 %v1659, %v1780
  %v1782 = vpop.f32.mrb[0].mxu0
  %v1783 = vadd.f32 %v1663, %v1782
  %v1784 = vpop.f32.mrb[0].mxu0
  %v1785 = vadd.f32 %v1659, %v1784
  %v1786 = vpop.f32.mrb[0].mxu0
  %v1787 = vadd.f32 %v1663, %v1786
  %1788 = vmatprep.mubr.bf16.mxu0 0
  %1789 = vmatmul.mubr.bf16.gmra.mrb[0].mxu0 %v1637
  %v1790 = vpop.f32.mrb[0].mxu0
  %v1791 = vadd.f32 %v1659, %v1790
  %v1792 = vpop.f32.mrb[0].mxu0
  %v1793 = vadd.f32 %v1663, %v1792
  %v1794 = vpop.f32.mrb[0].mxu0
  %v1795 = vadd.f32 %v1659, %v1794
  %v1796 = vpop.f32.mrb[0].mxu0
  %v1797 = vadd.f32 %v1663, %v1796
  %1798 = vdwg.mxu0
  %v1799 = vmul.f32 %v1781, %v1781
  %v1800 = vmul.f32 %v1783, %v1783
  %v1801 = vmul.f32 %v1785, %v1785
  %v1802 = vmul.f32 %v1787, %v1787
  %v1803 = vmul.f32 %v1791, %v1791
  %v1804 = vmul.f32 %v1793, %v1793
  %v1805 = vmul.f32 %v1795, %v1795
  %v1806 = vmul.f32 %v1797, %v1797
  %v1807 = vmul.f32 %v1781, %v1799
  %v1808 = vmul.f32 %v1783, %v1800
  %v1809 = vmul.f32 %v1785, %v1801
  %v1810 = vmul.f32 %v1787, %v1802
  %v1811 = vmul.f32 %v1791, %v1803
  %v1812 = vmul.f32 %v1793, %v1804
  %v1813 = vmul.f32 %v1795, %v1805
  %v1814 = vmul.f32 %v1797, %v1806
  %v1815 = vmul.f32 %v1807, 0.044715
  %v1816 = vmul.f32 %v1808, 0.044715
  %v1817 = vmul.f32 %v1809, 0.044715
  %v1818 = vmul.f32 %v1810, 0.044715
  %v1819 = vmul.f32 %v1811, 0.044715
  %v1820 = vmul.f32 %v1812, 0.044715
  %v1821 = vmul.f32 %v1813, 0.044715
  %v1822 = vmul.f32 %v1814, 0.044715
  %v1823 = vadd.f32 %v1781, %v1815
  %v1824 = vadd.f32 %v1783, %v1816
  %v1825 = vadd.f32 %v1785, %v1817
  %v1826 = vadd.f32 %v1787, %v1818
  %v1827 = vadd.f32 %v1791, %v1819
  %v1828 = vadd.f32 %v1793, %v1820
  %v1829 = vadd.f32 %v1795, %v1821
  %v1830 = vadd.f32 %v1797, %v1822
  %v1831 = vmul.f32 %v1823, 0.7978846
  %v1832 = vmul.f32 %v1824, 0.7978846
  %v1833 = vmul.f32 %v1825, 0.7978846
  %v1834 = vmul.f32 %v1826, 0.7978846
  %v1835 = vmul.f32 %v1827, 0.7978846
  %v1836 = vmul.f32 %v1828, 0.7978846
  %v1837 = vmul.f32 %v1829, 0.7978846
  %v1838 = vmul.f32 %v1830, 0.7978846
  %v1839 = vtanh.pop %v1831
  %v1840 = vtanh.pop %v1832
  %v1841 = vtanh.pop %v1833
  %v1842 = vtanh.pop %v1834
  %v1843 = vtanh.pop %v1835
  %v1844 = vtanh.pop %v1836
  %v1845 = vtanh.pop %v1837
  %v1846 = vtanh.pop %v1838
  %v1847 = vadd.f32 %v1839, 1.0
  %v1848 = vadd.f32 %v1840, 1.0
  %v1849 = vadd.f32 %v1841, 1.0
  %v1850 = vadd.f32 %v1842, 1.0
  %v1851 = vadd.f32 %v1843, 1.0
  %v1852 = vadd.f32 %v1844, 1.0
  %v1853 = vadd.f32 %v1845, 1.0
  %v1854 = vadd.f32 %v1846, 1.0
  %v1855 = vmul.f32 %v1847, 0.5
  %v1856 = vmul.f32 %v1848, 0.5
  %v1857 = vmul.f32 %v1849, 0.5
  %v1858 = vmul.f32 %v1850, 0.5
  %v1859 = vmul.f32 %v1851, 0.5
  %v1860 = vmul.f32 %v1852, 0.5
  %v1861 = vmul.f32 %v1853, 0.5
  %v1862 = vmul.f32 %v1854, 0.5
  %v1863 = vmul.f32 %v1781, %v1855
  %v1864 = vmul.f32 %v1783, %v1856
  %v1865 = vmul.f32 %v1785, %v1857
  %v1866 = vmul.f32 %v1787, %v1858
  %v1867 = vmul.f32 %v1791, %v1859
  %v1868 = vmul.f32 %v1793, %v1860
  %v1869 = vmul.f32 %v1795, %v1861
  %v1870 = vmul.f32 %v1797, %v1862
  %v1871 = vpack.c.bf16 %v1865, %v1863
  %v1872 = vpack.c.bf16 %v1866, %v1864
  %v1873 = vpack.c.bf16 %v1869, %v1867
  %v1874 = vpack.c.bf16 %v1870, %v1868
  %v1875 = vld [vmem:[%s5] sm:$0xf]
  %v1876 = vld [vmem:[%s5 + $0x4] sm:$0xf]
  %v1877 = vld [vmem:[%s5 + $0x8] sm:$0xf]
  %v1878 = vld [vmem:[%s5 + $0xc] sm:$0xf]
  %v1879 = vld [vmem:[%s5 + $0x10] sm:$0xf]
  %v1880 = vld [vmem:[%s5 + $0x14] sm:$0xf]
  %v1881 = vld [vmem:[%s5 + $0x18] sm:$0xf]
  %v1882 = vld [vmem:[%s5 + $0x1c] sm:$0xf]
  %v1883 = vld [vmem:[%s5 + $0x20] sm:$0xf]
  %v1884 = vld [vmem:[%s5 + $0x24] sm:$0xf]
  %v1885 = vld [vmem:[%s5 + $0x28] sm:$0xf]
  %v1886 = vld [vmem:[%s5 + $0x2c] sm:$0xf]
  %v1887 = vld [vmem:[%s5 + $0x30] sm:$0xf]
  %v1888 = vld [vmem:[%s5 + $0x34] sm:$0xf]
  %v1889 = vld [vmem:[%s5 + $0x38] sm:$0xf]
  %v1890 = vld [vmem:[%s5 + $0x3c] sm:$0xf]
  %v1891 = vld [vmem:[%s5 + $0x40] sm:$0xf]
  %v1892 = vld [vmem:[%s5 + $0x44] sm:$0xf]
  %v1893 = vld [vmem:[%s5 + $0x48] sm:$0xf]
  %v1894 = vld [vmem:[%s5 + $0x4c] sm:$0xf]
  %v1895 = vld [vmem:[%s5 + $0x50] sm:$0xf]
  %v1896 = vld [vmem:[%s5 + $0x54] sm:$0xf]
  %v1897 = vld [vmem:[%s5 + $0x58] sm:$0xf]
  %v1898 = vld [vmem:[%s5 + $0x5c] sm:$0xf]
  %v1899 = vld [vmem:[%s5 + $0x60] sm:$0xf]
  %v1900 = vld [vmem:[%s5 + $0x64] sm:$0xf]
  %v1901 = vld [vmem:[%s5 + $0x68] sm:$0xf]
  %v1902 = vld [vmem:[%s5 + $0x6c] sm:$0xf]
  %v1903 = vld [vmem:[%s5 + $0x70] sm:$0xf]
  %v1904 = vld [vmem:[%s5 + $0x74] sm:$0xf]
  %v1905 = vld [vmem:[%s5 + $0x78] sm:$0xf]
  %v1906 = vld [vmem:[%s5 + $0x7c] sm:$0xf]
  %v1907 = vld [vmem:[%s6] sm:$0x1]
  %v1909 = vlaneseq
  %v1910 = vshrl.u32 %v1909, 7
  %v1911 = vsub.s32 0, %v1910
  %v1912 = vrot.slane %v1907, %v1911
  %v1946 = vunpack.c.l.b16 %v1875
  %v1947 = vunpack.c.l.b16 %v1876
  %v1948 = vunpack.c.l.b16 %v1877
  %v1949 = vunpack.c.l.b16 %v1878
  %v1950 = vunpack.c.l.b16 %v1879
  %v1951 = vunpack.c.l.b16 %v1880
  %v1952 = vunpack.c.l.b16 %v1881
  %v1953 = vunpack.c.l.b16 %v1882
  %v1954 = vunpack.c.l.b16 %v1883
  %v1955 = vunpack.c.l.b16 %v1884
  %v1956 = vunpack.c.l.b16 %v1885
  %v1957 = vunpack.c.l.b16 %v1886
  %v1958 = vunpack.c.l.b16 %v1887
  %v1959 = vunpack.c.l.b16 %v1888
  %v1960 = vunpack.c.l.b16 %v1889
  %v1961 = vunpack.c.l.b16 %v1890
  %v1962 = vunpack.c.l.b16 %v1891
  %v1963 = vunpack.c.l.b16 %v1892
  %v1964 = vunpack.c.l.b16 %v1893
  %v1965 = vunpack.c.l.b16 %v1894
  %v1966 = vunpack.c.l.b16 %v1895
  %v1967 = vunpack.c.l.b16 %v1896
  %v1968 = vunpack.c.l.b16 %v1897
  %v1969 = vunpack.c.l.b16 %v1898
  %v1970 = vunpack.c.l.b16 %v1899
  %v1971 = vunpack.c.l.b16 %v1900
  %v1972 = vunpack.c.l.b16 %v1901
  %v1973 = vunpack.c.l.b16 %v1902
  %v1974 = vunpack.c.l.b16 %v1903
  %v1975 = vunpack.c.l.b16 %v1904
  %v1976 = vunpack.c.l.b16 %v1905
  %v1977 = vunpack.c.l.b16 %v1906
  %v1978 = vpack.c.b16 %v1947, %v1946
  %v1979 = vpack.c.b16 %v1949, %v1948
  %v1980 = vpack.c.b16 %v1951, %v1950
  %v1981 = vpack.c.b16 %v1953, %v1952
  %v1982 = vpack.c.b16 %v1955, %v1954
  %v1983 = vpack.c.b16 %v1957, %v1956
  %v1984 = vpack.c.b16 %v1959, %v1958
  %v1985 = vpack.c.b16 %v1961, %v1960
  %v1986 = vpack.c.b16 %v1963, %v1962
  %v1987 = vpack.c.b16 %v1965, %v1964
  %v1988 = vpack.c.b16 %v1967, %v1966
  %v1989 = vpack.c.b16 %v1969, %v1968
  %v1990 = vpack.c.b16 %v1971, %v1970
  %v1991 = vpack.c.b16 %v1973, %v1972
  %v1992 = vpack.c.b16 %v1975, %v1974
  %v1993 = vpack.c.b16 %v1977, %v1976
  %2010 = vmatprep.subr.bf16.mxu0 0
  %2011 = vmatpush1.bf16.msra.mxu0 %v1978
  %2012 = vmatprep.subr.bf16.mxu0 0
  %2013 = vmatpush1.bf16.msra.mxu0 %v1979
  %2014 = vmatprep.subr.bf16.mxu0 0
  %2015 = vmatpush1.bf16.msra.mxu0 %v1980
  %2016 = vmatprep.subr.bf16.mxu0 0
  %2017 = vmatpush1.bf16.msra.mxu0 %v1981
  %2018 = vmatprep.subr.bf16.mxu0 0
  %2019 = vmatpush1.bf16.msra.mxu0 %v1982
  %2020 = vmatprep.subr.bf16.mxu0 0
  %2021 = vmatpush1.bf16.msra.mxu0 %v1983
  %2022 = vmatprep.subr.bf16.mxu0 0
  %2023 = vmatpush1.bf16.msra.mxu0 %v1984
  %2024 = vmatprep.subr.bf16.mxu0 0
  %2025 = vmatpush1.bf16.msra.mxu0 %v1985
  %2026 = vmatprep.subr.bf16.mxu0 0
  %2027 = vmatpush1.bf16.msra.mxu0 %v1986
  %2028 = vmatprep.subr.bf16.mxu0 0
  %2029 = vmatpush1.bf16.msra.mxu0 %v1987
  %2030 = vmatprep.subr.bf16.mxu0 0
  %2031 = vmatpush1.bf16.msra.mxu0 %v1988
  %2032 = vmatprep.subr.bf16.mxu0 0
  %2033 = vmatpush1.bf16.msra.mxu0 %v1989
  %2034 = vmatprep.subr.bf16.mxu0 0
  %2035 = vmatpush1.bf16.msra.mxu0 %v1990
  %2036 = vmatprep.subr.bf16.mxu0 0
  %2037 = vmatpush1.bf16.msra.mxu0 %v1991
  %2038 = vmatprep.subr.bf16.mxu0 0
  %2039 = vmatpush1.bf16.msra.mxu0 %v1992
  %2040 = vmatprep.subr.bf16.mxu0 0
  %2041 = vmatpush1.bf16.msra.mxu0 %v1993
  %2042 = vmatprep.mubr.bf16.mxu0 %v1872
  %2043 = vmatmul.mubr.bf16.gmra.mrb[0].mxu0 %v1871
  %v2044 = vpop.f32.mrb[0].mxu0
  %v2045 = vadd.f32 %v1912, %v2044
  %v2046 = vpop.f32.mrb[0].mxu0
  %v2047 = vpop.f32.mrb[0].mxu0
  %v2048 = vadd.f32 %v1912, %v2047
  %v2049 = vpop.f32.mrb[0].mxu0
  %2050 = vmatprep.mubr.bf16.mxu0 %v1874
  %2051 = vmatmul.mubr.bf16.gmra.mrb[0].mxu0 %v1873
  %v2052 = vpop.f32.mrb[0].mxu0
  %v2053 = vadd.f32 %v1912, %v2052
  %v2054 = vpop.f32.mrb[0].mxu0
  %v2055 = vpop.f32.mrb[0].mxu0
  %v2056 = vadd.f32 %v1912, %v2055
  %v2057 = vpop.f32.mrb[0].mxu0
  %2058 = vdwg.mxu0
  %v2059 = vadd.f32 %v1632, %v2045
  %v2060 = vadd.f32 %v1633, %v2048
  %v2061 = vadd.f32 %v1634, %v2053
  %v2062 = vadd.f32 %v1635, %v2056
  %v2063 = vld [vmem:[%s9] sm:$0x1]
  %v2064 = vld [vmem:[%s10] sm:$0x1]
  %v2065 = vsel %vm331, %v2059, 0.0
  %2066 = vadd.xlane.f32.xlu0 %v2065
  %v2067 = vpop.xlane.xlu0 %2066
  %v2068 = vsel %vm331, %v2060, 0.0
  %2069 = vadd.xlane.f32.xlu0 %v2068
  %v2070 = vpop.xlane.xlu0 %2069
  %v2071 = vsel %vm331, %v2061, 0.0
  %2072 = vadd.xlane.f32.xlu0 %v2071
  %v2073 = vpop.xlane.xlu0 %2072
  %v2074 = vsel %vm331, %v2062, 0.0
  %2075 = vadd.xlane.f32.xlu0 %v2074
  %v2076 = vpop.xlane.xlu0 %2075
  %v2077 = vmul.f32 %v2067, %v1319
  %v2078 = vmul.f32 %v2070, %v1319
  %v2079 = vmul.f32 %v2073, %v1319
  %v2080 = vmul.f32 %v2076, %v1319
  %v2081 = vsub.f32 %v2059, %v2077
  %v2082 = vsub.f32 %v2060, %v2078
  %v2083 = vsub.f32 %v2061, %v2079
  %v2084 = vsub.f32 %v2062, %v2080
  %v2085 = vmul.f32 %v2081, %v2081
  %v2086 = vmul.f32 %v2082, %v2082
  %v2087 = vmul.f32 %v2083, %v2083
  %v2088 = vmul.f32 %v2084, %v2084
  %v2089 = vsel %vm331, %v2085, 0.0
  %2090 = vadd.xlane.f32.xlu0 %v2089
  %v2091 = vpop.xlane.xlu0 %2090
  %v2092 = vsel %vm331, %v2086, 0.0
  %2093 = vadd.xlane.f32.xlu0 %v2092
  %v2094 = vpop.xlane.xlu0 %2093
  %v2095 = vsel %vm331, %v2087, 0.0
  %2096 = vadd.xlane.f32.xlu0 %v2095
  %v2097 = vpop.xlane.xlu0 %2096
  %v2098 = vsel %vm331, %v2088, 0.0
  %2099 = vadd.xlane.f32.xlu0 %v2098
  %v2100 = vpop.xlane.xlu0 %2099
  %v2101 = vmul.f32 %v2091, %v1319
  %v2102 = vmul.f32 %v2094, %v1319
  %v2103 = vmul.f32 %v2097, %v1319
  %v2104 = vmul.f32 %v2100, %v1319
  %v2105 = vadd.f32 %v2101, 1e-05
  %v2106 = vadd.f32 %v2102, 1e-05
  %v2107 = vadd.f32 %v2103, 1e-05
  %v2108 = vadd.f32 %v2104, 1e-05
  %v2109 = vrsqrt.pop %v2105
  %v2110 = vrsqrt.pop %v2106
  %v2111 = vrsqrt.pop %v2107
  %v2112 = vrsqrt.pop %v2108
  %v2113 = vmul.f32 %v2081, %v2109
  %v2114 = vmul.f32 %v2082, %v2110
  %v2115 = vmul.f32 %v2083, %v2111
  %v2116 = vmul.f32 %v2084, %v2112
  %2121 = vrot.lane.b32.xlu0 %v2059, 96
  %v2122 = vpop.permute.xlu0 %2121
  %2123 = vrot.lane.b32.xlu0 %v2060, 96
  %v2124 = vpop.permute.xlu0 %2123
  %2125 = vrot.lane.b32.xlu0 %v2061, 96
  %v2126 = vpop.permute.xlu0 %2125
  %2127 = vrot.lane.b32.xlu0 %v2062, 96
  %v2128 = vpop.permute.xlu0 %2127
  %v2133 = vsel %vm331, %v2122, 0.0
  %2134 = vadd.xlane.f32.xlu0 %v2133
  %v2135 = vpop.xlane.xlu0 %2134
  %v2136 = vsel %vm331, %v2124, 0.0
  %2137 = vadd.xlane.f32.xlu0 %v2136
  %v2138 = vpop.xlane.xlu0 %2137
  %v2139 = vsel %vm331, %v2126, 0.0
  %2140 = vadd.xlane.f32.xlu0 %v2139
  %v2141 = vpop.xlane.xlu0 %2140
  %v2142 = vsel %vm331, %v2128, 0.0
  %2143 = vadd.xlane.f32.xlu0 %v2142
  %v2144 = vpop.xlane.xlu0 %2143
  %v2145 = vmul.f32 %v2135, %v1319
  %v2146 = vmul.f32 %v2138, %v1319
  %v2147 = vmul.f32 %v2141, %v1319
  %v2148 = vmul.f32 %v2144, %v1319
  %v2149 = vsub.f32 %v2059, %v2145
  %v2150 = vsub.f32 %v2060, %v2146
  %v2151 = vsub.f32 %v2061, %v2147
  %v2152 = vsub.f32 %v2062, %v2148
  %v2153 = vmul.f32 %v2149, %v2149
  %v2154 = vmul.f32 %v2150, %v2150
  %v2155 = vmul.f32 %v2151, %v2151
  %v2156 = vmul.f32 %v2152, %v2152
  %2161 = vrot.lane.b32.xlu0 %v2153, 96
  %v2162 = vpop.permute.xlu0 %2161
  %2163 = vrot.lane.b32.xlu0 %v2154, 96
  %v2164 = vpop.permute.xlu0 %2163
  %2165 = vrot.lane.b32.xlu0 %v2155, 96
  %v2166 = vpop.permute.xlu0 %2165
  %2167 = vrot.lane.b32.xlu0 %v2156, 96
  %v2168 = vpop.permute.xlu0 %2167
  %v2173 = vsel %vm331, %v2162, 0.0
  %2174 = vadd.xlane.f32.xlu0 %v2173
  %v2175 = vpop.xlane.xlu0 %2174
  %v2176 = vsel %vm331, %v2164, 0.0
  %2177 = vadd.xlane.f32.xlu0 %v2176
  %v2178 = vpop.xlane.xlu0 %2177
  %v2179 = vsel %vm331, %v2166, 0.0
  %2180 = vadd.xlane.f32.xlu0 %v2179
  %v2181 = vpop.xlane.xlu0 %2180
  %v2182 = vsel %vm331, %v2168, 0.0
  %2183 = vadd.xlane.f32.xlu0 %v2182
  %v2184 = vpop.xlane.xlu0 %2183
  %v2185 = vmul.f32 %v2175, %v1319
  %v2186 = vmul.f32 %v2178, %v1319
  %v2187 = vmul.f32 %v2181, %v1319
  %v2188 = vmul.f32 %v2184, %v1319
  %v2189 = vadd.f32 %v2185, 1e-05
  %v2190 = vadd.f32 %v2186, 1e-05
  %v2191 = vadd.f32 %v2187, 1e-05
  %v2192 = vadd.f32 %v2188, 1e-05
  %v2193 = vrsqrt.pop %v2189
  %v2194 = vrsqrt.pop %v2190
  %v2195 = vrsqrt.pop %v2191
  %v2196 = vrsqrt.pop %v2192
  %v2197 = vmul.f32 %v2149, %v2193
  %v2198 = vmul.f32 %v2150, %v2194
  %v2199 = vmul.f32 %v2151, %v2195
  %v2200 = vmul.f32 %v2152, %v2196
  %2201 = vrot.lane.b32.xlu0 %v2059, 64
  %v2202 = vpop.permute.xlu0 %2201
  %2203 = vrot.lane.b32.xlu0 %v2060, 64
  %v2204 = vpop.permute.xlu0 %2203
  %2205 = vrot.lane.b32.xlu0 %v2061, 64
  %v2206 = vpop.permute.xlu0 %2205
  %2207 = vrot.lane.b32.xlu0 %v2062, 64
  %v2208 = vpop.permute.xlu0 %2207
  %v2213 = vsel %vm331, %v2202, 0.0
  %2214 = vadd.xlane.f32.xlu0 %v2213
  %v2215 = vpop.xlane.xlu0 %2214
  %v2216 = vsel %vm331, %v2204, 0.0
  %2217 = vadd.xlane.f32.xlu0 %v2216
  %v2218 = vpop.xlane.xlu0 %2217
  %v2219 = vsel %vm331, %v2206, 0.0
  %2220 = vadd.xlane.f32.xlu0 %v2219
  %v2221 = vpop.xlane.xlu0 %2220
  %v2222 = vsel %vm331, %v2208, 0.0
  %2223 = vadd.xlane.f32.xlu0 %v2222
  %v2224 = vpop.xlane.xlu0 %2223
  %v2225 = vmul.f32 %v2215, %v1319
  %v2226 = vmul.f32 %v2218, %v1319
  %v2227 = vmul.f32 %v2221, %v1319
  %v2228 = vmul.f32 %v2224, %v1319
  %v2229 = vsub.f32 %v2059, %v2225
  %v2230 = vsub.f32 %v2060, %v2226
  %v2231 = vsub.f32 %v2061, %v2227
  %v2232 = vsub.f32 %v2062, %v2228
  %v2233 = vmul.f32 %v2229, %v2229
  %v2234 = vmul.f32 %v2230, %v2230
  %v2235 = vmul.f32 %v2231, %v2231
  %v2236 = vmul.f32 %v2232, %v2232
  %2241 = vrot.lane.b32.xlu0 %v2233, 64
  %v2242 = vpop.permute.xlu0 %2241
  %2243 = vrot.lane.b32.xlu0 %v2234, 64
  %v2244 = vpop.permute.xlu0 %2243
  %2245 = vrot.lane.b32.xlu0 %v2235, 64
  %v2246 = vpop.permute.xlu0 %2245
  %2247 = vrot.lane.b32.xlu0 %v2236, 64
  %v2248 = vpop.permute.xlu0 %2247
  %v2253 = vsel %vm331, %v2242, 0.0
  %2254 = vadd.xlane.f32.xlu0 %v2253
  %v2255 = vpop.xlane.xlu0 %2254
  %v2256 = vsel %vm331, %v2244, 0.0
  %2257 = vadd.xlane.f32.xlu0 %v2256
  %v2258 = vpop.xlane.xlu0 %2257
  %v2259 = vsel %vm331, %v2246, 0.0
  %2260 = vadd.xlane.f32.xlu0 %v2259
  %v2261 = vpop.xlane.xlu0 %2260
  %v2262 = vsel %vm331, %v2248, 0.0
  %2263 = vadd.xlane.f32.xlu0 %v2262
  %v2264 = vpop.xlane.xlu0 %2263
  %v2265 = vmul.f32 %v2255, %v1319
  %v2266 = vmul.f32 %v2258, %v1319
  %v2267 = vmul.f32 %v2261, %v1319
  %v2268 = vmul.f32 %v2264, %v1319
  %v2269 = vadd.f32 %v2265, 1e-05
  %v2270 = vadd.f32 %v2266, 1e-05
  %v2271 = vadd.f32 %v2267, 1e-05
  %v2272 = vadd.f32 %v2268, 1e-05
  %v2273 = vrsqrt.pop %v2269
  %v2274 = vrsqrt.pop %v2270
  %v2275 = vrsqrt.pop %v2271
  %v2276 = vrsqrt.pop %v2272
  %v2277 = vmul.f32 %v2229, %v2273
  %v2278 = vmul.f32 %v2230, %v2274
  %v2279 = vmul.f32 %v2231, %v2275
  %v2280 = vmul.f32 %v2232, %v2276
  %2281 = vrot.lane.b32.xlu0 %v2059, 32
  %v2282 = vpop.permute.xlu0 %2281
  %2283 = vrot.lane.b32.xlu0 %v2060, 32
  %v2284 = vpop.permute.xlu0 %2283
  %2285 = vrot.lane.b32.xlu0 %v2061, 32
  %v2286 = vpop.permute.xlu0 %2285
  %2287 = vrot.lane.b32.xlu0 %v2062, 32
  %v2288 = vpop.permute.xlu0 %2287
  %v2293 = vsel %vm331, %v2282, 0.0
  %2294 = vadd.xlane.f32.xlu0 %v2293
  %v2295 = vpop.xlane.xlu0 %2294
  %v2296 = vsel %vm331, %v2284, 0.0
  %2297 = vadd.xlane.f32.xlu0 %v2296
  %v2298 = vpop.xlane.xlu0 %2297
  %v2299 = vsel %vm331, %v2286, 0.0
  %2300 = vadd.xlane.f32.xlu0 %v2299
  %v2301 = vpop.xlane.xlu0 %2300
  %v2302 = vsel %vm331, %v2288, 0.0
  %2303 = vadd.xlane.f32.xlu0 %v2302
  %v2304 = vpop.xlane.xlu0 %2303
  %v2305 = vmul.f32 %v2295, %v1319
  %v2306 = vmul.f32 %v2298, %v1319
  %v2307 = vmul.f32 %v2301, %v1319
  %v2308 = vmul.f32 %v2304, %v1319
  %v2309 = vsub.f32 %v2059, %v2305
  %v2310 = vsub.f32 %v2060, %v2306
  %v2311 = vsub.f32 %v2061, %v2307
  %v2312 = vsub.f32 %v2062, %v2308
  %v2313 = vmul.f32 %v2309, %v2309
  %v2314 = vmul.f32 %v2310, %v2310
  %v2315 = vmul.f32 %v2311, %v2311
  %v2316 = vmul.f32 %v2312, %v2312
  %2321 = vrot.lane.b32.xlu0 %v2313, 32
  %v2322 = vpop.permute.xlu0 %2321
  %2323 = vrot.lane.b32.xlu0 %v2314, 32
  %v2324 = vpop.permute.xlu0 %2323
  %2325 = vrot.lane.b32.xlu0 %v2315, 32
  %v2326 = vpop.permute.xlu0 %2325
  %2327 = vrot.lane.b32.xlu0 %v2316, 32
  %v2328 = vpop.permute.xlu0 %2327
  %v2333 = vsel %vm331, %v2322, 0.0
  %2334 = vadd.xlane.f32.xlu0 %v2333
  %v2335 = vpop.xlane.xlu0 %2334
  %v2336 = vsel %vm331, %v2324, 0.0
  %2337 = vadd.xlane.f32.xlu0 %v2336
  %v2338 = vpop.xlane.xlu0 %2337
  %v2339 = vsel %vm331, %v2326, 0.0
  %2340 = vadd.xlane.f32.xlu0 %v2339
  %v2341 = vpop.xlane.xlu0 %2340
  %v2342 = vsel %vm331, %v2328, 0.0
  %2343 = vadd.xlane.f32.xlu0 %v2342
  %v2344 = vpop.xlane.xlu0 %2343
  %v2345 = vmul.f32 %v2335, %v1319
  %v2346 = vmul.f32 %v2338, %v1319
  %v2347 = vmul.f32 %v2341, %v1319
  %v2348 = vmul.f32 %v2344, %v1319
  %v2349 = vadd.f32 %v2345, 1e-05
  %v2350 = vadd.f32 %v2346, 1e-05
  %v2351 = vadd.f32 %v2347, 1e-05
  %v2352 = vadd.f32 %v2348, 1e-05
  %v2353 = vrsqrt.pop %v2349
  %v2354 = vrsqrt.pop %v2350
  %v2355 = vrsqrt.pop %v2351
  %v2356 = vrsqrt.pop %v2352
  %v2357 = vmul.f32 %v2309, %v2353
  %v2358 = vmul.f32 %v2310, %v2354
  %v2359 = vmul.f32 %v2311, %v2355
  %v2360 = vmul.f32 %v2312, %v2356
  %v2361 = vsel %vm331, %v2113, %v2197
  %v2362 = vsel %vm331, %v2114, %v2198
  %v2363 = vsel %vm331, %v2115, %v2199
  %v2364 = vsel %vm331, %v2116, %v2200
  %v2365 = vsel %vm1176, %v2361, %v2277
  %v2366 = vsel %vm1176, %v2362, %v2278
  %v2367 = vsel %vm1176, %v2363, %v2279
  %v2368 = vsel %vm1176, %v2364, %v2280
  %v2369 = vsel %vm1181, %v2365, %v2357
  %v2370 = vsel %vm1181, %v2366, %v2358
  %v2371 = vsel %vm1181, %v2367, %v2359
  %v2372 = vsel %vm1181, %v2368, %v2360
  %v2374 = vlaneseq
  %v2375 = vshrl.u32 %v2374, 7
  %v2376 = vsub.s32 0, %v2375
  %v2377 = vrot.slane %v2063, %v2376
  %v2379 = vmul.f32 %v2369, %v2377
  %v2380 = vmul.f32 %v2370, %v2377
  %v2381 = vmul.f32 %v2371, %v2377
  %v2382 = vmul.f32 %v2372, %v2377
  %v2384 = vlaneseq
  %v2385 = vshrl.u32 %v2384, 7
  %v2386 = vsub.s32 0, %v2385
  %v2387 = vrot.slane %v2064, %v2386
  %v2389 = vadd.f32 %v2379, %v2387
  %v2390 = vadd.f32 %v2380, %v2387
  %v2391 = vadd.f32 %v2381, %v2387
  %v2392 = vadd.f32 %v2382, %v2387
  %2393 = vst [vmem:[%s11] sm:$0xff] %v2389
  %2394 = vst [vmem:[%s11 + $0x8] sm:$0xff] %v2390
  %2395 = vst [vmem:[%s11 + $0x10] sm:$0xff] %v2391
  %2396 = vst [vmem:[%s11 + $0x18] sm:$0xff] %v2392
  %v2397 = vpack.c.bf16 %v2390, %v2389
  %v2398 = vpack.c.bf16 %v2392, %v2391
  %s2399 = scalar_lea.vmem %s1, 192
  %v2400 = vld [vmem:[%s2399] sm:$0xff]
  %v2401 = vld [vmem:[%s2399 + $0x8] sm:$0xf]
  %v2402 = vld [vmem:[%s2399 + $0xc] sm:$0xff]
  %v2403 = vld [vmem:[%s2399 + $0x14] sm:$0xf]
  %v2404 = vld [vmem:[%s2399 + $0x18] sm:$0xff]
  %v2405 = vld [vmem:[%s2399 + $0x20] sm:$0xf]
  %v2406 = vld [vmem:[%s2399 + $0x24] sm:$0xff]
  %v2407 = vld [vmem:[%s2399 + $0x2c] sm:$0xf]
  %v2408 = vld [vmem:[%s2399 + $0x30] sm:$0xff]
  %v2409 = vld [vmem:[%s2399 + $0x38] sm:$0xf]
  %v2410 = vld [vmem:[%s2399 + $0x3c] sm:$0xff]
  %v2411 = vld [vmem:[%s2399 + $0x44] sm:$0xf]
  %v2412 = vld [vmem:[%s2399 + $0x48] sm:$0xff]
  %v2413 = vld [vmem:[%s2399 + $0x50] sm:$0xf]
  %v2414 = vld [vmem:[%s2399 + $0x54] sm:$0xff]
  %v2415 = vld [vmem:[%s2399 + $0x5c] sm:$0xf]
  %v2416 = vld [vmem:[%s2399 + $0x60] sm:$0xff]
  %v2417 = vld [vmem:[%s2399 + $0x68] sm:$0xf]
  %v2418 = vld [vmem:[%s2399 + $0x6c] sm:$0xff]
  %v2419 = vld [vmem:[%s2399 + $0x74] sm:$0xf]
  %v2420 = vld [vmem:[%s2399 + $0x78] sm:$0xff]
  %v2421 = vld [vmem:[%s2399 + $0x80] sm:$0xf]
  %v2422 = vld [vmem:[%s2399 + $0x84] sm:$0xff]
  %v2423 = vld [vmem:[%s2399 + $0x8c] sm:$0xf]
  %v2424 = vld [vmem:[%s2399 + $0x90] sm:$0xff]
  %v2425 = vld [vmem:[%s2399 + $0x98] sm:$0xf]
  %v2426 = vld [vmem:[%s2399 + $0x9c] sm:$0xff]
  %v2427 = vld [vmem:[%s2399 + $0xa4] sm:$0xf]
  %v2428 = vld [vmem:[%s2399 + $0xa8] sm:$0xff]
  %v2429 = vld [vmem:[%s2399 + $0xb0] sm:$0xf]
  %v2430 = vld [vmem:[%s2399 + $0xb4] sm:$0xff]
  %v2431 = vld [vmem:[%s2399 + $0xbc] sm:$0xf]
  %v2464 = vunpack.c.l.b16 %v2400
  %v2465 = vunpack.c.h.b16 %v2400
  %v2466 = vunpack.c.l.b16 %v2401
  %v2467 = vunpack.c.l.b16 %v2402
  %v2468 = vunpack.c.h.b16 %v2402
  %v2469 = vunpack.c.l.b16 %v2403
  %v2470 = vunpack.c.l.b16 %v2404
  %v2471 = vunpack.c.h.b16 %v2404
  %v2472 = vunpack.c.l.b16 %v2405
  %v2473 = vunpack.c.l.b16 %v2406
  %v2474 = vunpack.c.h.b16 %v2406
  %v2475 = vunpack.c.l.b16 %v2407
  %v2476 = vunpack.c.l.b16 %v2408
  %v2477 = vunpack.c.h.b16 %v2408
  %v2478 = vunpack.c.l.b16 %v2409
  %v2479 = vunpack.c.l.b16 %v2410
  %v2480 = vunpack.c.h.b16 %v2410
  %v2481 = vunpack.c.l.b16 %v2411
  %v2482 = vunpack.c.l.b16 %v2412
  %v2483 = vunpack.c.h.b16 %v2412
  %v2484 = vunpack.c.l.b16 %v2413
  %v2485 = vunpack.c.l.b16 %v2414
  %v2486 = vunpack.c.h.b16 %v2414
  %v2487 = vunpack.c.l.b16 %v2415
  %v2488 = vunpack.c.l.b16 %v2416
  %v2489 = vunpack.c.h.b16 %v2416
  %v2490 = vunpack.c.l.b16 %v2417
  %v2491 = vunpack.c.l.b16 %v2418
  %v2492 = vunpack.c.h.b16 %v2418
  %v2493 = vunpack.c.l.b16 %v2419
  %v2494 = vunpack.c.l.b16 %v2420
  %v2495 = vunpack.c.h.b16 %v2420
  %v2496 = vunpack.c.l.b16 %v2421
  %v2497 = vunpack.c.l.b16 %v2422
  %v2498 = vunpack.c.h.b16 %v2422
  %v2499 = vunpack.c.l.b16 %v2423
  %v2500 = vunpack.c.l.b16 %v2424
  %v2501 = vunpack.c.h.b16 %v2424
  %v2502 = vunpack.c.l.b16 %v2425
  %v2503 = vunpack.c.l.b16 %v2426
  %v2504 = vunpack.c.h.b16 %v2426
  %v2505 = vunpack.c.l.b16 %v2427
  %v2506 = vunpack.c.l.b16 %v2428
  %v2507 = vunpack.c.h.b16 %v2428
  %v2508 = vunpack.c.l.b16 %v2429
  %v2509 = vunpack.c.l.b16 %v2430
  %v2510 = vunpack.c.h.b16 %v2430
  %v2511 = vunpack.c.l.b16 %v2431
  %v2512 = vpack.c.b16 %v2467, %v2464
  %v2513 = vpack.c.b16 %v2468, %v2465
  %v2514 = vpack.c.b16 %v2469, %v2466
  %v2515 = vpack.c.b16 %v2473, %v2470
  %v2516 = vpack.c.b16 %v2474, %v2471
  %v2517 = vpack.c.b16 %v2475, %v2472
  %v2518 = vpack.c.b16 %v2479, %v2476
  %v2519 = vpack.c.b16 %v2480, %v2477
  %v2520 = vpack.c.b16 %v2481, %v2478
  %v2521 = vpack.c.b16 %v2485, %v2482
  %v2522 = vpack.c.b16 %v2486, %v2483
  %v2523 = vpack.c.b16 %v2487, %v2484
  %v2524 = vpack.c.b16 %v2491, %v2488
  %v2525 = vpack.c.b16 %v2492, %v2489
  %v2526 = vpack.c.b16 %v2493, %v2490
  %v2527 = vpack.c.b16 %v2497, %v2494
  %v2528 = vpack.c.b16 %v2498, %v2495
  %v2529 = vpack.c.b16 %v2499, %v2496
  %v2530 = vpack.c.b16 %v2503, %v2500
  %v2531 = vpack.c.b16 %v2504, %v2501
  %v2532 = vpack.c.b16 %v2505, %v2502
  %v2533 = vpack.c.b16 %v2509, %v2506
  %v2534 = vpack.c.b16 %v2510, %v2507
  %v2535 = vpack.c.b16 %v2511, %v2508
  %2560 = vmatprep.subr.bf16.mxu0 %v2513
  %2561 = vmatpush1.bf16.msra.mxu0 %v2512
  %2562 = vmatprep.subr.bf16.mxu0 %v2516
  %2563 = vmatpush1.bf16.msra.mxu0 %v2515
  %2564 = vmatprep.subr.bf16.mxu0 %v2519
  %2565 = vmatpush1.bf16.msra.mxu0 %v2518
  %2566 = vmatprep.subr.bf16.mxu0 %v2522
  %2567 = vmatpush1.bf16.msra.mxu0 %v2521
  %2568 = vmatprep.subr.bf16.mxu0 %v2525
  %2569 = vmatpush1.bf16.msra.mxu0 %v2524
  %2570 = vmatprep.subr.bf16.mxu0 %v2528
  %2571 = vmatpush1.bf16.msra.mxu0 %v2527
  %2572 = vmatprep.subr.bf16.mxu0 %v2531
  %2573 = vmatpush1.bf16.msra.mxu0 %v2530
  %2574 = vmatprep.subr.bf16.mxu0 %v2534
  %2575 = vmatpush1.bf16.msra.mxu0 %v2533
  %2576 = vmatprep.subr.bf16.mxu0 0
  %2577 = vmatpush1.bf16.msra.mxu0 0
  %2578 = vmatprep.subr.bf16.mxu0 0
  %2579 = vmatpush1.bf16.msra.mxu0 0
  %2580 = vmatprep.subr.bf16.mxu0 0
  %2581 = vmatpush1.bf16.msra.mxu0 0
  %2582 = vmatprep.subr.bf16.mxu0 0
  %2583 = vmatpush1.bf16.msra.mxu0 0
  %2584 = vmatprep.subr.bf16.mxu0 0
  %2585 = vmatpush1.bf16.msra.mxu0 0
  %2586 = vmatprep.subr.bf16.mxu0 0
  %2587 = vmatpush1.bf16.msra.mxu0 0
  %2588 = vmatprep.subr.bf16.mxu0 0
  %2589 = vmatpush1.bf16.msra.mxu0 0
  %2590 = vmatprep.subr.bf16.mxu0 0
  %2591 = vmatpush1.bf16.msra.mxu0 0
  %2592 = vmatprep.mubr.bf16.mxu0 0
  %2593 = vmatmul.mubr.bf16.gmra.mrb[0].mxu0 %v2397
  %v2594 = vpop.f32.mrb[0].mxu0
  %v2595 = vadd.f32 0.0, %v2594
  %v2596 = vpop.f32.mrb[0].mxu0
  %v2597 = vadd.f32 0.0, %v2596
  %v2598 = vpop.f32.mrb[0].mxu0
  %v2599 = vadd.f32 0.0, %v2598
  %v2600 = vpop.f32.mrb[0].mxu0
  %v2601 = vadd.f32 0.0, %v2600
  %2602 = vmatprep.mubr.bf16.mxu0 0
  %2603 = vmatmul.mubr.bf16.gmra.mrb[0].mxu0 %v2398
  %v2604 = vpop.f32.mrb[0].mxu0
  %v2605 = vadd.f32 0.0, %v2604
  %v2606 = vpop.f32.mrb[0].mxu0
  %v2607 = vadd.f32 0.0, %v2606
  %v2608 = vpop.f32.mrb[0].mxu0
  %v2609 = vadd.f32 0.0, %v2608
  %v2610 = vpop.f32.mrb[0].mxu0
  %v2611 = vadd.f32 0.0, %v2610
  %2612 = vdwg.mxu0
  %2613 = vmatprep.subr.bf16.mxu0 0
  %2614 = vmatpush1.bf16.msra.mxu0 %v2514
  %2615 = vmatprep.subr.bf16.mxu0 0
  %2616 = vmatpush1.bf16.msra.mxu0 %v2517
  %2617 = vmatprep.subr.bf16.mxu0 0
  %2618 = vmatpush1.bf16.msra.mxu0 %v2520
  %2619 = vmatprep.subr.bf16.mxu0 0
  %2620 = vmatpush1.bf16.msra.mxu0 %v2523
  %2621 = vmatprep.subr.bf16.mxu0 0
  %2622 = vmatpush1.bf16.msra.mxu0 %v2526
  %2623 = vmatprep.subr.bf16.mxu0 0
  %2624 = vmatpush1.bf16.msra.mxu0 %v2529
  %2625 = vmatprep.subr.bf16.mxu0 0
  %2626 = vmatpush1.bf16.msra.mxu0 %v2532
  %2627 = vmatprep.subr.bf16.mxu0 0
  %2628 = vmatpush1.bf16.msra.mxu0 %v2535
  %2629 = vmatprep.subr.bf16.mxu0 0
  %2630 = vmatpush1.bf16.msra.mxu0 0
  %2631 = vmatprep.subr.bf16.mxu0 0
  %2632 = vmatpush1.bf16.msra.mxu0 0
  %2633 = vmatprep.subr.bf16.mxu0 0
  %2634 = vmatpush1.bf16.msra.mxu0 0
  %2635 = vmatprep.subr.bf16.mxu0 0
  %2636 = vmatpush1.bf16.msra.mxu0 0
  %2637 = vmatprep.subr.bf16.mxu0 0
  %2638 = vmatpush1.bf16.msra.mxu0 0
  %2639 = vmatprep.subr.bf16.mxu0 0
  %2640 = vmatpush1.bf16.msra.mxu0 0
  %2641 = vmatprep.subr.bf16.mxu0 0
  %2642 = vmatpush1.bf16.msra.mxu0 0
  %2643 = vmatprep.subr.bf16.mxu0 0
  %2644 = vmatpush1.bf16.msra.mxu0 0
  %2645 = vmatprep.mubr.bf16.mxu0 0
  %2646 = vmatmul.mubr.bf16.gmra.mrb[0].mxu0 %v2397
  %v2647 = vpop.f32.mrb[0].mxu0
  %v2648 = vadd.f32 0.0, %v2647
  %v2649 = vpop.f32.mrb[0].mxu0
  %v2650 = vpop.f32.mrb[0].mxu0
  %v2651 = vadd.f32 0.0, %v2650
  %v2652 = vpop.f32.mrb[0].mxu0
  %2653 = vmatprep.mubr.bf16.mxu0 0
  %2654 = vmatmul.mubr.bf16.gmra.mrb[0].mxu0 %v2398
  %v2655 = vpop.f32.mrb[0].mxu0
  %v2656 = vadd.f32 0.0, %v2655
  %v2657 = vpop.f32.mrb[0].mxu0
  %v2658 = vpop.f32.mrb[0].mxu0
  %v2659 = vadd.f32 0.0, %v2658
  %v2660 = vpop.f32.mrb[0].mxu0
  %2661 = vdwg.mxu0
  %v2662 = vmul.f32 %v2595, 0.17677669
  %v2663 = vmul.f32 %v2599, 0.17677669
  %v2664 = vmul.f32 %v2605, 0.17677669
  %v2665 = vmul.f32 %v2609, 0.17677669
  %2670 = vrot.lane.b32.xlu0 %v2597, 96
  %v2671 = vpop.permute.xlu0 %2670
  %2672 = vrot.lane.b32.xlu0 %v2601, 96
  %v2673 = vpop.permute.xlu0 %2672
  %2674 = vrot.lane.b32.xlu0 %v2607, 96
  %v2675 = vpop.permute.xlu0 %2674
  %2676 = vrot.lane.b32.xlu0 %v2611, 96
  %v2677 = vpop.permute.xlu0 %2676
  %v2682 = vmul.f32 %v2662, %v2671
  %v2683 = vmul.f32 %v2663, %v2673
  %v2684 = vmul.f32 %v2664, %v2675
  %v2685 = vmul.f32 %v2665, %v2677
  %v2686 = vsel %vm331, %v2682, 0.0
  %2687 = vadd.xlane.f32.xlu0 %v2686
  %v2688 = vpop.xlane.xlu0 %2687
  %v2689 = vsel %vm331, %v2683, 0.0
  %2690 = vadd.xlane.f32.xlu0 %v2689
  %v2691 = vpop.xlane.xlu0 %2690
  %v2692 = vsel %vm331, %v2684, 0.0
  %2693 = vadd.xlane.f32.xlu0 %v2692
  %v2694 = vpop.xlane.xlu0 %2693
  %v2695 = vsel %vm331, %v2685, 0.0
  %2696 = vadd.xlane.f32.xlu0 %v2695
  %v2697 = vpop.xlane.xlu0 %2696
  %2698 = vrot.lane.b32.xlu0 %v2597, 64
  %v2699 = vpop.permute.xlu0 %2698
  %2700 = vrot.lane.b32.xlu0 %v2601, 64
  %v2701 = vpop.permute.xlu0 %2700
  %2702 = vrot.lane.b32.xlu0 %v2607, 64
  %v2703 = vpop.permute.xlu0 %2702
  %2704 = vrot.lane.b32.xlu0 %v2611, 64
  %v2705 = vpop.permute.xlu0 %2704
  %v2710 = vmul.f32 %v2662, %v2699
  %v2711 = vmul.f32 %v2663, %v2701
  %v2712 = vmul.f32 %v2664, %v2703
  %v2713 = vmul.f32 %v2665, %v2705
  %v2714 = vsel %vm331, %v2710, 0.0
  %2715 = vadd.xlane.f32.xlu0 %v2714
  %v2716 = vpop.xlane.xlu0 %2715
  %v2717 = vsel %vm331, %v2711, 0.0
  %2718 = vadd.xlane.f32.xlu0 %v2717
  %v2719 = vpop.xlane.xlu0 %2718
  %v2720 = vsel %vm331, %v2712, 0.0
  %2721 = vadd.xlane.f32.xlu0 %v2720
  %v2722 = vpop.xlane.xlu0 %2721
  %v2723 = vsel %vm331, %v2713, 0.0
  %2724 = vadd.xlane.f32.xlu0 %v2723
  %v2725 = vpop.xlane.xlu0 %2724
  %2726 = vrot.lane.b32.xlu0 %v2597, 32
  %v2727 = vpop.permute.xlu0 %2726
  %2728 = vrot.lane.b32.xlu0 %v2601, 32
  %v2729 = vpop.permute.xlu0 %2728
  %2730 = vrot.lane.b32.xlu0 %v2607, 32
  %v2731 = vpop.permute.xlu0 %2730
  %2732 = vrot.lane.b32.xlu0 %v2611, 32
  %v2733 = vpop.permute.xlu0 %2732
  %v2738 = vmul.f32 %v2662, %v2727
  %v2739 = vmul.f32 %v2663, %v2729
  %v2740 = vmul.f32 %v2664, %v2731
  %v2741 = vmul.f32 %v2665, %v2733
  %v2742 = vsel %vm331, %v2738, 0.0
  %2743 = vadd.xlane.f32.xlu0 %v2742
  %v2744 = vpop.xlane.xlu0 %2743
  %v2745 = vsel %vm331, %v2739, 0.0
  %2746 = vadd.xlane.f32.xlu0 %v2745
  %v2747 = vpop.xlane.xlu0 %2746
  %v2748 = vsel %vm331, %v2740, 0.0
  %2749 = vadd.xlane.f32.xlu0 %v2748
  %v2750 = vpop.xlane.xlu0 %2749
  %v2751 = vsel %vm331, %v2741, 0.0
  %2752 = vadd.xlane.f32.xlu0 %v2751
  %v2753 = vpop.xlane.xlu0 %2752
  %v2754 = vmax.f32 %v2688, %v2716
  %v2755 = vmax.f32 %v2691, %v2719
  %v2756 = vmax.f32 %v2694, %v2722
  %v2757 = vmax.f32 %v2697, %v2725
  %v2758 = vmax.f32 %v2754, %v2744
  %v2759 = vmax.f32 %v2755, %v2747
  %v2760 = vmax.f32 %v2756, %v2750
  %v2761 = vmax.f32 %v2757, %v2753
  %v2762 = vsub.f32 %v2688, %v2758
  %v2763 = vsub.f32 %v2691, %v2759
  %v2764 = vsub.f32 %v2694, %v2760
  %v2765 = vsub.f32 %v2697, %v2761
  %v2766 = vmul.f32 %v2762, 1.442695
  %v2767 = vpow.pop %v2766
  %v2768 = vmul.f32 %v2763, 1.442695
  %v2769 = vpow.pop %v2768
  %v2770 = vmul.f32 %v2764, 1.442695
  %v2771 = vpow.pop %v2770
  %v2772 = vmul.f32 %v2765, 1.442695
  %v2773 = vpow.pop %v2772
  %v2774 = vsub.f32 %v2716, %v2758
  %v2775 = vsub.f32 %v2719, %v2759
  %v2776 = vsub.f32 %v2722, %v2760
  %v2777 = vsub.f32 %v2725, %v2761
  %v2778 = vmul.f32 %v2774, 1.442695
  %v2779 = vpow.pop %v2778
  %v2780 = vmul.f32 %v2775, 1.442695
  %v2781 = vpow.pop %v2780
  %v2782 = vmul.f32 %v2776, 1.442695
  %v2783 = vpow.pop %v2782
  %v2784 = vmul.f32 %v2777, 1.442695
  %v2785 = vpow.pop %v2784
  %v2786 = vsub.f32 %v2744, %v2758
  %v2787 = vsub.f32 %v2747, %v2759
  %v2788 = vsub.f32 %v2750, %v2760
  %v2789 = vsub.f32 %v2753, %v2761
  %v2790 = vmul.f32 %v2786, 1.442695
  %v2791 = vpow.pop %v2790
  %v2792 = vmul.f32 %v2787, 1.442695
  %v2793 = vpow.pop %v2792
  %v2794 = vmul.f32 %v2788, 1.442695
  %v2795 = vpow.pop %v2794
  %v2796 = vmul.f32 %v2789, 1.442695
  %v2797 = vpow.pop %v2796
  %v2798 = vadd.f32 %v2767, %v2779
  %v2799 = vadd.f32 %v2769, %v2781
  %v2800 = vadd.f32 %v2771, %v2783
  %v2801 = vadd.f32 %v2773, %v2785
  %v2802 = vadd.f32 %v2798, %v2791
  %v2803 = vadd.f32 %v2799, %v2793
  %v2804 = vadd.f32 %v2800, %v2795
  %v2805 = vadd.f32 %v2801, %v2797
  %v2806 = vrcp.pop %v2802
  %v2807 = vrcp.pop %v2803
  %v2808 = vrcp.pop %v2804
  %v2809 = vrcp.pop %v2805
  %v2810 = vmul.f32 %v2767, %v2806
  %v2811 = vmul.f32 %v2769, %v2807
  %v2812 = vmul.f32 %v2771, %v2808
  %v2813 = vmul.f32 %v2773, %v2809
  %v2814 = vmul.f32 %v2810, %v2648
  %v2815 = vmul.f32 %v2811, %v2651
  %v2816 = vmul.f32 %v2812, %v2656
  %v2817 = vmul.f32 %v2813, %v2659
  %v2818 = vmul.f32 %v2779, %v2806
  %v2819 = vmul.f32 %v2781, %v2807
  %v2820 = vmul.f32 %v2783, %v2808
  %v2821 = vmul.f32 %v2785, %v2809
  %v2822 = vmul.f32 %v2818, %v2648
  %v2823 = vmul.f32 %v2819, %v2651
  %v2824 = vmul.f32 %v2820, %v2656
  %v2825 = vmul.f32 %v2821, %v2659
  %2830 = vrot.lane.b32.xlu0 %v2822, 96
  %v2831 = vpop.permute.xlu0 %2830
  %2832 = vrot.lane.b32.xlu0 %v2823, 96
  %v2833 = vpop.permute.xlu0 %2832
  %2834 = vrot.lane.b32.xlu0 %v2824, 96
  %v2835 = vpop.permute.xlu0 %2834
  %2836 = vrot.lane.b32.xlu0 %v2825, 96
  %v2837 = vpop.permute.xlu0 %2836
  %v2842 = vadd.f32 %v2814, %v2831
  %v2843 = vadd.f32 %v2815, %v2833
  %v2844 = vadd.f32 %v2816, %v2835
  %v2845 = vadd.f32 %v2817, %v2837
  %v2846 = vmul.f32 %v2791, %v2806
  %v2847 = vmul.f32 %v2793, %v2807
  %v2848 = vmul.f32 %v2795, %v2808
  %v2849 = vmul.f32 %v2797, %v2809
  %v2850 = vmul.f32 %v2846, %v2648
  %v2851 = vmul.f32 %v2847, %v2651
  %v2852 = vmul.f32 %v2848, %v2656
  %v2853 = vmul.f32 %v2849, %v2659
  %2858 = vrot.lane.b32.xlu0 %v2850, 64
  %v2859 = vpop.permute.xlu0 %2858
  %2860 = vrot.lane.b32.xlu0 %v2851, 64
  %v2861 = vpop.permute.xlu0 %2860
  %2862 = vrot.lane.b32.xlu0 %v2852, 64
  %v2863 = vpop.permute.xlu0 %2862
  %2864 = vrot.lane.b32.xlu0 %v2853, 64
  %v2865 = vpop.permute.xlu0 %2864
  %v2870 = vadd.f32 %v2842, %v2859
  %v2871 = vadd.f32 %v2843, %v2861
  %v2872 = vadd.f32 %v2844, %v2863
  %v2873 = vadd.f32 %v2845, %v2865
  %2878 = vrot.lane.b32.xlu0 %v2738, 96
  %v2879 = vpop.permute.xlu0 %2878
  %2880 = vrot.lane.b32.xlu0 %v2739, 96
  %v2881 = vpop.permute.xlu0 %2880
  %2882 = vrot.lane.b32.xlu0 %v2740, 96
  %v2883 = vpop.permute.xlu0 %2882
  %2884 = vrot.lane.b32.xlu0 %v2741, 96
  %v2885 = vpop.permute.xlu0 %2884
  %v2890 = vsel %vm331, %v2879, 0.0
  %2891 = vadd.xlane.f32.xlu0 %v2890
  %v2892 = vpop.xlane.xlu0 %2891
  %v2893 = vsel %vm331, %v2881, 0.0
  %2894 = vadd.xlane.f32.xlu0 %v2893
  %v2895 = vpop.xlane.xlu0 %2894
  %v2896 = vsel %vm331, %v2883, 0.0
  %2897 = vadd.xlane.f32.xlu0 %v2896
  %v2898 = vpop.xlane.xlu0 %2897
  %v2899 = vsel %vm331, %v2885, 0.0
  %2900 = vadd.xlane.f32.xlu0 %v2899
  %v2901 = vpop.xlane.xlu0 %2900
  %2906 = vrot.lane.b32.xlu0 %v2682, 96
  %v2907 = vpop.permute.xlu0 %2906
  %2908 = vrot.lane.b32.xlu0 %v2683, 96
  %v2909 = vpop.permute.xlu0 %2908
  %2910 = vrot.lane.b32.xlu0 %v2684, 96
  %v2911 = vpop.permute.xlu0 %2910
  %2912 = vrot.lane.b32.xlu0 %v2685, 96
  %v2913 = vpop.permute.xlu0 %2912
  %v2918 = vsel %vm331, %v2907, 0.0
  %2919 = vadd.xlane.f32.xlu0 %v2918
  %v2920 = vpop.xlane.xlu0 %2919
  %v2921 = vsel %vm331, %v2909, 0.0
  %2922 = vadd.xlane.f32.xlu0 %v2921
  %v2923 = vpop.xlane.xlu0 %2922
  %v2924 = vsel %vm331, %v2911, 0.0
  %2925 = vadd.xlane.f32.xlu0 %v2924
  %v2926 = vpop.xlane.xlu0 %2925
  %v2927 = vsel %vm331, %v2913, 0.0
  %2928 = vadd.xlane.f32.xlu0 %v2927
  %v2929 = vpop.xlane.xlu0 %2928
  %2934 = vrot.lane.b32.xlu0 %v2710, 96
  %v2935 = vpop.permute.xlu0 %2934
  %2936 = vrot.lane.b32.xlu0 %v2711, 96
  %v2937 = vpop.permute.xlu0 %2936
  %2938 = vrot.lane.b32.xlu0 %v2712, 96
  %v2939 = vpop.permute.xlu0 %2938
  %2940 = vrot.lane.b32.xlu0 %v2713, 96
  %v2941 = vpop.permute.xlu0 %2940
  %v2946 = vsel %vm331, %v2935, 0.0
  %2947 = vadd.xlane.f32.xlu0 %v2946
  %v2948 = vpop.xlane.xlu0 %2947
  %v2949 = vsel %vm331, %v2937, 0.0
  %2950 = vadd.xlane.f32.xlu0 %v2949
  %v2951 = vpop.xlane.xlu0 %2950
  %v2952 = vsel %vm331, %v2939, 0.0
  %2953 = vadd.xlane.f32.xlu0 %v2952
  %v2954 = vpop.xlane.xlu0 %2953
  %v2955 = vsel %vm331, %v2941, 0.0
  %2956 = vadd.xlane.f32.xlu0 %v2955
  %v2957 = vpop.xlane.xlu0 %2956
  %v2958 = vmax.f32 %v2892, %v2920
  %v2959 = vmax.f32 %v2895, %v2923
  %v2960 = vmax.f32 %v2898, %v2926
  %v2961 = vmax.f32 %v2901, %v2929
  %v2962 = vmax.f32 %v2958, %v2948
  %v2963 = vmax.f32 %v2959, %v2951
  %v2964 = vmax.f32 %v2960, %v2954
  %v2965 = vmax.f32 %v2961, %v2957
  %v2966 = vsub.f32 %v2892, %v2962
  %v2967 = vsub.f32 %v2895, %v2963
  %v2968 = vsub.f32 %v2898, %v2964
  %v2969 = vsub.f32 %v2901, %v2965
  %v2970 = vmul.f32 %v2966, 1.442695
  %v2971 = vpow.pop %v2970
  %v2972 = vmul.f32 %v2967, 1.442695
  %v2973 = vpow.pop %v2972
  %v2974 = vmul.f32 %v2968, 1.442695
  %v2975 = vpow.pop %v2974
  %v2976 = vmul.f32 %v2969, 1.442695
  %v2977 = vpow.pop %v2976
  %v2978 = vsub.f32 %v2920, %v2962
  %v2979 = vsub.f32 %v2923, %v2963
  %v2980 = vsub.f32 %v2926, %v2964
  %v2981 = vsub.f32 %v2929, %v2965
  %v2982 = vmul.f32 %v2978, 1.442695
  %v2983 = vpow.pop %v2982
  %v2984 = vmul.f32 %v2979, 1.442695
  %v2985 = vpow.pop %v2984
  %v2986 = vmul.f32 %v2980, 1.442695
  %v2987 = vpow.pop %v2986
  %v2988 = vmul.f32 %v2981, 1.442695
  %v2989 = vpow.pop %v2988
  %v2990 = vsub.f32 %v2948, %v2962
  %v2991 = vsub.f32 %v2951, %v2963
  %v2992 = vsub.f32 %v2954, %v2964
  %v2993 = vsub.f32 %v2957, %v2965
  %v2994 = vmul.f32 %v2990, 1.442695
  %v2995 = vpow.pop %v2994
  %v2996 = vmul.f32 %v2991, 1.442695
  %v2997 = vpow.pop %v2996
  %v2998 = vmul.f32 %v2992, 1.442695
  %v2999 = vpow.pop %v2998
  %v3000 = vmul.f32 %v2993, 1.442695
  %v3001 = vpow.pop %v3000
  %v3002 = vadd.f32 %v2971, %v2983
  %v3003 = vadd.f32 %v2973, %v2985
  %v3004 = vadd.f32 %v2975, %v2987
  %v3005 = vadd.f32 %v2977, %v2989
  %v3006 = vadd.f32 %v3002, %v2995
  %v3007 = vadd.f32 %v3003, %v2997
  %v3008 = vadd.f32 %v3004, %v2999
  %v3009 = vadd.f32 %v3005, %v3001
  %v3010 = vrcp.pop %v3006
  %v3011 = vrcp.pop %v3007
  %v3012 = vrcp.pop %v3008
  %v3013 = vrcp.pop %v3009
  %v3014 = vmul.f32 %v2971, %v3010
  %v3015 = vmul.f32 %v2973, %v3011
  %v3016 = vmul.f32 %v2975, %v3012
  %v3017 = vmul.f32 %v2977, %v3013
  %v3018 = vmul.f32 %v3014, %v2648
  %v3019 = vmul.f32 %v3015, %v2651
  %v3020 = vmul.f32 %v3016, %v2656
  %v3021 = vmul.f32 %v3017, %v2659
  %v3022 = vmul.f32 %v2983, %v3010
  %v3023 = vmul.f32 %v2985, %v3011
  %v3024 = vmul.f32 %v2987, %v3012
  %v3025 = vmul.f32 %v2989, %v3013
  %v3026 = vmul.f32 %v3022, %v2648
  %v3027 = vmul.f32 %v3023, %v2651
  %v3028 = vmul.f32 %v3024, %v2656
  %v3029 = vmul.f32 %v3025, %v2659
  %3034 = vrot.lane.b32.xlu0 %v3026, 64
  %v3035 = vpop.permute.xlu0 %3034
  %3036 = vrot.lane.b32.xlu0 %v3027, 64
  %v3037 = vpop.permute.xlu0 %3036
  %3038 = vrot.lane.b32.xlu0 %v3028, 64
  %v3039 = vpop.permute.xlu0 %3038
  %3040 = vrot.lane.b32.xlu0 %v3029, 64
  %v3041 = vpop.permute.xlu0 %3040
  %v3046 = vadd.f32 %v3018, %v3035
  %v3047 = vadd.f32 %v3019, %v3037
  %v3048 = vadd.f32 %v3020, %v3039
  %v3049 = vadd.f32 %v3021, %v3041
  %v3050 = vmul.f32 %v2995, %v3010
  %v3051 = vmul.f32 %v2997, %v3011
  %v3052 = vmul.f32 %v2999, %v3012
  %v3053 = vmul.f32 %v3001, %v3013
  %v3054 = vmul.f32 %v3050, %v2648
  %v3055 = vmul.f32 %v3051, %v2651
  %v3056 = vmul.f32 %v3052, %v2656
  %v3057 = vmul.f32 %v3053, %v2659
  %3062 = vrot.lane.b32.xlu0 %v3054, 32
  %v3063 = vpop.permute.xlu0 %3062
  %3064 = vrot.lane.b32.xlu0 %v3055, 32
  %v3065 = vpop.permute.xlu0 %3064
  %3066 = vrot.lane.b32.xlu0 %v3056, 32
  %v3067 = vpop.permute.xlu0 %3066
  %3068 = vrot.lane.b32.xlu0 %v3057, 32
  %v3069 = vpop.permute.xlu0 %3068
  %v3074 = vadd.f32 %v3046, %v3063
  %v3075 = vadd.f32 %v3047, %v3065
  %v3076 = vadd.f32 %v3048, %v3067
  %v3077 = vadd.f32 %v3049, %v3069
  %3078 = vrot.lane.b32.xlu0 %v2710, 64
  %v3079 = vpop.permute.xlu0 %3078
  %3080 = vrot.lane.b32.xlu0 %v2711, 64
  %v3081 = vpop.permute.xlu0 %3080
  %3082 = vrot.lane.b32.xlu0 %v2712, 64
  %v3083 = vpop.permute.xlu0 %3082
  %3084 = vrot.lane.b32.xlu0 %v2713, 64
  %v3085 = vpop.permute.xlu0 %3084
  %v3090 = vsel %vm331, %v3079, 0.0
  %3091 = vadd.xlane.f32.xlu0 %v3090
  %v3092 = vpop.xlane.xlu0 %3091
  %v3093 = vsel %vm331, %v3081, 0.0
  %3094 = vadd.xlane.f32.xlu0 %v3093
  %v3095 = vpop.xlane.xlu0 %3094
  %v3096 = vsel %vm331, %v3083, 0.0
  %3097 = vadd.xlane.f32.xlu0 %v3096
  %v3098 = vpop.xlane.xlu0 %3097
  %v3099 = vsel %vm331, %v3085, 0.0
  %3100 = vadd.xlane.f32.xlu0 %v3099
  %v3101 = vpop.xlane.xlu0 %3100
  %3102 = vrot.lane.b32.xlu0 %v2738, 64
  %v3103 = vpop.permute.xlu0 %3102
  %3104 = vrot.lane.b32.xlu0 %v2739, 64
  %v3105 = vpop.permute.xlu0 %3104
  %3106 = vrot.lane.b32.xlu0 %v2740, 64
  %v3107 = vpop.permute.xlu0 %3106
  %3108 = vrot.lane.b32.xlu0 %v2741, 64
  %v3109 = vpop.permute.xlu0 %3108
  %v3114 = vsel %vm331, %v3103, 0.0
  %3115 = vadd.xlane.f32.xlu0 %v3114
  %v3116 = vpop.xlane.xlu0 %3115
  %v3117 = vsel %vm331, %v3105, 0.0
  %3118 = vadd.xlane.f32.xlu0 %v3117
  %v3119 = vpop.xlane.xlu0 %3118
  %v3120 = vsel %vm331, %v3107, 0.0
  %3121 = vadd.xlane.f32.xlu0 %v3120
  %v3122 = vpop.xlane.xlu0 %3121
  %v3123 = vsel %vm331, %v3109, 0.0
  %3124 = vadd.xlane.f32.xlu0 %v3123
  %v3125 = vpop.xlane.xlu0 %3124
  %3126 = vrot.lane.b32.xlu0 %v2682, 64
  %v3127 = vpop.permute.xlu0 %3126
  %3128 = vrot.lane.b32.xlu0 %v2683, 64
  %v3129 = vpop.permute.xlu0 %3128
  %3130 = vrot.lane.b32.xlu0 %v2684, 64
  %v3131 = vpop.permute.xlu0 %3130
  %3132 = vrot.lane.b32.xlu0 %v2685, 64
  %v3133 = vpop.permute.xlu0 %3132
  %v3138 = vsel %vm331, %v3127, 0.0
  %3139 = vadd.xlane.f32.xlu0 %v3138
  %v3140 = vpop.xlane.xlu0 %3139
  %v3141 = vsel %vm331, %v3129, 0.0
  %3142 = vadd.xlane.f32.xlu0 %v3141
  %v3143 = vpop.xlane.xlu0 %3142
  %v3144 = vsel %vm331, %v3131, 0.0
  %3145 = vadd.xlane.f32.xlu0 %v3144
  %v3146 = vpop.xlane.xlu0 %3145
  %v3147 = vsel %vm331, %v3133, 0.0
  %3148 = vadd.xlane.f32.xlu0 %v3147
  %v3149 = vpop.xlane.xlu0 %3148
  %v3150 = vmax.f32 %v3092, %v3116
  %v3151 = vmax.f32 %v3095, %v3119
  %v3152 = vmax.f32 %v3098, %v3122
  %v3153 = vmax.f32 %v3101, %v3125
  %v3154 = vmax.f32 %v3150, %v3140
  %v3155 = vmax.f32 %v3151, %v3143
  %v3156 = vmax.f32 %v3152, %v3146
  %v3157 = vmax.f32 %v3153, %v3149
  %v3158 = vsub.f32 %v3092, %v3154
  %v3159 = vsub.f32 %v3095, %v3155
  %v3160 = vsub.f32 %v3098, %v3156
  %v3161 = vsub.f32 %v3101, %v3157
  %v3162 = vmul.f32 %v3158, 1.442695
  %v3163 = vpow.pop %v3162
  %v3164 = vmul.f32 %v3159, 1.442695
  %v3165 = vpow.pop %v3164
  %v3166 = vmul.f32 %v3160, 1.442695
  %v3167 = vpow.pop %v3166
  %v3168 = vmul.f32 %v3161, 1.442695
  %v3169 = vpow.pop %v3168
  %v3170 = vsub.f32 %v3116, %v3154
  %v3171 = vsub.f32 %v3119, %v3155
  %v3172 = vsub.f32 %v3122, %v3156
  %v3173 = vsub.f32 %v3125, %v3157
  %v3174 = vmul.f32 %v3170, 1.442695
  %v3175 = vpow.pop %v3174
  %v3176 = vmul.f32 %v3171, 1.442695
  %v3177 = vpow.pop %v3176
  %v3178 = vmul.f32 %v3172, 1.442695
  %v3179 = vpow.pop %v3178
  %v3180 = vmul.f32 %v3173, 1.442695
  %v3181 = vpow.pop %v3180
  %v3182 = vsub.f32 %v3140, %v3154
  %v3183 = vsub.f32 %v3143, %v3155
  %v3184 = vsub.f32 %v3146, %v3156
  %v3185 = vsub.f32 %v3149, %v3157
  %v3186 = vmul.f32 %v3182, 1.442695
  %v3187 = vpow.pop %v3186
  %v3188 = vmul.f32 %v3183, 1.442695
  %v3189 = vpow.pop %v3188
  %v3190 = vmul.f32 %v3184, 1.442695
  %v3191 = vpow.pop %v3190
  %v3192 = vmul.f32 %v3185, 1.442695
  %v3193 = vpow.pop %v3192
  %v3194 = vadd.f32 %v3163, %v3175
  %v3195 = vadd.f32 %v3165, %v3177
  %v3196 = vadd.f32 %v3167, %v3179
  %v3197 = vadd.f32 %v3169, %v3181
  %v3198 = vadd.f32 %v3194, %v3187
  %v3199 = vadd.f32 %v3195, %v3189
  %v3200 = vadd.f32 %v3196, %v3191
  %v3201 = vadd.f32 %v3197, %v3193
  %v3202 = vrcp.pop %v3198
  %v3203 = vrcp.pop %v3199
  %v3204 = vrcp.pop %v3200
  %v3205 = vrcp.pop %v3201
  %v3206 = vmul.f32 %v3163, %v3202
  %v3207 = vmul.f32 %v3165, %v3203
  %v3208 = vmul.f32 %v3167, %v3204
  %v3209 = vmul.f32 %v3169, %v3205
  %v3210 = vmul.f32 %v3206, %v2648
  %v3211 = vmul.f32 %v3207, %v2651
  %v3212 = vmul.f32 %v3208, %v2656
  %v3213 = vmul.f32 %v3209, %v2659
  %v3214 = vmul.f32 %v3175, %v3202
  %v3215 = vmul.f32 %v3177, %v3203
  %v3216 = vmul.f32 %v3179, %v3204
  %v3217 = vmul.f32 %v3181, %v3205
  %v3218 = vmul.f32 %v3214, %v2648
  %v3219 = vmul.f32 %v3215, %v2651
  %v3220 = vmul.f32 %v3216, %v2656
  %v3221 = vmul.f32 %v3217, %v2659
  %3226 = vrot.lane.b32.xlu0 %v3218, 96
  %v3227 = vpop.permute.xlu0 %3226
  %3228 = vrot.lane.b32.xlu0 %v3219, 96
  %v3229 = vpop.permute.xlu0 %3228
  %3230 = vrot.lane.b32.xlu0 %v3220, 96
  %v3231 = vpop.permute.xlu0 %3230
  %3232 = vrot.lane.b32.xlu0 %v3221, 96
  %v3233 = vpop.permute.xlu0 %3232
  %v3238 = vadd.f32 %v3210, %v3227
  %v3239 = vadd.f32 %v3211, %v3229
  %v3240 = vadd.f32 %v3212, %v3231
  %v3241 = vadd.f32 %v3213, %v3233
  %v3242 = vmul.f32 %v3187, %v3202
  %v3243 = vmul.f32 %v3189, %v3203
  %v3244 = vmul.f32 %v3191, %v3204
  %v3245 = vmul.f32 %v3193, %v3205
  %v3246 = vmul.f32 %v3242, %v2648
  %v3247 = vmul.f32 %v3243, %v2651
  %v3248 = vmul.f32 %v3244, %v2656
  %v3249 = vmul.f32 %v3245, %v2659
  %3254 = vrot.lane.b32.xlu0 %v3246, 32
  %v3255 = vpop.permute.xlu0 %3254
  %3256 = vrot.lane.b32.xlu0 %v3247, 32
  %v3257 = vpop.permute.xlu0 %3256
  %3258 = vrot.lane.b32.xlu0 %v3248, 32
  %v3259 = vpop.permute.xlu0 %3258
  %3260 = vrot.lane.b32.xlu0 %v3249, 32
  %v3261 = vpop.permute.xlu0 %3260
  %v3266 = vadd.f32 %v3238, %v3255
  %v3267 = vadd.f32 %v3239, %v3257
  %v3268 = vadd.f32 %v3240, %v3259
  %v3269 = vadd.f32 %v3241, %v3261
  %3270 = vrot.lane.b32.xlu0 %v2682, 32
  %v3271 = vpop.permute.xlu0 %3270
  %3272 = vrot.lane.b32.xlu0 %v2683, 32
  %v3273 = vpop.permute.xlu0 %3272
  %3274 = vrot.lane.b32.xlu0 %v2684, 32
  %v3275 = vpop.permute.xlu0 %3274
  %3276 = vrot.lane.b32.xlu0 %v2685, 32
  %v3277 = vpop.permute.xlu0 %3276
  %v3282 = vsel %vm331, %v3271, 0.0
  %3283 = vadd.xlane.f32.xlu0 %v3282
  %v3284 = vpop.xlane.xlu0 %3283
  %v3285 = vsel %vm331, %v3273, 0.0
  %3286 = vadd.xlane.f32.xlu0 %v3285
  %v3287 = vpop.xlane.xlu0 %3286
  %v3288 = vsel %vm331, %v3275, 0.0
  %3289 = vadd.xlane.f32.xlu0 %v3288
  %v3290 = vpop.xlane.xlu0 %3289
  %v3291 = vsel %vm331, %v3277, 0.0
  %3292 = vadd.xlane.f32.xlu0 %v3291
  %v3293 = vpop.xlane.xlu0 %3292
  %3294 = vrot.lane.b32.xlu0 %v2710, 32
  %v3295 = vpop.permute.xlu0 %3294
  %3296 = vrot.lane.b32.xlu0 %v2711, 32
  %v3297 = vpop.permute.xlu0 %3296
  %3298 = vrot.lane.b32.xlu0 %v2712, 32
  %v3299 = vpop.permute.xlu0 %3298
  %3300 = vrot.lane.b32.xlu0 %v2713, 32
  %v3301 = vpop.permute.xlu0 %3300
  %v3306 = vsel %vm331, %v3295, 0.0
  %3307 = vadd.xlane.f32.xlu0 %v3306
  %v3308 = vpop.xlane.xlu0 %3307
  %v3309 = vsel %vm331, %v3297, 0.0
  %3310 = vadd.xlane.f32.xlu0 %v3309
  %v3311 = vpop.xlane.xlu0 %3310
  %v3312 = vsel %vm331, %v3299, 0.0
  %3313 = vadd.xlane.f32.xlu0 %v3312
  %v3314 = vpop.xlane.xlu0 %3313
  %v3315 = vsel %vm331, %v3301, 0.0
  %3316 = vadd.xlane.f32.xlu0 %v3315
  %v3317 = vpop.xlane.xlu0 %3316
  %3318 = vrot.lane.b32.xlu0 %v2738, 32
  %v3319 = vpop.permute.xlu0 %3318
  %3320 = vrot.lane.b32.xlu0 %v2739, 32
  %v3321 = vpop.permute.xlu0 %3320
  %3322 = vrot.lane.b32.xlu0 %v2740, 32
  %v3323 = vpop.permute.xlu0 %3322
  %3324 = vrot.lane.b32.xlu0 %v2741, 32
  %v3325 = vpop.permute.xlu0 %3324
  %v3330 = vsel %vm331, %v3319, 0.0
  %3331 = vadd.xlane.f32.xlu0 %v3330
  %v3332 = vpop.xlane.xlu0 %3331
  %v3333 = vsel %vm331, %v3321, 0.0
  %3334 = vadd.xlane.f32.xlu0 %v3333
  %v3335 = vpop.xlane.xlu0 %3334
  %v3336 = vsel %vm331, %v3323, 0.0
  %3337 = vadd.xlane.f32.xlu0 %v3336
  %v3338 = vpop.xlane.xlu0 %3337
  %v3339 = vsel %vm331, %v3325, 0.0
  %3340 = vadd.xlane.f32.xlu0 %v3339
  %v3341 = vpop.xlane.xlu0 %3340
  %v3342 = vmax.f32 %v3284, %v3308
  %v3343 = vmax.f32 %v3287, %v3311
  %v3344 = vmax.f32 %v3290, %v3314
  %v3345 = vmax.f32 %v3293, %v3317
  %v3346 = vmax.f32 %v3342, %v3332
  %v3347 = vmax.f32 %v3343, %v3335
  %v3348 = vmax.f32 %v3344, %v3338
  %v3349 = vmax.f32 %v3345, %v3341
  %v3350 = vsub.f32 %v3284, %v3346
  %v3351 = vsub.f32 %v3287, %v3347
  %v3352 = vsub.f32 %v3290, %v3348
  %v3353 = vsub.f32 %v3293, %v3349
  %v3354 = vmul.f32 %v3350, 1.442695
  %v3355 = vpow.pop %v3354
  %v3356 = vmul.f32 %v3351, 1.442695
  %v3357 = vpow.pop %v3356
  %v3358 = vmul.f32 %v3352, 1.442695
  %v3359 = vpow.pop %v3358
  %v3360 = vmul.f32 %v3353, 1.442695
  %v3361 = vpow.pop %v3360
  %v3362 = vsub.f32 %v3308, %v3346
  %v3363 = vsub.f32 %v3311, %v3347
  %v3364 = vsub.f32 %v3314, %v3348
  %v3365 = vsub.f32 %v3317, %v3349
  %v3366 = vmul.f32 %v3362, 1.442695
  %v3367 = vpow.pop %v3366
  %v3368 = vmul.f32 %v3363, 1.442695
  %v3369 = vpow.pop %v3368
  %v3370 = vmul.f32 %v3364, 1.442695
  %v3371 = vpow.pop %v3370
  %v3372 = vmul.f32 %v3365, 1.442695
  %v3373 = vpow.pop %v3372
  %v3374 = vsub.f32 %v3332, %v3346
  %v3375 = vsub.f32 %v3335, %v3347
  %v3376 = vsub.f32 %v3338, %v3348
  %v3377 = vsub.f32 %v3341, %v3349
  %v3378 = vmul.f32 %v3374, 1.442695
  %v3379 = vpow.pop %v3378
  %v3380 = vmul.f32 %v3375, 1.442695
  %v3381 = vpow.pop %v3380
  %v3382 = vmul.f32 %v3376, 1.442695
  %v3383 = vpow.pop %v3382
  %v3384 = vmul.f32 %v3377, 1.442695
  %v3385 = vpow.pop %v3384
  %v3386 = vadd.f32 %v3355, %v3367
  %v3387 = vadd.f32 %v3357, %v3369
  %v3388 = vadd.f32 %v3359, %v3371
  %v3389 = vadd.f32 %v3361, %v3373
  %v3390 = vadd.f32 %v3386, %v3379
  %v3391 = vadd.f32 %v3387, %v3381
  %v3392 = vadd.f32 %v3388, %v3383
  %v3393 = vadd.f32 %v3389, %v3385
  %v3394 = vrcp.pop %v3390
  %v3395 = vrcp.pop %v3391
  %v3396 = vrcp.pop %v3392
  %v3397 = vrcp.pop %v3393
  %v3398 = vmul.f32 %v3355, %v3394
  %v3399 = vmul.f32 %v3357, %v3395
  %v3400 = vmul.f32 %v3359, %v3396
  %v3401 = vmul.f32 %v3361, %v3397
  %v3402 = vmul.f32 %v3398, %v2648
  %v3403 = vmul.f32 %v3399, %v2651
  %v3404 = vmul.f32 %v3400, %v2656
  %v3405 = vmul.f32 %v3401, %v2659
  %v3406 = vmul.f32 %v3367, %v3394
  %v3407 = vmul.f32 %v3369, %v3395
  %v3408 = vmul.f32 %v3371, %v3396
  %v3409 = vmul.f32 %v3373, %v3397
  %v3410 = vmul.f32 %v3406, %v2648
  %v3411 = vmul.f32 %v3407, %v2651
  %v3412 = vmul.f32 %v3408, %v2656
  %v3413 = vmul.f32 %v3409, %v2659
  %3418 = vrot.lane.b32.xlu0 %v3410, 96
  %v3419 = vpop.permute.xlu0 %3418
  %3420 = vrot.lane.b32.xlu0 %v3411, 96
  %v3421 = vpop.permute.xlu0 %3420
  %3422 = vrot.lane.b32.xlu0 %v3412, 96
  %v3423 = vpop.permute.xlu0 %3422
  %3424 = vrot.lane.b32.xlu0 %v3413, 96
  %v3425 = vpop.permute.xlu0 %3424
  %v3430 = vadd.f32 %v3402, %v3419
  %v3431 = vadd.f32 %v3403, %v3421
  %v3432 = vadd.f32 %v3404, %v3423
  %v3433 = vadd.f32 %v3405, %v3425
  %v3434 = vmul.f32 %v3379, %v3394
  %v3435 = vmul.f32 %v3381, %v3395
  %v3436 = vmul.f32 %v3383, %v3396
  %v3437 = vmul.f32 %v3385, %v3397
  %v3438 = vmul.f32 %v3434, %v2648
  %v3439 = vmul.f32 %v3435, %v2651
  %v3440 = vmul.f32 %v3436, %v2656
  %v3441 = vmul.f32 %v3437, %v2659
  %3446 = vrot.lane.b32.xlu0 %v3438, 64
  %v3447 = vpop.permute.xlu0 %3446
  %3448 = vrot.lane.b32.xlu0 %v3439, 64
  %v3449 = vpop.permute.xlu0 %3448
  %3450 = vrot.lane.b32.xlu0 %v3440, 64
  %v3451 = vpop.permute.xlu0 %3450
  %3452 = vrot.lane.b32.xlu0 %v3441, 64
  %v3453 = vpop.permute.xlu0 %3452
  %v3458 = vadd.f32 %v3430, %v3447
  %v3459 = vadd.f32 %v3431, %v3449
  %v3460 = vadd.f32 %v3432, %v3451
  %v3461 = vadd.f32 %v3433, %v3453
  %3466 = vrot.lane.b32.xlu0 %v2870, 96
  %v3467 = vpop.permute.xlu0 %3466
  %3468 = vrot.lane.b32.xlu0 %v2871, 96
  %v3469 = vpop.permute.xlu0 %3468
  %3470 = vrot.lane.b32.xlu0 %v2872, 96
  %v3471 = vpop.permute.xlu0 %3470
  %3472 = vrot.lane.b32.xlu0 %v2873, 96
  %v3473 = vpop.permute.xlu0 %3472
  %3482 = vrot.lane.b32.xlu0 %v3074, 32
  %v3483 = vpop.permute.xlu0 %3482
  %3484 = vrot.lane.b32.xlu0 %v3075, 32
  %v3485 = vpop.permute.xlu0 %3484
  %3486 = vrot.lane.b32.xlu0 %v3076, 32
  %v3487 = vpop.permute.xlu0 %3486
  %3488 = vrot.lane.b32.xlu0 %v3077, 32
  %v3489 = vpop.permute.xlu0 %3488
  %3498 = vrot.lane.b32.xlu0 %v3266, 64
  %v3499 = vpop.permute.xlu0 %3498
  %3500 = vrot.lane.b32.xlu0 %v3267, 64
  %v3501 = vpop.permute.xlu0 %3500
  %3502 = vrot.lane.b32.xlu0 %v3268, 64
  %v3503 = vpop.permute.xlu0 %3502
  %3504 = vrot.lane.b32.xlu0 %v3269, 64
  %v3505 = vpop.permute.xlu0 %3504
  %3514 = vrot.lane.b32.xlu0 %v3458, 96
  %v3515 = vpop.permute.xlu0 %3514
  %3516 = vrot.lane.b32.xlu0 %v3459, 96
  %v3517 = vpop.permute.xlu0 %3516
  %3518 = vrot.lane.b32.xlu0 %v3460, 96
  %v3519 = vpop.permute.xlu0 %3518
  %3520 = vrot.lane.b32.xlu0 %v3461, 96
  %v3521 = vpop.permute.xlu0 %3520
  %v3526 = vsel %vm331, %v3467, %v3483
  %v3527 = vsel %vm331, %v3469, %v3485
  %v3528 = vsel %vm331, %v3471, %v3487
  %v3529 = vsel %vm331, %v3473, %v3489
  %v3530 = vsel %vm1176, %v3526, %v3499
  %v3531 = vsel %vm1176, %v3527, %v3501
  %v3532 = vsel %vm1176, %v3528, %v3503
  %v3533 = vsel %vm1176, %v3529, %v3505
  %v3534 = vsel %vm1181, %v3530, %v3515
  %v3535 = vsel %vm1181, %v3531, %v3517
  %v3536 = vsel %vm1181, %v3532, %v3519
  %v3537 = vsel %vm1181, %v3533, %v3521
  %v3538 = vpack.c.bf16 %v3535, %v3534
  %v3539 = vpack.c.bf16 %v3537, %v3536
  %s3540 = scalar_lea.vmem %s2, 64
  %v3541 = vld [vmem:[%s3540] sm:$0xf]
  %v3542 = vld [vmem:[%s3540 + $0x4] sm:$0xf]
  %v3543 = vld [vmem:[%s3540 + $0x8] sm:$0xf]
  %v3544 = vld [vmem:[%s3540 + $0xc] sm:$0xf]
  %v3545 = vld [vmem:[%s3540 + $0x10] sm:$0xf]
  %v3546 = vld [vmem:[%s3540 + $0x14] sm:$0xf]
  %v3547 = vld [vmem:[%s3540 + $0x18] sm:$0xf]
  %v3548 = vld [vmem:[%s3540 + $0x1c] sm:$0xf]
  %v3549 = vld [vmem:[%s3540 + $0x20] sm:$0xf]
  %v3550 = vld [vmem:[%s3540 + $0x24] sm:$0xf]
  %v3551 = vld [vmem:[%s3540 + $0x28] sm:$0xf]
  %v3552 = vld [vmem:[%s3540 + $0x2c] sm:$0xf]
  %v3553 = vld [vmem:[%s3540 + $0x30] sm:$0xf]
  %v3554 = vld [vmem:[%s3540 + $0x34] sm:$0xf]
  %v3555 = vld [vmem:[%s3540 + $0x38] sm:$0xf]
  %v3556 = vld [vmem:[%s3540 + $0x3c] sm:$0xf]
  %v3573 = vunpack.c.l.b16 %v3541
  %v3574 = vunpack.c.l.b16 %v3542
  %v3575 = vunpack.c.l.b16 %v3543
  %v3576 = vunpack.c.l.b16 %v3544
  %v3577 = vunpack.c.l.b16 %v3545
  %v3578 = vunpack.c.l.b16 %v3546
  %v3579 = vunpack.c.l.b16 %v3547
  %v3580 = vunpack.c.l.b16 %v3548
  %v3581 = vunpack.c.l.b16 %v3549
  %v3582 = vunpack.c.l.b16 %v3550
  %v3583 = vunpack.c.l.b16 %v3551
  %v3584 = vunpack.c.l.b16 %v3552
  %v3585 = vunpack.c.l.b16 %v3553
  %v3586 = vunpack.c.l.b16 %v3554
  %v3587 = vunpack.c.l.b16 %v3555
  %v3588 = vunpack.c.l.b16 %v3556
  %v3589 = vpack.c.b16 %v3574, %v3573
  %v3590 = vpack.c.b16 %v3576, %v3575
  %v3591 = vpack.c.b16 %v3578, %v3577
  %v3592 = vpack.c.b16 %v3580, %v3579
  %v3593 = vpack.c.b16 %v3582, %v3581
  %v3594 = vpack.c.b16 %v3584, %v3583
  %v3595 = vpack.c.b16 %v3586, %v3585
  %v3596 = vpack.c.b16 %v3588, %v3587
  %3605 = vmatprep.subr.bf16.mxu0 0
  %3606 = vmatpush1.bf16.msra.mxu0 %v3589
  %3607 = vmatprep.subr.bf16.mxu0 0
  %3608 = vmatpush1.bf16.msra.mxu0 %v3590
  %3609 = vmatprep.subr.bf16.mxu0 0
  %3610 = vmatpush1.bf16.msra.mxu0 %v3591
  %3611 = vmatprep.subr.bf16.mxu0 0
  %3612 = vmatpush1.bf16.msra.mxu0 %v3592
  %3613 = vmatprep.subr.bf16.mxu0 0
  %3614 = vmatpush1.bf16.msra.mxu0 %v3593
  %3615 = vmatprep.subr.bf16.mxu0 0
  %3616 = vmatpush1.bf16.msra.mxu0 %v3594
  %3617 = vmatprep.subr.bf16.mxu0 0
  %3618 = vmatpush1.bf16.msra.mxu0 %v3595
  %3619 = vmatprep.subr.bf16.mxu0 0
  %3620 = vmatpush1.bf16.msra.mxu0 %v3596
  %3621 = vmatprep.subr.bf16.mxu0 0
  %3622 = vmatpush1.bf16.msra.mxu0 0
  %3623 = vmatprep.subr.bf16.mxu0 0
  %3624 = vmatpush1.bf16.msra.mxu0 0
  %3625 = vmatprep.subr.bf16.mxu0 0
  %3626 = vmatpush1.bf16.msra.mxu0 0
  %3627 = vmatprep.subr.bf16.mxu0 0
  %3628 = vmatpush1.bf16.msra.mxu0 0
  %3629 = vmatprep.subr.bf16.mxu0 0
  %3630 = vmatpush1.bf16.msra.mxu0 0
  %3631 = vmatprep.subr.bf16.mxu0 0
  %3632 = vmatpush1.bf16.msra.mxu0 0
  %3633 = vmatprep.subr.bf16.mxu0 0
  %3634 = vmatpush1.bf16.msra.mxu0 0
  %3635 = vmatprep.subr.bf16.mxu0 0
  %3636 = vmatpush1.bf16.msra.mxu0 0
  %3637 = vmatprep.mubr.bf16.mxu0 0
  %3638 = vmatmul.mubr.bf16.gmra.mrb[0].mxu0 %v3538
  %v3639 = vpop.f32.mrb[0].mxu0
  %v3640 = vadd.f32 0.0, %v3639
  %v3641 = vpop.f32.mrb[0].mxu0
  %v3642 = vpop.f32.mrb[0].mxu0
  %v3643 = vadd.f32 0.0, %v3642
  %v3644 = vpop.f32.mrb[0].mxu0
  %3645 = vmatprep.mubr.bf16.mxu0 0
  %3646 = vmatmul.mubr.bf16.gmra.mrb[0].mxu0 %v3539
  %v3647 = vpop.f32.mrb[0].mxu0
  %v3648 = vadd.f32 0.0, %v3647
  %v3649 = vpop.f32.mrb[0].mxu0
  %v3650 = vpop.f32.mrb[0].mxu0
  %v3651 = vadd.f32 0.0, %v3650
  %v3652 = vpop.f32.mrb[0].mxu0
  %3653 = vdwg.mxu0
  %v3654 = vadd.f32 %v2389, %v3640
  %v3655 = vadd.f32 %v2390, %v3643
  %v3656 = vadd.f32 %v2391, %v3648
  %v3657 = vadd.f32 %v2392, %v3651
  %s3658 = scalar_lea.vmem %s7, 1
  %v3659 = vld [vmem:[%s3658] sm:$0x1]
  %s3660 = scalar_lea.vmem %s8, 1
  %v3661 = vld [vmem:[%s3660] sm:$0x1]
  %v3662 = vsel %vm331, %v3654, 0.0
  %3663 = vadd.xlane.f32.xlu0 %v3662
  %v3664 = vpop.xlane.xlu0 %3663
  %v3665 = vsel %vm331, %v3655, 0.0
  %3666 = vadd.xlane.f32.xlu0 %v3665
  %v3667 = vpop.xlane.xlu0 %3666
  %v3668 = vsel %vm331, %v3656, 0.0
  %3669 = vadd.xlane.f32.xlu0 %v3668
  %v3670 = vpop.xlane.xlu0 %3669
  %v3671 = vsel %vm331, %v3657, 0.0
  %3672 = vadd.xlane.f32.xlu0 %v3671
  %v3673 = vpop.xlane.xlu0 %3672
  %v3674 = vmul.f32 %v3664, %v1319
  %v3675 = vmul.f32 %v3667, %v1319
  %v3676 = vmul.f32 %v3670, %v1319
  %v3677 = vmul.f32 %v3673, %v1319
  %v3678 = vsub.f32 %v3654, %v3674
  %v3679 = vsub.f32 %v3655, %v3675
  %v3680 = vsub.f32 %v3656, %v3676
  %v3681 = vsub.f32 %v3657, %v3677
  %v3682 = vmul.f32 %v3678, %v3678
  %v3683 = vmul.f32 %v3679, %v3679
  %v3684 = vmul.f32 %v3680, %v3680
  %v3685 = vmul.f32 %v3681, %v3681
  %v3686 = vsel %vm331, %v3682, 0.0
  %3687 = vadd.xlane.f32.xlu0 %v3686
  %v3688 = vpop.xlane.xlu0 %3687
  %v3689 = vsel %vm331, %v3683, 0.0
  %3690 = vadd.xlane.f32.xlu0 %v3689
  %v3691 = vpop.xlane.xlu0 %3690
  %v3692 = vsel %vm331, %v3684, 0.0
  %3693 = vadd.xlane.f32.xlu0 %v3692
  %v3694 = vpop.xlane.xlu0 %3693
  %v3695 = vsel %vm331, %v3685, 0.0
  %3696 = vadd.xlane.f32.xlu0 %v3695
  %v3697 = vpop.xlane.xlu0 %3696
  %v3698 = vmul.f32 %v3688, %v1319
  %v3699 = vmul.f32 %v3691, %v1319
  %v3700 = vmul.f32 %v3694, %v1319
  %v3701 = vmul.f32 %v3697, %v1319
  %v3702 = vadd.f32 %v3698, 1e-05
  %v3703 = vadd.f32 %v3699, 1e-05
  %v3704 = vadd.f32 %v3700, 1e-05
  %v3705 = vadd.f32 %v3701, 1e-05
  %v3706 = vrsqrt.pop %v3702
  %v3707 = vrsqrt.pop %v3703
  %v3708 = vrsqrt.pop %v3704
  %v3709 = vrsqrt.pop %v3705
  %v3710 = vmul.f32 %v3678, %v3706
  %v3711 = vmul.f32 %v3679, %v3707
  %v3712 = vmul.f32 %v3680, %v3708
  %v3713 = vmul.f32 %v3681, %v3709
  %3718 = vrot.lane.b32.xlu0 %v3654, 96
  %v3719 = vpop.permute.xlu0 %3718
  %3720 = vrot.lane.b32.xlu0 %v3655, 96
  %v3721 = vpop.permute.xlu0 %3720
  %3722 = vrot.lane.b32.xlu0 %v3656, 96
  %v3723 = vpop.permute.xlu0 %3722
  %3724 = vrot.lane.b32.xlu0 %v3657, 96
  %v3725 = vpop.permute.xlu0 %3724
  %v3730 = vsel %vm331, %v3719, 0.0
  %3731 = vadd.xlane.f32.xlu0 %v3730
  %v3732 = vpop.xlane.xlu0 %3731
  %v3733 = vsel %vm331, %v3721, 0.0
  %3734 = vadd.xlane.f32.xlu0 %v3733
  %v3735 = vpop.xlane.xlu0 %3734
  %v3736 = vsel %vm331, %v3723, 0.0
  %3737 = vadd.xlane.f32.xlu0 %v3736
  %v3738 = vpop.xlane.xlu0 %3737
  %v3739 = vsel %vm331, %v3725, 0.0
  %3740 = vadd.xlane.f32.xlu0 %v3739
  %v3741 = vpop.xlane.xlu0 %3740
  %v3742 = vmul.f32 %v3732, %v1319
  %v3743 = vmul.f32 %v3735, %v1319
  %v3744 = vmul.f32 %v3738, %v1319
  %v3745 = vmul.f32 %v3741, %v1319
  %v3746 = vsub.f32 %v3654, %v3742
  %v3747 = vsub.f32 %v3655, %v3743
  %v3748 = vsub.f32 %v3656, %v3744
  %v3749 = vsub.f32 %v3657, %v3745
  %v3750 = vmul.f32 %v3746, %v3746
  %v3751 = vmul.f32 %v3747, %v3747
  %v3752 = vmul.f32 %v3748, %v3748
  %v3753 = vmul.f32 %v3749, %v3749
  %3758 = vrot.lane.b32.xlu0 %v3750, 96
  %v3759 = vpop.permute.xlu0 %3758
  %3760 = vrot.lane.b32.xlu0 %v3751, 96
  %v3761 = vpop.permute.xlu0 %3760
  %3762 = vrot.lane.b32.xlu0 %v3752, 96
  %v3763 = vpop.permute.xlu0 %3762
  %3764 = vrot.lane.b32.xlu0 %v3753, 96
  %v3765 = vpop.permute.xlu0 %3764
  %v3770 = vsel %vm331, %v3759, 0.0
  %3771 = vadd.xlane.f32.xlu0 %v3770
  %v3772 = vpop.xlane.xlu0 %3771
  %v3773 = vsel %vm331, %v3761, 0.0
  %3774 = vadd.xlane.f32.xlu0 %v3773
  %v3775 = vpop.xlane.xlu0 %3774
  %v3776 = vsel %vm331, %v3763, 0.0
  %3777 = vadd.xlane.f32.xlu0 %v3776
  %v3778 = vpop.xlane.xlu0 %3777
  %v3779 = vsel %vm331, %v3765, 0.0
  %3780 = vadd.xlane.f32.xlu0 %v3779
  %v3781 = vpop.xlane.xlu0 %3780
  %v3782 = vmul.f32 %v3772, %v1319
  %v3783 = vmul.f32 %v3775, %v1319
  %v3784 = vmul.f32 %v3778, %v1319
  %v3785 = vmul.f32 %v3781, %v1319
  %v3786 = vadd.f32 %v3782, 1e-05
  %v3787 = vadd.f32 %v3783, 1e-05
  %v3788 = vadd.f32 %v3784, 1e-05
  %v3789 = vadd.f32 %v3785, 1e-05
  %v3790 = vrsqrt.pop %v3786
  %v3791 = vrsqrt.pop %v3787
  %v3792 = vrsqrt.pop %v3788
  %v3793 = vrsqrt.pop %v3789
  %v3794 = vmul.f32 %v3746, %v3790
  %v3795 = vmul.f32 %v3747, %v3791
  %v3796 = vmul.f32 %v3748, %v3792
  %v3797 = vmul.f32 %v3749, %v3793
  %3798 = vrot.lane.b32.xlu0 %v3654, 64
  %v3799 = vpop.permute.xlu0 %3798
  %3800 = vrot.lane.b32.xlu0 %v3655, 64
  %v3801 = vpop.permute.xlu0 %3800
  %3802 = vrot.lane.b32.xlu0 %v3656, 64
  %v3803 = vpop.permute.xlu0 %3802
  %3804 = vrot.lane.b32.xlu0 %v3657, 64
  %v3805 = vpop.permute.xlu0 %3804
  %v3810 = vsel %vm331, %v3799, 0.0
  %3811 = vadd.xlane.f32.xlu0 %v3810
  %v3812 = vpop.xlane.xlu0 %3811
  %v3813 = vsel %vm331, %v3801, 0.0
  %3814 = vadd.xlane.f32.xlu0 %v3813
  %v3815 = vpop.xlane.xlu0 %3814
  %v3816 = vsel %vm331, %v3803, 0.0
  %3817 = vadd.xlane.f32.xlu0 %v3816
  %v3818 = vpop.xlane.xlu0 %3817
  %v3819 = vsel %vm331, %v3805, 0.0
  %3820 = vadd.xlane.f32.xlu0 %v3819
  %v3821 = vpop.xlane.xlu0 %3820
  %v3822 = vmul.f32 %v3812, %v1319
  %v3823 = vmul.f32 %v3815, %v1319
  %v3824 = vmul.f32 %v3818, %v1319
  %v3825 = vmul.f32 %v3821, %v1319
  %v3826 = vsub.f32 %v3654, %v3822
  %v3827 = vsub.f32 %v3655, %v3823
  %v3828 = vsub.f32 %v3656, %v3824
  %v3829 = vsub.f32 %v3657, %v3825
  %v3830 = vmul.f32 %v3826, %v3826
  %v3831 = vmul.f32 %v3827, %v3827
  %v3832 = vmul.f32 %v3828, %v3828
  %v3833 = vmul.f32 %v3829, %v3829
  %3838 = vrot.lane.b32.xlu0 %v3830, 64
  %v3839 = vpop.permute.xlu0 %3838
  %3840 = vrot.lane.b32.xlu0 %v3831, 64
  %v3841 = vpop.permute.xlu0 %3840
  %3842 = vrot.lane.b32.xlu0 %v3832, 64
  %v3843 = vpop.permute.xlu0 %3842
  %3844 = vrot.lane.b32.xlu0 %v3833, 64
  %v3845 = vpop.permute.xlu0 %3844
  %v3850 = vsel %vm331, %v3839, 0.0
  %3851 = vadd.xlane.f32.xlu0 %v3850
  %v3852 = vpop.xlane.xlu0 %3851
  %v3853 = vsel %vm331, %v3841, 0.0
  %3854 = vadd.xlane.f32.xlu0 %v3853
  %v3855 = vpop.xlane.xlu0 %3854
  %v3856 = vsel %vm331, %v3843, 0.0
  %3857 = vadd.xlane.f32.xlu0 %v3856
  %v3858 = vpop.xlane.xlu0 %3857
  %v3859 = vsel %vm331, %v3845, 0.0
  %3860 = vadd.xlane.f32.xlu0 %v3859
  %v3861 = vpop.xlane.xlu0 %3860
  %v3862 = vmul.f32 %v3852, %v1319
  %v3863 = vmul.f32 %v3855, %v1319
  %v3864 = vmul.f32 %v3858, %v1319
  %v3865 = vmul.f32 %v3861, %v1319
  %v3866 = vadd.f32 %v3862, 1e-05
  %v3867 = vadd.f32 %v3863, 1e-05
  %v3868 = vadd.f32 %v3864, 1e-05
  %v3869 = vadd.f32 %v3865, 1e-05
  %v3870 = vrsqrt.pop %v3866
  %v3871 = vrsqrt.pop %v3867
  %v3872 = vrsqrt.pop %v3868
  %v3873 = vrsqrt.pop %v3869
  %v3874 = vmul.f32 %v3826, %v3870
  %v3875 = vmul.f32 %v3827, %v3871
  %v3876 = vmul.f32 %v3828, %v3872
  %v3877 = vmul.f32 %v3829, %v3873
  %3878 = vrot.lane.b32.xlu0 %v3654, 32
  %v3879 = vpop.permute.xlu0 %3878
  %3880 = vrot.lane.b32.xlu0 %v3655, 32
  %v3881 = vpop.permute.xlu0 %3880
  %3882 = vrot.lane.b32.xlu0 %v3656, 32
  %v3883 = vpop.permute.xlu0 %3882
  %3884 = vrot.lane.b32.xlu0 %v3657, 32
  %v3885 = vpop.permute.xlu0 %3884
  %v3890 = vsel %vm331, %v3879, 0.0
  %3891 = vadd.xlane.f32.xlu0 %v3890
  %v3892 = vpop.xlane.xlu0 %3891
  %v3893 = vsel %vm331, %v3881, 0.0
  %3894 = vadd.xlane.f32.xlu0 %v3893
  %v3895 = vpop.xlane.xlu0 %3894
  %v3896 = vsel %vm331, %v3883, 0.0
  %3897 = vadd.xlane.f32.xlu0 %v3896
  %v3898 = vpop.xlane.xlu0 %3897
  %v3899 = vsel %vm331, %v3885, 0.0
  %3900 = vadd.xlane.f32.xlu0 %v3899
  %v3901 = vpop.xlane.xlu0 %3900
  %v3902 = vmul.f32 %v3892, %v1319
  %v3903 = vmul.f32 %v3895, %v1319
  %v3904 = vmul.f32 %v3898, %v1319
  %v3905 = vmul.f32 %v3901, %v1319
  %v3906 = vsub.f32 %v3654, %v3902
  %v3907 = vsub.f32 %v3655, %v3903
  %v3908 = vsub.f32 %v3656, %v3904
  %v3909 = vsub.f32 %v3657, %v3905
  %v3910 = vmul.f32 %v3906, %v3906
  %v3911 = vmul.f32 %v3907, %v3907
  %v3912 = vmul.f32 %v3908, %v3908
  %v3913 = vmul.f32 %v3909, %v3909
  %3918 = vrot.lane.b32.xlu0 %v3910, 32
  %v3919 = vpop.permute.xlu0 %3918
  %3920 = vrot.lane.b32.xlu0 %v3911, 32
  %v3921 = vpop.permute.xlu0 %3920
  %3922 = vrot.lane.b32.xlu0 %v3912, 32
  %v3923 = vpop.permute.xlu0 %3922
  %3924 = vrot.lane.b32.xlu0 %v3913, 32
  %v3925 = vpop.permute.xlu0 %3924
  %v3930 = vsel %vm331, %v3919, 0.0
  %3931 = vadd.xlane.f32.xlu0 %v3930
  %v3932 = vpop.xlane.xlu0 %3931
  %v3933 = vsel %vm331, %v3921, 0.0
  %3934 = vadd.xlane.f32.xlu0 %v3933
  %v3935 = vpop.xlane.xlu0 %3934
  %v3936 = vsel %vm331, %v3923, 0.0
  %3937 = vadd.xlane.f32.xlu0 %v3936
  %v3938 = vpop.xlane.xlu0 %3937
  %v3939 = vsel %vm331, %v3925, 0.0
  %3940 = vadd.xlane.f32.xlu0 %v3939
  %v3941 = vpop.xlane.xlu0 %3940
  %v3942 = vmul.f32 %v3932, %v1319
  %v3943 = vmul.f32 %v3935, %v1319
  %v3944 = vmul.f32 %v3938, %v1319
  %v3945 = vmul.f32 %v3941, %v1319
  %v3946 = vadd.f32 %v3942, 1e-05
  %v3947 = vadd.f32 %v3943, 1e-05
  %v3948 = vadd.f32 %v3944, 1e-05
  %v3949 = vadd.f32 %v3945, 1e-05
  %v3950 = vrsqrt.pop %v3946
  %v3951 = vrsqrt.pop %v3947
  %v3952 = vrsqrt.pop %v3948
  %v3953 = vrsqrt.pop %v3949
  %v3954 = vmul.f32 %v3906, %v3950
  %v3955 = vmul.f32 %v3907, %v3951
  %v3956 = vmul.f32 %v3908, %v3952
  %v3957 = vmul.f32 %v3909, %v3953
  %v3958 = vsel %vm331, %v3710, %v3794
  %v3959 = vsel %vm331, %v3711, %v3795
  %v3960 = vsel %vm331, %v3712, %v3796
  %v3961 = vsel %vm331, %v3713, %v3797
  %v3962 = vsel %vm1176, %v3958, %v3874
  %v3963 = vsel %vm1176, %v3959, %v3875
  %v3964 = vsel %vm1176, %v3960, %v3876
  %v3965 = vsel %vm1176, %v3961, %v3877
  %v3966 = vsel %vm1181, %v3962, %v3954
  %v3967 = vsel %vm1181, %v3963, %v3955
  %v3968 = vsel %vm1181, %v3964, %v3956
  %v3969 = vsel %vm1181, %v3965, %v3957
  %v3971 = vlaneseq
  %v3972 = vshrl.u32 %v3971, 7
  %v3973 = vsub.s32 0, %v3972
  %v3974 = vrot.slane %v3659, %v3973
  %v3976 = vmul.f32 %v3966, %v3974
  %v3977 = vmul.f32 %v3967, %v3974
  %v3978 = vmul.f32 %v3968, %v3974
  %v3979 = vmul.f32 %v3969, %v3974
  %v3981 = vlaneseq
  %v3982 = vshrl.u32 %v3981, 7
  %v3983 = vsub.s32 0, %v3982
  %v3984 = vrot.slane %v3661, %v3983
  %v3986 = vadd.f32 %v3976, %v3984
  %v3987 = vadd.f32 %v3977, %v3984
  %v3988 = vadd.f32 %v3978, %v3984
  %v3989 = vadd.f32 %v3979, %v3984
  %v3990 = vpack.c.bf16 %v3987, %v3986
  %v3991 = vpack.c.bf16 %v3989, %v3988
  %s3992 = scalar_lea.vmem %s3, 128
  %v3993 = vld [vmem:[%s3992] sm:$0xff]
  %v3994 = vld [vmem:[%s3992 + $0x8] sm:$0xff]
  %v3995 = vld [vmem:[%s3992 + $0x10] sm:$0xff]
  %v3996 = vld [vmem:[%s3992 + $0x18] sm:$0xff]
  %v3997 = vld [vmem:[%s3992 + $0x20] sm:$0xff]
  %v3998 = vld [vmem:[%s3992 + $0x28] sm:$0xff]
  %v3999 = vld [vmem:[%s3992 + $0x30] sm:$0xff]
  %v4000 = vld [vmem:[%s3992 + $0x38] sm:$0xff]
  %v4001 = vld [vmem:[%s3992 + $0x40] sm:$0xff]
  %v4002 = vld [vmem:[%s3992 + $0x48] sm:$0xff]
  %v4003 = vld [vmem:[%s3992 + $0x50] sm:$0xff]
  %v4004 = vld [vmem:[%s3992 + $0x58] sm:$0xff]
  %v4005 = vld [vmem:[%s3992 + $0x60] sm:$0xff]
  %v4006 = vld [vmem:[%s3992 + $0x68] sm:$0xff]
  %v4007 = vld [vmem:[%s3992 + $0x70] sm:$0xff]
  %v4008 = vld [vmem:[%s3992 + $0x78] sm:$0xff]
  %s4009 = scalar_lea.vmem %s4, 2
  %v4010 = vld [vmem:[%s4009] sm:$0x3]
  %v4012 = vlaneseq
  %v4013 = vshrl.u32 %v4012, 7
  %v4014 = vsub.s32 0, %v4013
  %v4015 = vrot.slane %v4010, %v4014
  %v4016 = vlaneseq
  %v4017 = vshrl.u32 %v4016, 7
  %v4018 = vsub.s32 1, %v4017
  %v4019 = vrot.slane %v4010, %v4018
  %v4038 = vunpack.c.l.b16 %v3993
  %v4039 = vunpack.c.h.b16 %v3993
  %v4040 = vunpack.c.l.b16 %v3994
  %v4041 = vunpack.c.h.b16 %v3994
  %v4042 = vunpack.c.l.b16 %v3995
  %v4043 = vunpack.c.h.b16 %v3995
  %v4044 = vunpack.c.l.b16 %v3996
  %v4045 = vunpack.c.h.b16 %v3996
  %v4046 = vunpack.c.l.b16 %v3997
  %v4047 = vunpack.c.h.b16 %v3997
  %v4048 = vunpack.c.l.b16 %v3998
  %v4049 = vunpack.c.h.b16 %v3998
  %v4050 = vunpack.c.l.b16 %v3999
  %v4051 = vunpack.c.h.b16 %v3999
  %v4052 = vunpack.c.l.b16 %v4000
  %v4053 = vunpack.c.h.b16 %v4000
  %v4054 = vunpack.c.l.b16 %v4001
  %v4055 = vunpack.c.h.b16 %v4001
  %v4056 = vunpack.c.l.b16 %v4002
  %v4057 = vunpack.c.h.b16 %v4002
  %v4058 = vunpack.c.l.b16 %v4003
  %v4059 = vunpack.c.h.b16 %v4003
  %v4060 = vunpack.c.l.b16 %v4004
  %v4061 = vunpack.c.h.b16 %v4004
  %v4062 = vunpack.c.l.b16 %v4005
  %v4063 = vunpack.c.h.b16 %v4005
  %v4064 = vunpack.c.l.b16 %v4006
  %v4065 = vunpack.c.h.b16 %v4006
  %v4066 = vunpack.c.l.b16 %v4007
  %v4067 = vunpack.c.h.b16 %v4007
  %v4068 = vunpack.c.l.b16 %v4008
  %v4069 = vunpack.c.h.b16 %v4008
  %v4070 = vpack.c.b16 %v4040, %v4038
  %v4071 = vpack.c.b16 %v4041, %v4039
  %v4072 = vpack.c.b16 %v4044, %v4042
  %v4073 = vpack.c.b16 %v4045, %v4043
  %v4074 = vpack.c.b16 %v4048, %v4046
  %v4075 = vpack.c.b16 %v4049, %v4047
  %v4076 = vpack.c.b16 %v4052, %v4050
  %v4077 = vpack.c.b16 %v4053, %v4051
  %v4078 = vpack.c.b16 %v4056, %v4054
  %v4079 = vpack.c.b16 %v4057, %v4055
  %v4080 = vpack.c.b16 %v4060, %v4058
  %v4081 = vpack.c.b16 %v4061, %v4059
  %v4082 = vpack.c.b16 %v4064, %v4062
  %v4083 = vpack.c.b16 %v4065, %v4063
  %v4084 = vpack.c.b16 %v4068, %v4066
  %v4085 = vpack.c.b16 %v4069, %v4067
  %4102 = vmatprep.subr.bf16.mxu0 %v4071
  %4103 = vmatpush1.bf16.msra.mxu0 %v4070
  %4104 = vmatprep.subr.bf16.mxu0 %v4073
  %4105 = vmatpush1.bf16.msra.mxu0 %v4072
  %4106 = vmatprep.subr.bf16.mxu0 %v4075
  %4107 = vmatpush1.bf16.msra.mxu0 %v4074
  %4108 = vmatprep.subr.bf16.mxu0 %v4077
  %4109 = vmatpush1.bf16.msra.mxu0 %v4076
  %4110 = vmatprep.subr.bf16.mxu0 %v4079
  %4111 = vmatpush1.bf16.msra.mxu0 %v4078
  %4112 = vmatprep.subr.bf16.mxu0 %v4081
  %4113 = vmatpush1.bf16.msra.mxu0 %v4080
  %4114 = vmatprep.subr.bf16.mxu0 %v4083
  %4115 = vmatpush1.bf16.msra.mxu0 %v4082
  %4116 = vmatprep.subr.bf16.mxu0 %v4085
  %4117 = vmatpush1.bf16.msra.mxu0 %v4084
  %4118 = vmatprep.subr.bf16.mxu0 0
  %4119 = vmatpush1.bf16.msra.mxu0 0
  %4120 = vmatprep.subr.bf16.mxu0 0
  %4121 = vmatpush1.bf16.msra.mxu0 0
  %4122 = vmatprep.subr.bf16.mxu0 0
  %4123 = vmatpush1.bf16.msra.mxu0 0
  %4124 = vmatprep.subr.bf16.mxu0 0
  %4125 = vmatpush1.bf16.msra.mxu0 0
  %4126 = vmatprep.subr.bf16.mxu0 0
  %4127 = vmatpush1.bf16.msra.mxu0 0
  %4128 = vmatprep.subr.bf16.mxu0 0
  %4129 = vmatpush1.bf16.msra.mxu0 0
  %4130 = vmatprep.subr.bf16.mxu0 0
  %4131 = vmatpush1.bf16.msra.mxu0 0
  %4132 = vmatprep.subr.bf16.mxu0 0
  %4133 = vmatpush1.bf16.msra.mxu0 0
  %4134 = vmatprep.mubr.bf16.mxu0 0
  %4135 = vmatmul.mubr.bf16.gmra.mrb[0].mxu0 %v3990
  %v4136 = vpop.f32.mrb[0].mxu0
  %v4137 = vadd.f32 %v4015, %v4136
  %v4138 = vpop.f32.mrb[0].mxu0
  %v4139 = vadd.f32 %v4019, %v4138
  %v4140 = vpop.f32.mrb[0].mxu0
  %v4141 = vadd.f32 %v4015, %v4140
  %v4142 = vpop.f32.mrb[0].mxu0
  %v4143 = vadd.f32 %v4019, %v4142
  %4144 = vmatprep.mubr.bf16.mxu0 0
  %4145 = vmatmul.mubr.bf16.gmra.mrb[0].mxu0 %v3991
  %v4146 = vpop.f32.mrb[0].mxu0
  %v4147 = vadd.f32 %v4015, %v4146
  %v4148 = vpop.f32.mrb[0].mxu0
  %v4149 = vadd.f32 %v4019, %v4148
  %v4150 = vpop.f32.mrb[0].mxu0
  %v4151 = vadd.f32 %v4015, %v4150
  %v4152 = vpop.f32.mrb[0].mxu0
  %v4153 = vadd.f32 %v4019, %v4152
  %4154 = vdwg.mxu0
  %v4155 = vmul.f32 %v4137, %v4137
  %v4156 = vmul.f32 %v4139, %v4139
  %v4157 = vmul.f32 %v4141, %v4141
  %v4158 = vmul.f32 %v4143, %v4143
  %v4159 = vmul.f32 %v4147, %v4147
  %v4160 = vmul.f32 %v4149, %v4149
  %v4161 = vmul.f32 %v4151, %v4151
  %v4162 = vmul.f32 %v4153, %v4153
  %v4163 = vmul.f32 %v4137, %v4155
  %v4164 = vmul.f32 %v4139, %v4156
  %v4165 = vmul.f32 %v4141, %v4157
  %v4166 = vmul.f32 %v4143, %v4158
  %v4167 = vmul.f32 %v4147, %v4159
  %v4168 = vmul.f32 %v4149, %v4160
  %v4169 = vmul.f32 %v4151, %v4161
  %v4170 = vmul.f32 %v4153, %v4162
  %v4171 = vmul.f32 %v4163, 0.044715
  %v4172 = vmul.f32 %v4164, 0.044715
  %v4173 = vmul.f32 %v4165, 0.044715
  %v4174 = vmul.f32 %v4166, 0.044715
  %v4175 = vmul.f32 %v4167, 0.044715
  %v4176 = vmul.f32 %v4168, 0.044715
  %v4177 = vmul.f32 %v4169, 0.044715
  %v4178 = vmul.f32 %v4170, 0.044715
  %v4179 = vadd.f32 %v4137, %v4171
  %v4180 = vadd.f32 %v4139, %v4172
  %v4181 = vadd.f32 %v4141, %v4173
  %v4182 = vadd.f32 %v4143, %v4174
  %v4183 = vadd.f32 %v4147, %v4175
  %v4184 = vadd.f32 %v4149, %v4176
  %v4185 = vadd.f32 %v4151, %v4177
  %v4186 = vadd.f32 %v4153, %v4178
  %v4187 = vmul.f32 %v4179, 0.7978846
  %v4188 = vmul.f32 %v4180, 0.7978846
  %v4189 = vmul.f32 %v4181, 0.7978846
  %v4190 = vmul.f32 %v4182, 0.7978846
  %v4191 = vmul.f32 %v4183, 0.7978846
  %v4192 = vmul.f32 %v4184, 0.7978846
  %v4193 = vmul.f32 %v4185, 0.7978846
  %v4194 = vmul.f32 %v4186, 0.7978846
  %v4195 = vtanh.pop %v4187
  %v4196 = vtanh.pop %v4188
  %v4197 = vtanh.pop %v4189
  %v4198 = vtanh.pop %v4190
  %v4199 = vtanh.pop %v4191
  %v4200 = vtanh.pop %v4192
  %v4201 = vtanh.pop %v4193
  %v4202 = vtanh.pop %v4194
  %v4203 = vadd.f32 %v4195, 1.0
  %v4204 = vadd.f32 %v4196, 1.0
  %v4205 = vadd.f32 %v4197, 1.0
  %v4206 = vadd.f32 %v4198, 1.0
  %v4207 = vadd.f32 %v4199, 1.0
  %v4208 = vadd.f32 %v4200, 1.0
  %v4209 = vadd.f32 %v4201, 1.0
  %v4210 = vadd.f32 %v4202, 1.0
  %v4211 = vmul.f32 %v4203, 0.5
  %v4212 = vmul.f32 %v4204, 0.5
  %v4213 = vmul.f32 %v4205, 0.5
  %v4214 = vmul.f32 %v4206, 0.5
  %v4215 = vmul.f32 %v4207, 0.5
  %v4216 = vmul.f32 %v4208, 0.5
  %v4217 = vmul.f32 %v4209, 0.5
  %v4218 = vmul.f32 %v4210, 0.5
  %v4219 = vmul.f32 %v4137, %v4211
  %v4220 = vmul.f32 %v4139, %v4212
  %v4221 = vmul.f32 %v4141, %v4213
  %v4222 = vmul.f32 %v4143, %v4214
  %v4223 = vmul.f32 %v4147, %v4215
  %v4224 = vmul.f32 %v4149, %v4216
  %v4225 = vmul.f32 %v4151, %v4217
  %v4226 = vmul.f32 %v4153, %v4218
  %v4227 = vpack.c.bf16 %v4221, %v4219
  %v4228 = vpack.c.bf16 %v4222, %v4220
  %v4229 = vpack.c.bf16 %v4225, %v4223
  %v4230 = vpack.c.bf16 %v4226, %v4224
  %s4231 = scalar_lea.vmem %s5, 128
  %v4232 = vld [vmem:[%s4231] sm:$0xf]
  %v4233 = vld [vmem:[%s4231 + $0x4] sm:$0xf]
  %v4234 = vld [vmem:[%s4231 + $0x8] sm:$0xf]
  %v4235 = vld [vmem:[%s4231 + $0xc] sm:$0xf]
  %v4236 = vld [vmem:[%s4231 + $0x10] sm:$0xf]
  %v4237 = vld [vmem:[%s4231 + $0x14] sm:$0xf]
  %v4238 = vld [vmem:[%s4231 + $0x18] sm:$0xf]
  %v4239 = vld [vmem:[%s4231 + $0x1c] sm:$0xf]
  %v4240 = vld [vmem:[%s4231 + $0x20] sm:$0xf]
  %v4241 = vld [vmem:[%s4231 + $0x24] sm:$0xf]
  %v4242 = vld [vmem:[%s4231 + $0x28] sm:$0xf]
  %v4243 = vld [vmem:[%s4231 + $0x2c] sm:$0xf]
  %v4244 = vld [vmem:[%s4231 + $0x30] sm:$0xf]
  %v4245 = vld [vmem:[%s4231 + $0x34] sm:$0xf]
  %v4246 = vld [vmem:[%s4231 + $0x38] sm:$0xf]
  %v4247 = vld [vmem:[%s4231 + $0x3c] sm:$0xf]
  %v4248 = vld [vmem:[%s4231 + $0x40] sm:$0xf]
  %v4249 = vld [vmem:[%s4231 + $0x44] sm:$0xf]
  %v4250 = vld [vmem:[%s4231 + $0x48] sm:$0xf]
  %v4251 = vld [vmem:[%s4231 + $0x4c] sm:$0xf]
  %v4252 = vld [vmem:[%s4231 + $0x50] sm:$0xf]
  %v4253 = vld [vmem:[%s4231 + $0x54] sm:$0xf]
  %v4254 = vld [vmem:[%s4231 + $0x58] sm:$0xf]
  %v4255 = vld [vmem:[%s4231 + $0x5c] sm:$0xf]
  %v4256 = vld [vmem:[%s4231 + $0x60] sm:$0xf]
  %v4257 = vld [vmem:[%s4231 + $0x64] sm:$0xf]
  %v4258 = vld [vmem:[%s4231 + $0x68] sm:$0xf]
  %v4259 = vld [vmem:[%s4231 + $0x6c] sm:$0xf]
  %v4260 = vld [vmem:[%s4231 + $0x70] sm:$0xf]
  %v4261 = vld [vmem:[%s4231 + $0x74] sm:$0xf]
  %v4262 = vld [vmem:[%s4231 + $0x78] sm:$0xf]
  %v4263 = vld [vmem:[%s4231 + $0x7c] sm:$0xf]
  %s4264 = scalar_lea.vmem %s6, 1
  %v4265 = vld [vmem:[%s4264] sm:$0x1]
  %v4267 = vlaneseq
  %v4268 = vshrl.u32 %v4267, 7
  %v4269 = vsub.s32 0, %v4268
  %v4270 = vrot.slane %v4265, %v4269
  %v4304 = vunpack.c.l.b16 %v4232
  %v4305 = vunpack.c.l.b16 %v4233
  %v4306 = vunpack.c.l.b16 %v4234
  %v4307 = vunpack.c.l.b16 %v4235
  %v4308 = vunpack.c.l.b16 %v4236
  %v4309 = vunpack.c.l.b16 %v4237
  %v4310 = vunpack.c.l.b16 %v4238
  %v4311 = vunpack.c.l.b16 %v4239
  %v4312 = vunpack.c.l.b16 %v4240
  %v4313 = vunpack.c.l.b16 %v4241
  %v4314 = vunpack.c.l.b16 %v4242
  %v4315 = vunpack.c.l.b16 %v4243
  %v4316 = vunpack.c.l.b16 %v4244
  %v4317 = vunpack.c.l.b16 %v4245
  %v4318 = vunpack.c.l.b16 %v4246
  %v4319 = vunpack.c.l.b16 %v4247
  %v4320 = vunpack.c.l.b16 %v4248
  %v4321 = vunpack.c.l.b16 %v4249
  %v4322 = vunpack.c.l.b16 %v4250
  %v4323 = vunpack.c.l.b16 %v4251
  %v4324 = vunpack.c.l.b16 %v4252
  %v4325 = vunpack.c.l.b16 %v4253
  %v4326 = vunpack.c.l.b16 %v4254
  %v4327 = vunpack.c.l.b16 %v4255
  %v4328 = vunpack.c.l.b16 %v4256
  %v4329 = vunpack.c.l.b16 %v4257
  %v4330 = vunpack.c.l.b16 %v4258
  %v4331 = vunpack.c.l.b16 %v4259
  %v4332 = vunpack.c.l.b16 %v4260
  %v4333 = vunpack.c.l.b16 %v4261
  %v4334 = vunpack.c.l.b16 %v4262
  %v4335 = vunpack.c.l.b16 %v4263
  %v4336 = vpack.c.b16 %v4305, %v4304
  %v4337 = vpack.c.b16 %v4307, %v4306
  %v4338 = vpack.c.b16 %v4309, %v4308
  %v4339 = vpack.c.b16 %v4311, %v4310
  %v4340 = vpack.c.b16 %v4313, %v4312
  %v4341 = vpack.c.b16 %v4315, %v4314
  %v4342 = vpack.c.b16 %v4317, %v4316
  %v4343 = vpack.c.b16 %v4319, %v4318
  %v4344 = vpack.c.b16 %v4321, %v4320
  %v4345 = vpack.c.b16 %v4323, %v4322
  %v4346 = vpack.c.b16 %v4325, %v4324
  %v4347 = vpack.c.b16 %v4327, %v4326
  %v4348 = vpack.c.b16 %v4329, %v4328
  %v4349 = vpack.c.b16 %v4331, %v4330
  %v4350 = vpack.c.b16 %v4333, %v4332
  %v4351 = vpack.c.b16 %v4335, %v4334
  %4368 = vmatprep.subr.bf16.mxu0 0
  %4369 = vmatpush1.bf16.msra.mxu0 %v4336
  %4370 = vmatprep.subr.bf16.mxu0 0
  %4371 = vmatpush1.bf16.msra.mxu0 %v4337
  %4372 = vmatprep.subr.bf16.mxu0 0
  %4373 = vmatpush1.bf16.msra.mxu0 %v4338
  %4374 = vmatprep.subr.bf16.mxu0 0
  %4375 = vmatpush1.bf16.msra.mxu0 %v4339
  %4376 = vmatprep.subr.bf16.mxu0 0
  %4377 = vmatpush1.bf16.msra.mxu0 %v4340
  %4378 = vmatprep.subr.bf16.mxu0 0
  %4379 = vmatpush1.bf16.msra.mxu0 %v4341
  %4380 = vmatprep.subr.bf16.mxu0 0
  %4381 = vmatpush1.bf16.msra.mxu0 %v4342
  %4382 = vmatprep.subr.bf16.mxu0 0
  %4383 = vmatpush1.bf16.msra.mxu0 %v4343
  %4384 = vmatprep.subr.bf16.mxu0 0
  %4385 = vmatpush1.bf16.msra.mxu0 %v4344
  %4386 = vmatprep.subr.bf16.mxu0 0
  %4387 = vmatpush1.bf16.msra.mxu0 %v4345
  %4388 = vmatprep.subr.bf16.mxu0 0
  %4389 = vmatpush1.bf16.msra.mxu0 %v4346
  %4390 = vmatprep.subr.bf16.mxu0 0
  %4391 = vmatpush1.bf16.msra.mxu0 %v4347
  %4392 = vmatprep.subr.bf16.mxu0 0
  %4393 = vmatpush1.bf16.msra.mxu0 %v4348
  %4394 = vmatprep.subr.bf16.mxu0 0
  %4395 = vmatpush1.bf16.msra.mxu0 %v4349
  %4396 = vmatprep.subr.bf16.mxu0 0
  %4397 = vmatpush1.bf16.msra.mxu0 %v4350
  %4398 = vmatprep.subr.bf16.mxu0 0
  %4399 = vmatpush1.bf16.msra.mxu0 %v4351
  %4400 = vmatprep.mubr.bf16.mxu0 %v4228
  %4401 = vmatmul.mubr.bf16.gmra.mrb[0].mxu0 %v4227
  %v4402 = vpop.f32.mrb[0].mxu0
  %v4403 = vadd.f32 %v4270, %v4402
  %v4404 = vpop.f32.mrb[0].mxu0
  %v4405 = vpop.f32.mrb[0].mxu0
  %v4406 = vadd.f32 %v4270, %v4405
  %v4407 = vpop.f32.mrb[0].mxu0
  %4408 = vmatprep.mubr.bf16.mxu0 %v4230
  %4409 = vmatmul.mubr.bf16.gmra.mrb[0].mxu0 %v4229
  %v4410 = vpop.f32.mrb[0].mxu0
  %v4411 = vadd.f32 %v4270, %v4410
  %v4412 = vpop.f32.mrb[0].mxu0
  %v4413 = vpop.f32.mrb[0].mxu0
  %v4414 = vadd.f32 %v4270, %v4413
  %v4415 = vpop.f32.mrb[0].mxu0
  %4416 = vdwg.mxu0
  %v4417 = vadd.f32 %v3986, %v4403
  %v4418 = vadd.f32 %v3987, %v4406
  %v4419 = vadd.f32 %v3988, %v4411
  %v4420 = vadd.f32 %v3989, %v4414
  %s4421 = scalar_lea.vmem %s9, 1
  %v4422 = vld [vmem:[%s4421] sm:$0x1]
  %s4423 = scalar_lea.vmem %s10, 1
  %v4424 = vld [vmem:[%s4423] sm:$0x1]
  %v4425 = vsel %vm331, %v4417, 0.0
  %4426 = vadd.xlane.f32.xlu0 %v4425
  %v4427 = vpop.xlane.xlu0 %4426
  %v4428 = vsel %vm331, %v4418, 0.0
  %4429 = vadd.xlane.f32.xlu0 %v4428
  %v4430 = vpop.xlane.xlu0 %4429
  %v4431 = vsel %vm331, %v4419, 0.0
  %4432 = vadd.xlane.f32.xlu0 %v4431
  %v4433 = vpop.xlane.xlu0 %4432
  %v4434 = vsel %vm331, %v4420, 0.0
  %4435 = vadd.xlane.f32.xlu0 %v4434
  %v4436 = vpop.xlane.xlu0 %4435
  %v4437 = vmul.f32 %v4427, %v1319
  %v4438 = vmul.f32 %v4430, %v1319
  %v4439 = vmul.f32 %v4433, %v1319
  %v4440 = vmul.f32 %v4436, %v1319
  %v4441 = vsub.f32 %v4417, %v4437
  %v4442 = vsub.f32 %v4418, %v4438
  %v4443 = vsub.f32 %v4419, %v4439
  %v4444 = vsub.f32 %v4420, %v4440
  %v4445 = vmul.f32 %v4441, %v4441
  %v4446 = vmul.f32 %v4442, %v4442
  %v4447 = vmul.f32 %v4443, %v4443
  %v4448 = vmul.f32 %v4444, %v4444
  %v4449 = vsel %vm331, %v4445, 0.0
  %4450 = vadd.xlane.f32.xlu0 %v4449
  %v4451 = vpop.xlane.xlu0 %4450
  %v4452 = vsel %vm331, %v4446, 0.0
  %4453 = vadd.xlane.f32.xlu0 %v4452
  %v4454 = vpop.xlane.xlu0 %4453
  %v4455 = vsel %vm331, %v4447, 0.0
  %4456 = vadd.xlane.f32.xlu0 %v4455
  %v4457 = vpop.xlane.xlu0 %4456
  %v4458 = vsel %vm331, %v4448, 0.0
  %4459 = vadd.xlane.f32.xlu0 %v4458
  %v4460 = vpop.xlane.xlu0 %4459
  %v4461 = vmul.f32 %v4451, %v1319
  %v4462 = vmul.f32 %v4454, %v1319
  %v4463 = vmul.f32 %v4457, %v1319
  %v4464 = vmul.f32 %v4460, %v1319
  %v4465 = vadd.f32 %v4461, 1e-05
  %v4466 = vadd.f32 %v4462, 1e-05
  %v4467 = vadd.f32 %v4463, 1e-05
  %v4468 = vadd.f32 %v4464, 1e-05
  %v4469 = vrsqrt.pop %v4465
  %v4470 = vrsqrt.pop %v4466
  %v4471 = vrsqrt.pop %v4467
  %v4472 = vrsqrt.pop %v4468
  %v4473 = vmul.f32 %v4441, %v4469
  %v4474 = vmul.f32 %v4442, %v4470
  %v4475 = vmul.f32 %v4443, %v4471
  %v4476 = vmul.f32 %v4444, %v4472
  %4481 = vrot.lane.b32.xlu0 %v4417, 96
  %v4482 = vpop.permute.xlu0 %4481
  %4483 = vrot.lane.b32.xlu0 %v4418, 96
  %v4484 = vpop.permute.xlu0 %4483
  %4485 = vrot.lane.b32.xlu0 %v4419, 96
  %v4486 = vpop.permute.xlu0 %4485
  %4487 = vrot.lane.b32.xlu0 %v4420, 96
  %v4488 = vpop.permute.xlu0 %4487
  %v4493 = vsel %vm331, %v4482, 0.0
  %4494 = vadd.xlane.f32.xlu0 %v4493
  %v4495 = vpop.xlane.xlu0 %4494
  %v4496 = vsel %vm331, %v4484, 0.0
  %4497 = vadd.xlane.f32.xlu0 %v4496
  %v4498 = vpop.xlane.xlu0 %4497
  %v4499 = vsel %vm331, %v4486, 0.0
  %4500 = vadd.xlane.f32.xlu0 %v4499
  %v4501 = vpop.xlane.xlu0 %4500
  %v4502 = vsel %vm331, %v4488, 0.0
  %4503 = vadd.xlane.f32.xlu0 %v4502
  %v4504 = vpop.xlane.xlu0 %4503
  %v4505 = vmul.f32 %v4495, %v1319
  %v4506 = vmul.f32 %v4498, %v1319
  %v4507 = vmul.f32 %v4501, %v1319
  %v4508 = vmul.f32 %v4504, %v1319
  %v4509 = vsub.f32 %v4417, %v4505
  %v4510 = vsub.f32 %v4418, %v4506
  %v4511 = vsub.f32 %v4419, %v4507
  %v4512 = vsub.f32 %v4420, %v4508
  %v4513 = vmul.f32 %v4509, %v4509
  %v4514 = vmul.f32 %v4510, %v4510
  %v4515 = vmul.f32 %v4511, %v4511
  %v4516 = vmul.f32 %v4512, %v4512
  %4521 = vrot.lane.b32.xlu0 %v4513, 96
  %v4522 = vpop.permute.xlu0 %4521
  %4523 = vrot.lane.b32.xlu0 %v4514, 96
  %v4524 = vpop.permute.xlu0 %4523
  %4525 = vrot.lane.b32.xlu0 %v4515, 96
  %v4526 = vpop.permute.xlu0 %4525
  %4527 = vrot.lane.b32.xlu0 %v4516, 96
  %v4528 = vpop.permute.xlu0 %4527
  %v4533 = vsel %vm331, %v4522, 0.0
  %4534 = vadd.xlane.f32.xlu0 %v4533
  %v4535 = vpop.xlane.xlu0 %4534
  %v4536 = vsel %vm331, %v4524, 0.0
  %4537 = vadd.xlane.f32.xlu0 %v4536
  %v4538 = vpop.xlane.xlu0 %4537
  %v4539 = vsel %vm331, %v4526, 0.0
  %4540 = vadd.xlane.f32.xlu0 %v4539
  %v4541 = vpop.xlane.xlu0 %4540
  %v4542 = vsel %vm331, %v4528, 0.0
  %4543 = vadd.xlane.f32.xlu0 %v4542
  %v4544 = vpop.xlane.xlu0 %4543
  %v4545 = vmul.f32 %v4535, %v1319
  %v4546 = vmul.f32 %v4538, %v1319
  %v4547 = vmul.f32 %v4541, %v1319
  %v4548 = vmul.f32 %v4544, %v1319
  %v4549 = vadd.f32 %v4545, 1e-05
  %v4550 = vadd.f32 %v4546, 1e-05
  %v4551 = vadd.f32 %v4547, 1e-05
  %v4552 = vadd.f32 %v4548, 1e-05
  %v4553 = vrsqrt.pop %v4549
  %v4554 = vrsqrt.pop %v4550
  %v4555 = vrsqrt.pop %v4551
  %v4556 = vrsqrt.pop %v4552
  %v4557 = vmul.f32 %v4509, %v4553
  %v4558 = vmul.f32 %v4510, %v4554
  %v4559 = vmul.f32 %v4511, %v4555
  %v4560 = vmul.f32 %v4512, %v4556
  %4561 = vrot.lane.b32.xlu0 %v4417, 64
  %v4562 = vpop.permute.xlu0 %4561
  %4563 = vrot.lane.b32.xlu0 %v4418, 64
  %v4564 = vpop.permute.xlu0 %4563
  %4565 = vrot.lane.b32.xlu0 %v4419, 64
  %v4566 = vpop.permute.xlu0 %4565
  %4567 = vrot.lane.b32.xlu0 %v4420, 64
  %v4568 = vpop.permute.xlu0 %4567
  %v4573 = vsel %vm331, %v4562, 0.0
  %4574 = vadd.xlane.f32.xlu0 %v4573
  %v4575 = vpop.xlane.xlu0 %4574
  %v4576 = vsel %vm331, %v4564, 0.0
  %4577 = vadd.xlane.f32.xlu0 %v4576
  %v4578 = vpop.xlane.xlu0 %4577
  %v4579 = vsel %vm331, %v4566, 0.0
  %4580 = vadd.xlane.f32.xlu0 %v4579
  %v4581 = vpop.xlane.xlu0 %4580
  %v4582 = vsel %vm331, %v4568, 0.0
  %4583 = vadd.xlane.f32.xlu0 %v4582
  %v4584 = vpop.xlane.xlu0 %4583
  %v4585 = vmul.f32 %v4575, %v1319
  %v4586 = vmul.f32 %v4578, %v1319
  %v4587 = vmul.f32 %v4581, %v1319
  %v4588 = vmul.f32 %v4584, %v1319
  %v4589 = vsub.f32 %v4417, %v4585
  %v4590 = vsub.f32 %v4418, %v4586
  %v4591 = vsub.f32 %v4419, %v4587
  %v4592 = vsub.f32 %v4420, %v4588
  %v4593 = vmul.f32 %v4589, %v4589
  %v4594 = vmul.f32 %v4590, %v4590
  %v4595 = vmul.f32 %v4591, %v4591
  %v4596 = vmul.f32 %v4592, %v4592
  %4601 = vrot.lane.b32.xlu0 %v4593, 64
  %v4602 = vpop.permute.xlu0 %4601
  %4603 = vrot.lane.b32.xlu0 %v4594, 64
  %v4604 = vpop.permute.xlu0 %4603
  %4605 = vrot.lane.b32.xlu0 %v4595, 64
  %v4606 = vpop.permute.xlu0 %4605
  %4607 = vrot.lane.b32.xlu0 %v4596, 64
  %v4608 = vpop.permute.xlu0 %4607
  %v4613 = vsel %vm331, %v4602, 0.0
  %4614 = vadd.xlane.f32.xlu0 %v4613
  %v4615 = vpop.xlane.xlu0 %4614
  %v4616 = vsel %vm331, %v4604, 0.0
  %4617 = vadd.xlane.f32.xlu0 %v4616
  %v4618 = vpop.xlane.xlu0 %4617
  %v4619 = vsel %vm331, %v4606, 0.0
  %4620 = vadd.xlane.f32.xlu0 %v4619
  %v4621 = vpop.xlane.xlu0 %4620
  %v4622 = vsel %vm331, %v4608, 0.0
  %4623 = vadd.xlane.f32.xlu0 %v4622
  %v4624 = vpop.xlane.xlu0 %4623
  %v4625 = vmul.f32 %v4615, %v1319
  %v4626 = vmul.f32 %v4618, %v1319
  %v4627 = vmul.f32 %v4621, %v1319
  %v4628 = vmul.f32 %v4624, %v1319
  %v4629 = vadd.f32 %v4625, 1e-05
  %v4630 = vadd.f32 %v4626, 1e-05
  %v4631 = vadd.f32 %v4627, 1e-05
  %v4632 = vadd.f32 %v4628, 1e-05
  %v4633 = vrsqrt.pop %v4629
  %v4634 = vrsqrt.pop %v4630
  %v4635 = vrsqrt.pop %v4631
  %v4636 = vrsqrt.pop %v4632
  %v4637 = vmul.f32 %v4589, %v4633
  %v4638 = vmul.f32 %v4590, %v4634
  %v4639 = vmul.f32 %v4591, %v4635
  %v4640 = vmul.f32 %v4592, %v4636
  %4641 = vrot.lane.b32.xlu0 %v4417, 32
  %v4642 = vpop.permute.xlu0 %4641
  %4643 = vrot.lane.b32.xlu0 %v4418, 32
  %v4644 = vpop.permute.xlu0 %4643
  %4645 = vrot.lane.b32.xlu0 %v4419, 32
  %v4646 = vpop.permute.xlu0 %4645
  %4647 = vrot.lane.b32.xlu0 %v4420, 32
  %v4648 = vpop.permute.xlu0 %4647
  %v4653 = vsel %vm331, %v4642, 0.0
  %4654 = vadd.xlane.f32.xlu0 %v4653
  %v4655 = vpop.xlane.xlu0 %4654
  %v4656 = vsel %vm331, %v4644, 0.0
  %4657 = vadd.xlane.f32.xlu0 %v4656
  %v4658 = vpop.xlane.xlu0 %4657
  %v4659 = vsel %vm331, %v4646, 0.0
  %4660 = vadd.xlane.f32.xlu0 %v4659
  %v4661 = vpop.xlane.xlu0 %4660
  %v4662 = vsel %vm331, %v4648, 0.0
  %4663 = vadd.xlane.f32.xlu0 %v4662
  %v4664 = vpop.xlane.xlu0 %4663
  %v4665 = vmul.f32 %v4655, %v1319
  %v4666 = vmul.f32 %v4658, %v1319
  %v4667 = vmul.f32 %v4661, %v1319
  %v4668 = vmul.f32 %v4664, %v1319
  %v4669 = vsub.f32 %v4417, %v4665
  %v4670 = vsub.f32 %v4418, %v4666
  %v4671 = vsub.f32 %v4419, %v4667
  %v4672 = vsub.f32 %v4420, %v4668
  %v4673 = vmul.f32 %v4669, %v4669
  %v4674 = vmul.f32 %v4670, %v4670
  %v4675 = vmul.f32 %v4671, %v4671
  %v4676 = vmul.f32 %v4672, %v4672
  %4681 = vrot.lane.b32.xlu0 %v4673, 32
  %v4682 = vpop.permute.xlu0 %4681
  %4683 = vrot.lane.b32.xlu0 %v4674, 32
  %v4684 = vpop.permute.xlu0 %4683
  %4685 = vrot.lane.b32.xlu0 %v4675, 32
  %v4686 = vpop.permute.xlu0 %4685
  %4687 = vrot.lane.b32.xlu0 %v4676, 32
  %v4688 = vpop.permute.xlu0 %4687
  %v4693 = vsel %vm331, %v4682, 0.0
  %4694 = vadd.xlane.f32.xlu0 %v4693
  %v4695 = vpop.xlane.xlu0 %4694
  %v4696 = vsel %vm331, %v4684, 0.0
  %4697 = vadd.xlane.f32.xlu0 %v4696
  %v4698 = vpop.xlane.xlu0 %4697
  %v4699 = vsel %vm331, %v4686, 0.0
  %4700 = vadd.xlane.f32.xlu0 %v4699
  %v4701 = vpop.xlane.xlu0 %4700
  %v4702 = vsel %vm331, %v4688, 0.0
  %4703 = vadd.xlane.f32.xlu0 %v4702
  %v4704 = vpop.xlane.xlu0 %4703
  %v4705 = vmul.f32 %v4695, %v1319
  %v4706 = vmul.f32 %v4698, %v1319
  %v4707 = vmul.f32 %v4701, %v1319
  %v4708 = vmul.f32 %v4704, %v1319
  %v4709 = vadd.f32 %v4705, 1e-05
  %v4710 = vadd.f32 %v4706, 1e-05
  %v4711 = vadd.f32 %v4707, 1e-05
  %v4712 = vadd.f32 %v4708, 1e-05
  %v4713 = vrsqrt.pop %v4709
  %v4714 = vrsqrt.pop %v4710
  %v4715 = vrsqrt.pop %v4711
  %v4716 = vrsqrt.pop %v4712
  %v4717 = vmul.f32 %v4669, %v4713
  %v4718 = vmul.f32 %v4670, %v4714
  %v4719 = vmul.f32 %v4671, %v4715
  %v4720 = vmul.f32 %v4672, %v4716
  %v4721 = vsel %vm331, %v4473, %v4557
  %v4722 = vsel %vm331, %v4474, %v4558
  %v4723 = vsel %vm331, %v4475, %v4559
  %v4724 = vsel %vm331, %v4476, %v4560
  %v4725 = vsel %vm1176, %v4721, %v4637
  %v4726 = vsel %vm1176, %v4722, %v4638
  %v4727 = vsel %vm1176, %v4723, %v4639
  %v4728 = vsel %vm1176, %v4724, %v4640
  %v4729 = vsel %vm1181, %v4725, %v4717
  %v4730 = vsel %vm1181, %v4726, %v4718
  %v4731 = vsel %vm1181, %v4727, %v4719
  %v4732 = vsel %vm1181, %v4728, %v4720
  %v4734 = vlaneseq
  %v4735 = vshrl.u32 %v4734, 7
  %v4736 = vsub.s32 0, %v4735
  %v4737 = vrot.slane %v4422, %v4736
  %v4739 = vmul.f32 %v4729, %v4737
  %v4740 = vmul.f32 %v4730, %v4737
  %v4741 = vmul.f32 %v4731, %v4737
  %v4742 = vmul.f32 %v4732, %v4737
  %v4744 = vlaneseq
  %v4745 = vshrl.u32 %v4744, 7
  %v4746 = vsub.s32 0, %v4745
  %v4747 = vrot.slane %v4424, %v4746
  %v4749 = vadd.f32 %v4739, %v4747
  %v4750 = vadd.f32 %v4740, %v4747
  %v4751 = vadd.f32 %v4741, %v4747
  %v4752 = vadd.f32 %v4742, %v4747
  %s4753 = scalar_lea.vmem %s11, 32
  %4754 = vst [vmem:[%s4753] sm:$0xff] %v4749
  %4755 = vst [vmem:[%s4753 + $0x8] sm:$0xff] %v4750
  %4756 = vst [vmem:[%s4753 + $0x10] sm:$0xff] %v4751
  %4757 = vst [vmem:[%s4753 + $0x18] sm:$0xff] %v4752
  // Predicated region
  $region46: #{encoder_process.1} parent=0 // pred_check
    _
  $region47: #{encoder_process.1} parent=0 // pred_check_branch
    %4759 = sbr.rel (0) target = $region49
  $region48: #{encoder_process.1} parent=0 // pred_region
    _
  $region49: #{encoder_process.1} parent=0 // pred_fallthru
    _
  // Predicated region
  $region50: #{encoder_process.1} parent=0 // pred_check
    _
  $region51: #{encoder_process.1} parent=0 // pred_check_branch
    %4761 = sbr.rel (0) target = $region53
  $region52: #{encoder_process.1} parent=0 // pred_region
    _
  $region53: #{encoder_process.1} parent=0 // pred_fallthru
    _

</llo_original>
